<compile_context>
chip_gen: v7x
topology: tpu7x:2x2x1
jax: 0.10.0
libtpu: 0.0.40
codegen_flags: <defaults>
</compile_context>

<pallas_src>
import functools
import math

import jax
import jax.numpy as jnp
from jax.experimental import pallas as pl
from jax.experimental.pallas import tpu as pltpu

EPS = 1e-12  # TF-style LayerNorm epsilon (inside the sqrt), as in the module


# ---------------------------------------------------------------------------
# In-kernel helpers (pure jnp, traced inside the Pallas kernel body)
# ---------------------------------------------------------------------------
def _layernorm(x, gamma, beta):
    # x: (S, D); gamma/beta: (1, D).  Exact divide-by-sqrt (matches reference).
    u = jnp.mean(x, axis=-1, keepdims=True)
    d = x - u
    s = jnp.mean(d * d, axis=-1, keepdims=True)
    return gamma * (d / jnp.sqrt(s + EPS)) + beta


def _gelu(x):
    # HuggingFace erf-based gelu, matching the PyTorch reference
    return x * 0.5 * (1.0 + jax.lax.erf(x / math.sqrt(2.0)))


# ---------------------------------------------------------------------------
# Single fused kernel: Embeddings + n_layers transformer blocks (+ residual)
# One grid step == one batch element; all weights resident in VMEM.
# ---------------------------------------------------------------------------
def transformer_kernel(
    x_ref,
    w_lin_ref, b_lin_ref, pos_ref, ge_ref, be_ref,           # Embeddings
    wq_ref, bq_ref, wk_ref, bk_ref, wv_ref, bv_ref,           # per-layer (stacked on L)
    wp_ref, bp_ref, g1_ref, b1_ref,
    w1_ref, bb1_ref, w2_ref, bb2_ref, g2_ref, b2_ref,
    out_ref,
    *, n_layers, n_heads, emb_norm):
    x = x_ref[0]                          # (S, F)
    D = w_lin_ref.shape[1]
    W = D // n_heads
    inv_sqrt_w = 1.0 / math.sqrt(W)

    ge = ge_ref[...]
    be = be_ref[...]

    # ---- Embeddings: e = LN( [LN?](x @ W + b) + pos_table ) ----
    e = jnp.dot(x, w_lin_ref[...], preferred_element_type=jnp.float32) + b_lin_ref[...]
    if emb_norm:
        e = _layernorm(e, ge, be)
    e = e + pos_ref[...]
    h = _layernorm(e, ge, be)

    # ---- n_layers of ResidualConnection(TransformerBlock), fully unrolled ----
    for li in range(n_layers):
        xin = h

        q = jnp.dot(xin, wq_ref[li], preferred_element_type=jnp.float32) + bq_ref[li]
        k = jnp.dot(xin, wk_ref[li], preferred_element_type=jnp.float32) + bk_ref[li]
        v = jnp.dot(xin, wv_ref[li], preferred_element_type=jnp.float32) + bv_ref[li]

        # Head split: static lane slices stacked on a leading (untiled) axis.
        qs = jnp.stack([q[:, hh * W:(hh + 1) * W] for hh in range(n_heads)], axis=0)
        ks = jnp.stack([k[:, hh * W:(hh + 1) * W] for hh in range(n_heads)], axis=0)
        vs = jnp.stack([v[:, hh * W:(hh + 1) * W] for hh in range(n_heads)], axis=0)
        # qs/ks/vs: (H, S, W)

        # Batched QK^T over all heads in one dot_general.
        scores = jnp.einsum('hsw,htw->hst', qs, ks,
                            preferred_element_type=jnp.float32) * inv_sqrt_w
        scores = scores - jnp.max(scores, axis=-1, keepdims=True)
        p = jnp.exp(scores)
        denom = jnp.sum(p, axis=-1, keepdims=True)
        p = p / denom                                   # exact softmax normalization

        # Batched PV over all heads in one dot_general: (H, S, W)
        ctx = jnp.einsum('hst,htw->hsw', p, vs,
                         preferred_element_type=jnp.float32)
        # Merge heads back to (S, D) (lane concat of (S, W) slabs).
        h_att = jnp.concatenate([ctx[hh] for hh in range(n_heads)], axis=-1)

        proj = jnp.dot(h_att, wp_ref[li], preferred_element_type=jnp.float32) + bp_ref[li]
        h1 = _layernorm(h_att + proj, g1_ref[li], b1_ref[li])

        ff = jnp.dot(h1, w1_ref[li], preferred_element_type=jnp.float32) + bb1_ref[li]
        ff = _gelu(ff)
        ff = jnp.dot(ff, w2_ref[li], preferred_element_type=jnp.float32) + bb2_ref[li]
        h2 = _layernorm(h1 + ff, g2_ref[li], b2_ref[li])

        # ResidualConnectionModule with module_factor=input_factor=1.0
        h = h2 + xin

    out_ref[0] = h.astype(out_ref.dtype)


# ---------------------------------------------------------------------------
# Wrapper
# ---------------------------------------------------------------------------
def _const_spec(shape):
    """Full-array block whose index map is constant across the grid."""
    ndim = len(shape)
    return pl.BlockSpec(shape, lambda b, _n=ndim: (0,) * _n)


def transformer_forward(x, params, *, emb_norm, n_heads, n_layers):
    B, S, F = x.shape
    pe = params["embed"]
    lw = params["layers"]
    D = pe["w_lin"].shape[1]

    weight_args = [
        pe["w_lin"], pe["b_lin"], pe["pos"], pe["gamma"], pe["beta"],
        lw["wq"], lw["bq"], lw["wk"], lw["bk"], lw["wv"], lw["bv"],
        lw["wp"], lw["bp"], lw["g1"], lw["b1"],
        lw["w1"], lw["bb1"], lw["w2"], lw["bb2"], lw["g2"], lw["b2"],
    ]

    in_specs = [pl.BlockSpec((1, S, F), lambda b: (b, 0, 0))]
    in_specs += [_const_spec(w.shape) for w in weight_args]

    return pl.pallas_call(
        functools.partial(transformer_kernel, n_layers=n_layers,
                          n_heads=n_heads, emb_norm=emb_norm),
        out_shape=jax.ShapeDtypeStruct((B, S, D), jnp.float32),
        grid=(B,),
        in_specs=in_specs,
        out_specs=pl.BlockSpec((1, S, D), lambda b: (b, 0, 0)),
        compiler_params=pltpu.CompilerParams(
            dimension_semantics=("parallel",)),   # v7x: one batch per TensorCore
    )(x, *weight_args)


# ---------------------------------------------------------------------------
# Pure-JAX reference (independent correctness check)
# ---------------------------------------------------------------------------
def _ref_ln(x, g, b):
    u = jnp.mean(x, -1, keepdims=True)
    s = jnp.mean((x - u) ** 2, -1, keepdims=True)
    return g * ((x - u) / jnp.sqrt(s + EPS)) + b


def ref_forward(x, params, *, emb_norm, n_heads, n_layers):
    pe = params["embed"]
    lw = params["layers"]
    e = x @ pe["w_lin"] + pe["b_lin"]
    if emb_norm:
        e = _ref_ln(e, pe["gamma"], pe["beta"])
    e = e + pe["pos"][None]
    h = _ref_ln(e, pe["gamma"], pe["beta"])
    B, S, D = h.shape
    W = D // n_heads
    for li in range(n_layers):
        xin = h
        q = (xin @ lw["wq"][li] + lw["bq"][li]).reshape(B, S, n_heads, W).transpose(0, 2, 1, 3)
        k = (xin @ lw["wk"][li] + lw["bk"][li]).reshape(B, S, n_heads, W).transpose(0, 2, 1, 3)
        v = (xin @ lw["wv"][li] + lw["bv"][li]).reshape(B, S, n_heads, W).transpose(0, 2, 1, 3)
        sc = jnp.einsum("bhsw,bhtw->bhst", q, k) / math.sqrt(W)
        sc = jax.nn.softmax(sc, axis=-1)
        a = jnp.einsum("bhst,bhtw->bhsw", sc, v).transpose(0, 2, 1, 3).reshape(B, S, D)
        h1 = _ref_ln(a + (a @ lw["wp"][li] + lw["bp"][li]), lw["g1"][li], lw["b1"][li])
        ff = _gelu(h1 @ lw["w1"][li] + lw["bb1"][li]) @ lw["w2"][li] + lw["bb2"][li]
        h2 = _ref_ln(h1 + ff, lw["g2"][li], lw["b2"][li])
        h = h2 + xin
    return h


# ---------------------------------------------------------------------------
# Deterministic parameter construction (per-layer weights stacked on axis 0)
# ---------------------------------------------------------------------------
def make_params(key, *, feature_num, hidden, hidden_ff, seq_len, n_layers):
    def nrm(k, shape, scale=0.02):
        return (scale * jax.random.normal(k, shape)).astype(jnp.float32)

    keys = jax.random.split(key, 15)
    embed = {
        "w_lin": nrm(keys[0], (feature_num, hidden)),
        "b_lin": nrm(keys[1], (1, hidden)),
        "pos": nrm(keys[2], (seq_len, hidden)),
        "gamma": jnp.ones((1, hidden), jnp.float32),
        "beta": jnp.zeros((1, hidden), jnp.float32),
    }
    L = n_layers
    layers = {
        "wq": nrm(keys[3], (L, hidden, hidden)), "bq": nrm(keys[4], (L, 1, hidden)),
        "wk": nrm(keys[5], (L, hidden, hidden)), "bk": nrm(keys[6], (L, 1, hidden)),
        "wv": nrm(keys[7], (L, hidden, hidden)), "bv": nrm(keys[8], (L, 1, hidden)),
        "wp": nrm(keys[9], (L, hidden, hidden)), "bp": nrm(keys[10], (L, 1, hidden)),
        "g1": jnp.ones((L, 1, hidden), jnp.float32),
        "b1": jnp.zeros((L, 1, hidden), jnp.float32),
        "w1": nrm(keys[11], (L, hidden, hidden_ff)), "bb1": nrm(keys[12], (L, 1, hidden_ff)),
        "w2": nrm(keys[13], (L, hidden_ff, hidden)), "bb2": nrm(keys[14], (L, 1, hidden)),
        "g2": jnp.ones((L, 1, hidden), jnp.float32),
        "b2": jnp.zeros((L, 1, hidden), jnp.float32),
    }
    return {"embed": embed, "layers": layers}


if __name__ == "__main__":
    # Small config implied by the module's kwargs
    B, S = 2, 8
    feature_num, hidden, hidden_ff = 16, 32, 64
    n_heads, n_layers = 4, 2
    emb_norm = True
    # TODO(synk): `dropout` kwarg is stored but never applied in forward(); omitted.

    key = jax.random.PRNGKey(0)
    kx, kp = jax.random.split(key)
    x = jax.random.normal(kx, (B, S, feature_num), dtype=jnp.float32)
    params = make_params(kp, feature_num=feature_num, hidden=hidden,
                         hidden_ff=hidden_ff, seq_len=S, n_layers=n_layers)

    out = transformer_forward(x, params, emb_norm=emb_norm,
                              n_heads=n_heads, n_layers=n_layers)
    out = jax.block_until_ready(out)

    ref = ref_forward(x, params, emb_norm=emb_norm,
                      n_heads=n_heads, n_layers=n_layers)
    assert out.shape == (B, S, hidden)
    # Kernel now uses exact divides for softmax/LayerNorm; remaining delta vs the
    # reference is only op-reordering / transcendental rounding -> 2e-3 is ample.
    assert jnp.allclose(out, ref, atol=2e-3, rtol=2e-3), "mismatch vs JAX reference"

    print("KERNEL_OK")
</pallas_src>

<mosaic_0001>
module attributes {stable_mosaic.version = 11 : i64} {
  func.func @transformer_kernel(%arg0: i32, %arg1: memref<1x8x16xf32, #tpu.memory_space<vmem>>, %arg2: memref<16x32xf32, #tpu.memory_space<vmem>>, %arg3: memref<1x32xf32, #tpu.memory_space<vmem>>, %arg4: memref<8x32xf32, #tpu.memory_space<vmem>>, %arg5: memref<1x32xf32, #tpu.memory_space<vmem>>, %arg6: memref<1x32xf32, #tpu.memory_space<vmem>>, %arg7: memref<2x32x32xf32, #tpu.memory_space<vmem>>, %arg8: memref<2x1x32xf32, #tpu.memory_space<vmem>>, %arg9: memref<2x32x32xf32, #tpu.memory_space<vmem>>, %arg10: memref<2x1x32xf32, #tpu.memory_space<vmem>>, %arg11: memref<2x32x32xf32, #tpu.memory_space<vmem>>, %arg12: memref<2x1x32xf32, #tpu.memory_space<vmem>>, %arg13: memref<2x32x32xf32, #tpu.memory_space<vmem>>, %arg14: memref<2x1x32xf32, #tpu.memory_space<vmem>>, %arg15: memref<2x1x32xf32, #tpu.memory_space<vmem>>, %arg16: memref<2x1x32xf32, #tpu.memory_space<vmem>>, %arg17: memref<2x32x64xf32, #tpu.memory_space<vmem>>, %arg18: memref<2x1x64xf32, #tpu.memory_space<vmem>>, %arg19: memref<2x64x32xf32, #tpu.memory_space<vmem>>, %arg20: memref<2x1x32xf32, #tpu.memory_space<vmem>>, %arg21: memref<2x1x32xf32, #tpu.memory_space<vmem>>, %arg22: memref<2x1x32xf32, #tpu.memory_space<vmem>>, %arg23: memref<1x8x32xf32, #tpu.memory_space<vmem>>) attributes {dimension_semantics = [#tpu.dimension_semantics<parallel>], iteration_bounds = array<i64: 2>, scalar_prefetch = 0 : i64, scratch_operands = 0 : i64, tpu.core_type = #tpu.core_type<tc>, window_params = [{transform_indices = @transform_0, window_bounds = array<i64: 1, 8, 16>}, {pipeline_mode = #tpu.pipeline_mode<synchronous>, transform_indices = @transform_1, window_bounds = array<i64: 16, 32>}, {pipeline_mode = #tpu.pipeline_mode<synchronous>, transform_indices = @transform_2, window_bounds = array<i64: 1, 32>}, {pipeline_mode = #tpu.pipeline_mode<synchronous>, transform_indices = @transform_3, window_bounds = array<i64: 8, 32>}, {pipeline_mode = #tpu.pipeline_mode<synchronous>, transform_indices = @transform_4, window_bounds = array<i64: 1, 32>}, {pipeline_mode = #tpu.pipeline_mode<synchronous>, transform_indices = @transform_5, window_bounds = array<i64: 1, 32>}, {pipeline_mode = #tpu.pipeline_mode<synchronous>, transform_indices = @transform_6, window_bounds = array<i64: 2, 32, 32>}, {pipeline_mode = #tpu.pipeline_mode<synchronous>, transform_indices = @transform_7, window_bounds = array<i64: 2, 1, 32>}, {pipeline_mode = #tpu.pipeline_mode<synchronous>, transform_indices = @transform_8, window_bounds = array<i64: 2, 32, 32>}, {pipeline_mode = #tpu.pipeline_mode<synchronous>, transform_indices = @transform_9, window_bounds = array<i64: 2, 1, 32>}, {pipeline_mode = #tpu.pipeline_mode<synchronous>, transform_indices = @transform_10, window_bounds = array<i64: 2, 32, 32>}, {pipeline_mode = #tpu.pipeline_mode<synchronous>, transform_indices = @transform_11, window_bounds = array<i64: 2, 1, 32>}, {pipeline_mode = #tpu.pipeline_mode<synchronous>, transform_indices = @transform_12, window_bounds = array<i64: 2, 32, 32>}, {pipeline_mode = #tpu.pipeline_mode<synchronous>, transform_indices = @transform_13, window_bounds = array<i64: 2, 1, 32>}, {pipeline_mode = #tpu.pipeline_mode<synchronous>, transform_indices = @transform_14, window_bounds = array<i64: 2, 1, 32>}, {pipeline_mode = #tpu.pipeline_mode<synchronous>, transform_indices = @transform_15, window_bounds = array<i64: 2, 1, 32>}, {pipeline_mode = #tpu.pipeline_mode<synchronous>, transform_indices = @transform_16, window_bounds = array<i64: 2, 32, 64>}, {pipeline_mode = #tpu.pipeline_mode<synchronous>, transform_indices = @transform_17, window_bounds = array<i64: 2, 1, 64>}, {pipeline_mode = #tpu.pipeline_mode<synchronous>, transform_indices = @transform_18, window_bounds = array<i64: 2, 64, 32>}, {pipeline_mode = #tpu.pipeline_mode<synchronous>, transform_indices = @transform_19, window_bounds = array<i64: 2, 1, 32>}, {pipeline_mode = #tpu.pipeline_mode<synchronous>, transform_indices = @transform_20, window_bounds = array<i64: 2, 1, 32>}, {pipeline_mode = #tpu.pipeline_mode<synchronous>, transform_indices = @transform_21, window_bounds = array<i64: 2, 1, 32>}, {transform_indices = @transform_22, window_bounds = array<i64: 1, 8, 32>}]} {
    %c0 = arith.constant 0 : index
    %c0_0 = arith.constant 0 : index
    %c0_1 = arith.constant 0 : index
    %0 = vector.load %arg1[%c0, %c0_0, %c0_1] : memref<1x8x16xf32, #tpu.memory_space<vmem>>, vector<1x8x16xf32>
    %1 = vector.shape_cast %0 : vector<1x8x16xf32> to vector<8x16xf32>
    %c0_2 = arith.constant 0 : index
    %c0_3 = arith.constant 0 : index
    %2 = vector.load %arg5[%c0_2, %c0_3] : memref<1x32xf32, #tpu.memory_space<vmem>>, vector<1x32xf32>
    %c0_4 = arith.constant 0 : index
    %c0_5 = arith.constant 0 : index
    %3 = vector.load %arg6[%c0_4, %c0_5] : memref<1x32xf32, #tpu.memory_space<vmem>>, vector<1x32xf32>
    %c0_6 = arith.constant 0 : index
    %c0_7 = arith.constant 0 : index
    %4 = vector.load %arg2[%c0_6, %c0_7] : memref<16x32xf32, #tpu.memory_space<vmem>>, vector<16x32xf32>
    %cst = arith.constant dense<0.000000e+00> : vector<8x32xf32>
    %5 = tpu.matmul %1, %4, %cst {dimension_numbers = #tpu.dot_dimension_numbers<[1], [0], [0], [1], [0, 0, 1, 1], [], []>} : vector<8x16xf32>, vector<16x32xf32>, vector<8x32xf32> -> vector<8x32xf32>
    %c0_8 = arith.constant 0 : index
    %c0_9 = arith.constant 0 : index
    %6 = vector.load %arg3[%c0_8, %c0_9] : memref<1x32xf32, #tpu.memory_space<vmem>>, vector<1x32xf32>
    %7 = vector.broadcast %6 : vector<1x32xf32> to vector<8x32xf32>
    %8 = arith.addf %5, %7 : vector<8x32xf32>
    %cst_10 = arith.constant dense<0.000000e+00> : vector<8xf32>
    %9 = vector.multi_reduction <add>, %8, %cst_10 [1] : vector<8x32xf32> to vector<8xf32>
    %10 = vector.shape_cast %9 : vector<8xf32> to vector<8x1xf32>
    %cst_11 = arith.constant 3.200000e+01 : f32
    %11 = vector.broadcast %cst_11 : f32 to vector<8x1xf32>
    %12 = arith.divf %10, %11 : vector<8x1xf32>
    %13 = vector.broadcast %12 : vector<8x1xf32> to vector<8x32xf32>
    %14 = arith.subf %8, %13 : vector<8x32xf32>
    %15 = arith.mulf %14, %14 : vector<8x32xf32>
    %cst_12 = arith.constant dense<0.000000e+00> : vector<8xf32>
    %16 = vector.multi_reduction <add>, %15, %cst_12 [1] : vector<8x32xf32> to vector<8xf32>
    %17 = vector.shape_cast %16 : vector<8xf32> to vector<8x1xf32>
    %cst_13 = arith.constant 3.200000e+01 : f32
    %18 = vector.broadcast %cst_13 : f32 to vector<8x1xf32>
    %19 = arith.divf %17, %18 : vector<8x1xf32>
    %cst_14 = arith.constant 9.99999996E-13 : f32
    %20 = vector.broadcast %cst_14 : f32 to vector<8x1xf32>
    %21 = arith.addf %19, %20 : vector<8x1xf32>
    %22 = math.sqrt %21 : vector<8x1xf32>
    %23 = vector.broadcast %22 : vector<8x1xf32> to vector<8x32xf32>
    %24 = arith.divf %14, %23 : vector<8x32xf32>
    %25 = vector.broadcast %2 : vector<1x32xf32> to vector<8x32xf32>
    %26 = arith.mulf %25, %24 : vector<8x32xf32>
    %27 = vector.broadcast %3 : vector<1x32xf32> to vector<8x32xf32>
    %28 = arith.addf %26, %27 : vector<8x32xf32>
    %c0_15 = arith.constant 0 : index
    %c0_16 = arith.constant 0 : index
    %29 = vector.load %arg4[%c0_15, %c0_16] : memref<8x32xf32, #tpu.memory_space<vmem>>, vector<8x32xf32>
    %30 = arith.addf %28, %29 : vector<8x32xf32>
    %cst_17 = arith.constant dense<0.000000e+00> : vector<8xf32>
    %31 = vector.multi_reduction <add>, %30, %cst_17 [1] : vector<8x32xf32> to vector<8xf32>
    %32 = vector.shape_cast %31 : vector<8xf32> to vector<8x1xf32>
    %cst_18 = arith.constant 3.200000e+01 : f32
    %33 = vector.broadcast %cst_18 : f32 to vector<8x1xf32>
    %34 = arith.divf %32, %33 : vector<8x1xf32>
    %35 = vector.broadcast %34 : vector<8x1xf32> to vector<8x32xf32>
    %36 = arith.subf %30, %35 : vector<8x32xf32>
    %37 = arith.mulf %36, %36 : vector<8x32xf32>
    %cst_19 = arith.constant dense<0.000000e+00> : vector<8xf32>
    %38 = vector.multi_reduction <add>, %37, %cst_19 [1] : vector<8x32xf32> to vector<8xf32>
    %39 = vector.shape_cast %38 : vector<8xf32> to vector<8x1xf32>
    %cst_20 = arith.constant 3.200000e+01 : f32
    %40 = vector.broadcast %cst_20 : f32 to vector<8x1xf32>
    %41 = arith.divf %39, %40 : vector<8x1xf32>
    %cst_21 = arith.constant 9.99999996E-13 : f32
    %42 = vector.broadcast %cst_21 : f32 to vector<8x1xf32>
    %43 = arith.addf %41, %42 : vector<8x1xf32>
    %44 = math.sqrt %43 : vector<8x1xf32>
    %45 = vector.broadcast %44 : vector<8x1xf32> to vector<8x32xf32>
    %46 = arith.divf %36, %45 : vector<8x32xf32>
    %47 = vector.broadcast %2 : vector<1x32xf32> to vector<8x32xf32>
    %48 = arith.mulf %47, %46 : vector<8x32xf32>
    %49 = vector.broadcast %3 : vector<1x32xf32> to vector<8x32xf32>
    %50 = arith.addf %48, %49 : vector<8x32xf32>
    %c0_22 = arith.constant 0 : index
    %c0_23 = arith.constant 0 : index
    %c0_24 = arith.constant 0 : index
    %51 = vector.load %arg7[%c0_22, %c0_23, %c0_24] : memref<2x32x32xf32, #tpu.memory_space<vmem>>, vector<1x32x32xf32>
    %52 = vector.shape_cast %51 : vector<1x32x32xf32> to vector<32x32xf32>
    %cst_25 = arith.constant dense<0.000000e+00> : vector<8x32xf32>
    %53 = tpu.matmul %50, %52, %cst_25 {dimension_numbers = #tpu.dot_dimension_numbers<[1], [0], [0], [1], [0, 0, 1, 1], [], []>} : vector<8x32xf32>, vector<32x32xf32>, vector<8x32xf32> -> vector<8x32xf32>
    %c0_26 = arith.constant 0 : index
    %c0_27 = arith.constant 0 : index
    %c0_28 = arith.constant 0 : index
    %54 = vector.load %arg8[%c0_26, %c0_27, %c0_28] : memref<2x1x32xf32, #tpu.memory_space<vmem>>, vector<1x1x32xf32>
    %55 = vector.shape_cast %54 : vector<1x1x32xf32> to vector<1x32xf32>
    %56 = vector.broadcast %55 : vector<1x32xf32> to vector<8x32xf32>
    %57 = arith.addf %53, %56 : vector<8x32xf32>
    %c0_29 = arith.constant 0 : index
    %c0_30 = arith.constant 0 : index
    %c0_31 = arith.constant 0 : index
    %58 = vector.load %arg9[%c0_29, %c0_30, %c0_31] : memref<2x32x32xf32, #tpu.memory_space<vmem>>, vector<1x32x32xf32>
    %59 = vector.shape_cast %58 : vector<1x32x32xf32> to vector<32x32xf32>
    %cst_32 = arith.constant dense<0.000000e+00> : vector<8x32xf32>
    %60 = tpu.matmul %50, %59, %cst_32 {dimension_numbers = #tpu.dot_dimension_numbers<[1], [0], [0], [1], [0, 0, 1, 1], [], []>} : vector<8x32xf32>, vector<32x32xf32>, vector<8x32xf32> -> vector<8x32xf32>
    %c0_33 = arith.constant 0 : index
    %c0_34 = arith.constant 0 : index
    %c0_35 = arith.constant 0 : index
    %61 = vector.load %arg10[%c0_33, %c0_34, %c0_35] : memref<2x1x32xf32, #tpu.memory_space<vmem>>, vector<1x1x32xf32>
    %62 = vector.shape_cast %61 : vector<1x1x32xf32> to vector<1x32xf32>
    %63 = vector.broadcast %62 : vector<1x32xf32> to vector<8x32xf32>
    %64 = arith.addf %60, %63 : vector<8x32xf32>
    %c0_36 = arith.constant 0 : index
    %c0_37 = arith.constant 0 : index
    %c0_38 = arith.constant 0 : index
    %65 = vector.load %arg11[%c0_36, %c0_37, %c0_38] : memref<2x32x32xf32, #tpu.memory_space<vmem>>, vector<1x32x32xf32>
    %66 = vector.shape_cast %65 : vector<1x32x32xf32> to vector<32x32xf32>
    %cst_39 = arith.constant dense<0.000000e+00> : vector<8x32xf32>
    %67 = tpu.matmul %50, %66, %cst_39 {dimension_numbers = #tpu.dot_dimension_numbers<[1], [0], [0], [1], [0, 0, 1, 1], [], []>} : vector<8x32xf32>, vector<32x32xf32>, vector<8x32xf32> -> vector<8x32xf32>
    %c0_40 = arith.constant 0 : index
    %c0_41 = arith.constant 0 : index
    %c0_42 = arith.constant 0 : index
    %68 = vector.load %arg12[%c0_40, %c0_41, %c0_42] : memref<2x1x32xf32, #tpu.memory_space<vmem>>, vector<1x1x32xf32>
    %69 = vector.shape_cast %68 : vector<1x1x32xf32> to vector<1x32xf32>
    %70 = vector.broadcast %69 : vector<1x32xf32> to vector<8x32xf32>
    %71 = arith.addf %67, %70 : vector<8x32xf32>
    %72 = vector.extract_strided_slice %57 {offsets = [0, 0], sizes = [8, 8], strides = [1, 1]} : vector<8x32xf32> to vector<8x8xf32>
    %73 = vector.extract_strided_slice %57 {offsets = [0, 8], sizes = [8, 8], strides = [1, 1]} : vector<8x32xf32> to vector<8x8xf32>
    %74 = vector.extract_strided_slice %57 {offsets = [0, 16], sizes = [8, 8], strides = [1, 1]} : vector<8x32xf32> to vector<8x8xf32>
    %75 = vector.extract_strided_slice %57 {offsets = [0, 24], sizes = [8, 8], strides = [1, 1]} : vector<8x32xf32> to vector<8x8xf32>
    %76 = vector.shape_cast %72 : vector<8x8xf32> to vector<1x8x8xf32>
    %77 = vector.shape_cast %73 : vector<8x8xf32> to vector<1x8x8xf32>
    %78 = vector.shape_cast %74 : vector<8x8xf32> to vector<1x8x8xf32>
    %79 = vector.shape_cast %75 : vector<8x8xf32> to vector<1x8x8xf32>
    %80 = tpu.concatenate %76, %77, %78, %79 in 0 : vector<1x8x8xf32>, vector<1x8x8xf32>, vector<1x8x8xf32>, vector<1x8x8xf32> -> vector<4x8x8xf32>
    %81 = vector.extract_strided_slice %64 {offsets = [0, 0], sizes = [8, 8], strides = [1, 1]} : vector<8x32xf32> to vector<8x8xf32>
    %82 = vector.extract_strided_slice %64 {offsets = [0, 8], sizes = [8, 8], strides = [1, 1]} : vector<8x32xf32> to vector<8x8xf32>
    %83 = vector.extract_strided_slice %64 {offsets = [0, 16], sizes = [8, 8], strides = [1, 1]} : vector<8x32xf32> to vector<8x8xf32>
    %84 = vector.extract_strided_slice %64 {offsets = [0, 24], sizes = [8, 8], strides = [1, 1]} : vector<8x32xf32> to vector<8x8xf32>
    %85 = vector.shape_cast %81 : vector<8x8xf32> to vector<1x8x8xf32>
    %86 = vector.shape_cast %82 : vector<8x8xf32> to vector<1x8x8xf32>
    %87 = vector.shape_cast %83 : vector<8x8xf32> to vector<1x8x8xf32>
    %88 = vector.shape_cast %84 : vector<8x8xf32> to vector<1x8x8xf32>
    %89 = tpu.concatenate %85, %86, %87, %88 in 0 : vector<1x8x8xf32>, vector<1x8x8xf32>, vector<1x8x8xf32>, vector<1x8x8xf32> -> vector<4x8x8xf32>
    %90 = vector.extract_strided_slice %71 {offsets = [0, 0], sizes = [8, 8], strides = [1, 1]} : vector<8x32xf32> to vector<8x8xf32>
    %91 = vector.extract_strided_slice %71 {offsets = [0, 8], sizes = [8, 8], strides = [1, 1]} : vector<8x32xf32> to vector<8x8xf32>
    %92 = vector.extract_strided_slice %71 {offsets = [0, 16], sizes = [8, 8], strides = [1, 1]} : vector<8x32xf32> to vector<8x8xf32>
    %93 = vector.extract_strided_slice %71 {offsets = [0, 24], sizes = [8, 8], strides = [1, 1]} : vector<8x32xf32> to vector<8x8xf32>
    %94 = vector.shape_cast %90 : vector<8x8xf32> to vector<1x8x8xf32>
    %95 = vector.shape_cast %91 : vector<8x8xf32> to vector<1x8x8xf32>
    %96 = vector.shape_cast %92 : vector<8x8xf32> to vector<1x8x8xf32>
    %97 = vector.shape_cast %93 : vector<8x8xf32> to vector<1x8x8xf32>
    %98 = tpu.concatenate %94, %95, %96, %97 in 0 : vector<1x8x8xf32>, vector<1x8x8xf32>, vector<1x8x8xf32>, vector<1x8x8xf32> -> vector<4x8x8xf32>
    "tpu.trace_start"() <{level = 10 : i32, message = "hsw,htw->hst"}> : () -> ()
    %cst_43 = arith.constant dense<0.000000e+00> : vector<4x8x8xf32>
    %99 = tpu.matmul %80, %89, %cst_43 {dimension_numbers = #tpu.dot_dimension_numbers<[2], [2], [1], [1], [0, 0, 0, 1, 1, 1], [0], [0]>} : vector<4x8x8xf32>, vector<4x8x8xf32>, vector<4x8x8xf32> -> vector<4x8x8xf32>
    "tpu.trace_stop"() : () -> ()
    %cst_44 = arith.constant 0.353553385 : f32
    %100 = vector.broadcast %cst_44 : f32 to vector<4x8x8xf32>
    %101 = arith.mulf %99, %100 : vector<4x8x8xf32>
    %cst_45 = arith.constant dense<0xFF800000> : vector<4x8xf32>
    %102 = vector.multi_reduction <maximumf>, %101, %cst_45 [2] : vector<4x8x8xf32> to vector<4x8xf32>
    %103 = vector.shape_cast %102 : vector<4x8xf32> to vector<4x8x1xf32>
    %104 = vector.broadcast %103 : vector<4x8x1xf32> to vector<4x8x8xf32>
    %105 = arith.subf %101, %104 : vector<4x8x8xf32>
    %106 = math.exp %105 : vector<4x8x8xf32>
    %cst_46 = arith.constant dense<0.000000e+00> : vector<4x8xf32>
    %107 = vector.multi_reduction <add>, %106, %cst_46 [2] : vector<4x8x8xf32> to vector<4x8xf32>
    %108 = vector.shape_cast %107 : vector<4x8xf32> to vector<4x8x1xf32>
    %109 = vector.broadcast %108 : vector<4x8x1xf32> to vector<4x8x8xf32>
    %110 = arith.divf %106, %109 : vector<4x8x8xf32>
    "tpu.trace_start"() <{level = 10 : i32, message = "hst,htw->hsw"}> : () -> ()
    %cst_47 = arith.constant dense<0.000000e+00> : vector<4x8x8xf32>
    %111 = tpu.matmul %110, %98, %cst_47 {dimension_numbers = #tpu.dot_dimension_numbers<[2], [1], [1], [2], [0, 0, 0, 1, 1, 2], [0], [0]>} : vector<4x8x8xf32>, vector<4x8x8xf32>, vector<4x8x8xf32> -> vector<4x8x8xf32>
    "tpu.trace_stop"() : () -> ()
    %112 = vector.extract_strided_slice %111 {offsets = [0, 0, 0], sizes = [1, 8, 8], strides = [1, 1, 1]} : vector<4x8x8xf32> to vector<1x8x8xf32>
    %113 = vector.shape_cast %112 : vector<1x8x8xf32> to vector<8x8xf32>
    %114 = vector.extract_strided_slice %111 {offsets = [1, 0, 0], sizes = [1, 8, 8], strides = [1, 1, 1]} : vector<4x8x8xf32> to vector<1x8x8xf32>
    %115 = vector.shape_cast %114 : vector<1x8x8xf32> to vector<8x8xf32>
    %116 = vector.extract_strided_slice %111 {offsets = [2, 0, 0], sizes = [1, 8, 8], strides = [1, 1, 1]} : vector<4x8x8xf32> to vector<1x8x8xf32>
    %117 = vector.shape_cast %116 : vector<1x8x8xf32> to vector<8x8xf32>
    %118 = vector.extract_strided_slice %111 {offsets = [3, 0, 0], sizes = [1, 8, 8], strides = [1, 1, 1]} : vector<4x8x8xf32> to vector<1x8x8xf32>
    %119 = vector.shape_cast %118 : vector<1x8x8xf32> to vector<8x8xf32>
    %120 = tpu.concatenate %113, %115, %117, %119 in 1 : vector<8x8xf32>, vector<8x8xf32>, vector<8x8xf32>, vector<8x8xf32> -> vector<8x32xf32>
    %c0_48 = arith.constant 0 : index
    %c0_49 = arith.constant 0 : index
    %c0_50 = arith.constant 0 : index
    %121 = vector.load %arg13[%c0_48, %c0_49, %c0_50] : memref<2x32x32xf32, #tpu.memory_space<vmem>>, vector<1x32x32xf32>
    %122 = vector.shape_cast %121 : vector<1x32x32xf32> to vector<32x32xf32>
    %cst_51 = arith.constant dense<0.000000e+00> : vector<8x32xf32>
    %123 = tpu.matmul %120, %122, %cst_51 {dimension_numbers = #tpu.dot_dimension_numbers<[1], [0], [0], [1], [0, 0, 1, 1], [], []>} : vector<8x32xf32>, vector<32x32xf32>, vector<8x32xf32> -> vector<8x32xf32>
    %c0_52 = arith.constant 0 : index
    %c0_53 = arith.constant 0 : index
    %c0_54 = arith.constant 0 : index
    %124 = vector.load %arg14[%c0_52, %c0_53, %c0_54] : memref<2x1x32xf32, #tpu.memory_space<vmem>>, vector<1x1x32xf32>
    %125 = vector.shape_cast %124 : vector<1x1x32xf32> to vector<1x32xf32>
    %126 = vector.broadcast %125 : vector<1x32xf32> to vector<8x32xf32>
    %127 = arith.addf %123, %126 : vector<8x32xf32>
    %128 = arith.addf %120, %127 : vector<8x32xf32>
    %c0_55 = arith.constant 0 : index
    %c0_56 = arith.constant 0 : index
    %c0_57 = arith.constant 0 : index
    %129 = vector.load %arg15[%c0_55, %c0_56, %c0_57] : memref<2x1x32xf32, #tpu.memory_space<vmem>>, vector<1x1x32xf32>
    %130 = vector.shape_cast %129 : vector<1x1x32xf32> to vector<1x32xf32>
    %c0_58 = arith.constant 0 : index
    %c0_59 = arith.constant 0 : index
    %c0_60 = arith.constant 0 : index
    %131 = vector.load %arg16[%c0_58, %c0_59, %c0_60] : memref<2x1x32xf32, #tpu.memory_space<vmem>>, vector<1x1x32xf32>
    %132 = vector.shape_cast %131 : vector<1x1x32xf32> to vector<1x32xf32>
    %cst_61 = arith.constant dense<0.000000e+00> : vector<8xf32>
    %133 = vector.multi_reduction <add>, %128, %cst_61 [1] : vector<8x32xf32> to vector<8xf32>
    %134 = vector.shape_cast %133 : vector<8xf32> to vector<8x1xf32>
    %cst_62 = arith.constant 3.200000e+01 : f32
    %135 = vector.broadcast %cst_62 : f32 to vector<8x1xf32>
    %136 = arith.divf %134, %135 : vector<8x1xf32>
    %137 = vector.broadcast %136 : vector<8x1xf32> to vector<8x32xf32>
    %138 = arith.subf %128, %137 : vector<8x32xf32>
    %139 = arith.mulf %138, %138 : vector<8x32xf32>
    %cst_63 = arith.constant dense<0.000000e+00> : vector<8xf32>
    %140 = vector.multi_reduction <add>, %139, %cst_63 [1] : vector<8x32xf32> to vector<8xf32>
    %141 = vector.shape_cast %140 : vector<8xf32> to vector<8x1xf32>
    %cst_64 = arith.constant 3.200000e+01 : f32
    %142 = vector.broadcast %cst_64 : f32 to vector<8x1xf32>
    %143 = arith.divf %141, %142 : vector<8x1xf32>
    %cst_65 = arith.constant 9.99999996E-13 : f32
    %144 = vector.broadcast %cst_65 : f32 to vector<8x1xf32>
    %145 = arith.addf %143, %144 : vector<8x1xf32>
    %146 = math.sqrt %145 : vector<8x1xf32>
    %147 = vector.broadcast %146 : vector<8x1xf32> to vector<8x32xf32>
    %148 = arith.divf %138, %147 : vector<8x32xf32>
    %149 = vector.broadcast %130 : vector<1x32xf32> to vector<8x32xf32>
    %150 = arith.mulf %149, %148 : vector<8x32xf32>
    %151 = vector.broadcast %132 : vector<1x32xf32> to vector<8x32xf32>
    %152 = arith.addf %150, %151 : vector<8x32xf32>
    %c0_66 = arith.constant 0 : index
    %c0_67 = arith.constant 0 : index
    %c0_68 = arith.constant 0 : index
    %153 = vector.load %arg17[%c0_66, %c0_67, %c0_68] : memref<2x32x64xf32, #tpu.memory_space<vmem>>, vector<1x32x64xf32>
    %154 = vector.shape_cast %153 : vector<1x32x64xf32> to vector<32x64xf32>
    %cst_69 = arith.constant dense<0.000000e+00> : vector<8x64xf32>
    %155 = tpu.matmul %152, %154, %cst_69 {dimension_numbers = #tpu.dot_dimension_numbers<[1], [0], [0], [1], [0, 0, 1, 1], [], []>} : vector<8x32xf32>, vector<32x64xf32>, vector<8x64xf32> -> vector<8x64xf32>
    %c0_70 = arith.constant 0 : index
    %c0_71 = arith.constant 0 : index
    %c0_72 = arith.constant 0 : index
    %156 = vector.load %arg18[%c0_70, %c0_71, %c0_72] : memref<2x1x64xf32, #tpu.memory_space<vmem>>, vector<1x1x64xf32>
    %157 = vector.shape_cast %156 : vector<1x1x64xf32> to vector<1x64xf32>
    %158 = vector.broadcast %157 : vector<1x64xf32> to vector<8x64xf32>
    %159 = arith.addf %155, %158 : vector<8x64xf32>
    %cst_73 = arith.constant 5.000000e-01 : f32
    %160 = vector.broadcast %cst_73 : f32 to vector<8x64xf32>
    %161 = arith.mulf %159, %160 : vector<8x64xf32>
    %cst_74 = arith.constant 1.41421354 : f32
    %162 = vector.broadcast %cst_74 : f32 to vector<8x64xf32>
    %163 = arith.divf %159, %162 : vector<8x64xf32>
    %164 = math.erf %163 : vector<8x64xf32>
    %cst_75 = arith.constant 1.000000e+00 : f32
    %165 = vector.broadcast %cst_75 : f32 to vector<8x64xf32>
    %166 = arith.addf %165, %164 : vector<8x64xf32>
    %167 = arith.mulf %161, %166 : vector<8x64xf32>
    %c0_76 = arith.constant 0 : index
    %c0_77 = arith.constant 0 : index
    %c0_78 = arith.constant 0 : index
    %168 = vector.load %arg19[%c0_76, %c0_77, %c0_78] : memref<2x64x32xf32, #tpu.memory_space<vmem>>, vector<1x64x32xf32>
    %169 = vector.shape_cast %168 : vector<1x64x32xf32> to vector<64x32xf32>
    %cst_79 = arith.constant dense<0.000000e+00> : vector<8x32xf32>
    %170 = tpu.matmul %167, %169, %cst_79 {dimension_numbers = #tpu.dot_dimension_numbers<[1], [0], [0], [1], [0, 0, 1, 1], [], []>} : vector<8x64xf32>, vector<64x32xf32>, vector<8x32xf32> -> vector<8x32xf32>
    %c0_80 = arith.constant 0 : index
    %c0_81 = arith.constant 0 : index
    %c0_82 = arith.constant 0 : index
    %171 = vector.load %arg20[%c0_80, %c0_81, %c0_82] : memref<2x1x32xf32, #tpu.memory_space<vmem>>, vector<1x1x32xf32>
    %172 = vector.shape_cast %171 : vector<1x1x32xf32> to vector<1x32xf32>
    %173 = vector.broadcast %172 : vector<1x32xf32> to vector<8x32xf32>
    %174 = arith.addf %170, %173 : vector<8x32xf32>
    %175 = arith.addf %152, %174 : vector<8x32xf32>
    %c0_83 = arith.constant 0 : index
    %c0_84 = arith.constant 0 : index
    %c0_85 = arith.constant 0 : index
    %176 = vector.load %arg21[%c0_83, %c0_84, %c0_85] : memref<2x1x32xf32, #tpu.memory_space<vmem>>, vector<1x1x32xf32>
    %177 = vector.shape_cast %176 : vector<1x1x32xf32> to vector<1x32xf32>
    %c0_86 = arith.constant 0 : index
    %c0_87 = arith.constant 0 : index
    %c0_88 = arith.constant 0 : index
    %178 = vector.load %arg22[%c0_86, %c0_87, %c0_88] : memref<2x1x32xf32, #tpu.memory_space<vmem>>, vector<1x1x32xf32>
    %179 = vector.shape_cast %178 : vector<1x1x32xf32> to vector<1x32xf32>
    %cst_89 = arith.constant dense<0.000000e+00> : vector<8xf32>
    %180 = vector.multi_reduction <add>, %175, %cst_89 [1] : vector<8x32xf32> to vector<8xf32>
    %181 = vector.shape_cast %180 : vector<8xf32> to vector<8x1xf32>
    %cst_90 = arith.constant 3.200000e+01 : f32
    %182 = vector.broadcast %cst_90 : f32 to vector<8x1xf32>
    %183 = arith.divf %181, %182 : vector<8x1xf32>
    %184 = vector.broadcast %183 : vector<8x1xf32> to vector<8x32xf32>
    %185 = arith.subf %175, %184 : vector<8x32xf32>
    %186 = arith.mulf %185, %185 : vector<8x32xf32>
    %cst_91 = arith.constant dense<0.000000e+00> : vector<8xf32>
    %187 = vector.multi_reduction <add>, %186, %cst_91 [1] : vector<8x32xf32> to vector<8xf32>
    %188 = vector.shape_cast %187 : vector<8xf32> to vector<8x1xf32>
    %cst_92 = arith.constant 3.200000e+01 : f32
    %189 = vector.broadcast %cst_92 : f32 to vector<8x1xf32>
    %190 = arith.divf %188, %189 : vector<8x1xf32>
    %cst_93 = arith.constant 9.99999996E-13 : f32
    %191 = vector.broadcast %cst_93 : f32 to vector<8x1xf32>
    %192 = arith.addf %190, %191 : vector<8x1xf32>
    %193 = math.sqrt %192 : vector<8x1xf32>
    %194 = vector.broadcast %193 : vector<8x1xf32> to vector<8x32xf32>
    %195 = arith.divf %185, %194 : vector<8x32xf32>
    %196 = vector.broadcast %177 : vector<1x32xf32> to vector<8x32xf32>
    %197 = arith.mulf %196, %195 : vector<8x32xf32>
    %198 = vector.broadcast %179 : vector<1x32xf32> to vector<8x32xf32>
    %199 = arith.addf %197, %198 : vector<8x32xf32>
    %200 = arith.addf %199, %50 : vector<8x32xf32>
    %c1 = arith.constant 1 : index
    %c0_94 = arith.constant 0 : index
    %c0_95 = arith.constant 0 : index
    %201 = vector.load %arg7[%c1, %c0_94, %c0_95] : memref<2x32x32xf32, #tpu.memory_space<vmem>>, vector<1x32x32xf32>
    %202 = vector.shape_cast %201 : vector<1x32x32xf32> to vector<32x32xf32>
    %cst_96 = arith.constant dense<0.000000e+00> : vector<8x32xf32>
    %203 = tpu.matmul %200, %202, %cst_96 {dimension_numbers = #tpu.dot_dimension_numbers<[1], [0], [0], [1], [0, 0, 1, 1], [], []>} : vector<8x32xf32>, vector<32x32xf32>, vector<8x32xf32> -> vector<8x32xf32>
    %c1_97 = arith.constant 1 : index
    %c0_98 = arith.constant 0 : index
    %c0_99 = arith.constant 0 : index
    %204 = vector.load %arg8[%c1_97, %c0_98, %c0_99] : memref<2x1x32xf32, #tpu.memory_space<vmem>>, vector<1x1x32xf32>
    %205 = vector.shape_cast %204 : vector<1x1x32xf32> to vector<1x32xf32>
    %206 = vector.broadcast %205 : vector<1x32xf32> to vector<8x32xf32>
    %207 = arith.addf %203, %206 : vector<8x32xf32>
    %c1_100 = arith.constant 1 : index
    %c0_101 = arith.constant 0 : index
    %c0_102 = arith.constant 0 : index
    %208 = vector.load %arg9[%c1_100, %c0_101, %c0_102] : memref<2x32x32xf32, #tpu.memory_space<vmem>>, vector<1x32x32xf32>
    %209 = vector.shape_cast %208 : vector<1x32x32xf32> to vector<32x32xf32>
    %cst_103 = arith.constant dense<0.000000e+00> : vector<8x32xf32>
    %210 = tpu.matmul %200, %209, %cst_103 {dimension_numbers = #tpu.dot_dimension_numbers<[1], [0], [0], [1], [0, 0, 1, 1], [], []>} : vector<8x32xf32>, vector<32x32xf32>, vector<8x32xf32> -> vector<8x32xf32>
    %c1_104 = arith.constant 1 : index
    %c0_105 = arith.constant 0 : index
    %c0_106 = arith.constant 0 : index
    %211 = vector.load %arg10[%c1_104, %c0_105, %c0_106] : memref<2x1x32xf32, #tpu.memory_space<vmem>>, vector<1x1x32xf32>
    %212 = vector.shape_cast %211 : vector<1x1x32xf32> to vector<1x32xf32>
    %213 = vector.broadcast %212 : vector<1x32xf32> to vector<8x32xf32>
    %214 = arith.addf %210, %213 : vector<8x32xf32>
    %c1_107 = arith.constant 1 : index
    %c0_108 = arith.constant 0 : index
    %c0_109 = arith.constant 0 : index
    %215 = vector.load %arg11[%c1_107, %c0_108, %c0_109] : memref<2x32x32xf32, #tpu.memory_space<vmem>>, vector<1x32x32xf32>
    %216 = vector.shape_cast %215 : vector<1x32x32xf32> to vector<32x32xf32>
    %cst_110 = arith.constant dense<0.000000e+00> : vector<8x32xf32>
    %217 = tpu.matmul %200, %216, %cst_110 {dimension_numbers = #tpu.dot_dimension_numbers<[1], [0], [0], [1], [0, 0, 1, 1], [], []>} : vector<8x32xf32>, vector<32x32xf32>, vector<8x32xf32> -> vector<8x32xf32>
    %c1_111 = arith.constant 1 : index
    %c0_112 = arith.constant 0 : index
    %c0_113 = arith.constant 0 : index
    %218 = vector.load %arg12[%c1_111, %c0_112, %c0_113] : memref<2x1x32xf32, #tpu.memory_space<vmem>>, vector<1x1x32xf32>
    %219 = vector.shape_cast %218 : vector<1x1x32xf32> to vector<1x32xf32>
    %220 = vector.broadcast %219 : vector<1x32xf32> to vector<8x32xf32>
    %221 = arith.addf %217, %220 : vector<8x32xf32>
    %222 = vector.extract_strided_slice %207 {offsets = [0, 0], sizes = [8, 8], strides = [1, 1]} : vector<8x32xf32> to vector<8x8xf32>
    %223 = vector.extract_strided_slice %207 {offsets = [0, 8], sizes = [8, 8], strides = [1, 1]} : vector<8x32xf32> to vector<8x8xf32>
    %224 = vector.extract_strided_slice %207 {offsets = [0, 16], sizes = [8, 8], strides = [1, 1]} : vector<8x32xf32> to vector<8x8xf32>
    %225 = vector.extract_strided_slice %207 {offsets = [0, 24], sizes = [8, 8], strides = [1, 1]} : vector<8x32xf32> to vector<8x8xf32>
    %226 = vector.shape_cast %222 : vector<8x8xf32> to vector<1x8x8xf32>
    %227 = vector.shape_cast %223 : vector<8x8xf32> to vector<1x8x8xf32>
    %228 = vector.shape_cast %224 : vector<8x8xf32> to vector<1x8x8xf32>
    %229 = vector.shape_cast %225 : vector<8x8xf32> to vector<1x8x8xf32>
    %230 = tpu.concatenate %226, %227, %228, %229 in 0 : vector<1x8x8xf32>, vector<1x8x8xf32>, vector<1x8x8xf32>, vector<1x8x8xf32> -> vector<4x8x8xf32>
    %231 = vector.extract_strided_slice %214 {offsets = [0, 0], sizes = [8, 8], strides = [1, 1]} : vector<8x32xf32> to vector<8x8xf32>
    %232 = vector.extract_strided_slice %214 {offsets = [0, 8], sizes = [8, 8], strides = [1, 1]} : vector<8x32xf32> to vector<8x8xf32>
    %233 = vector.extract_strided_slice %214 {offsets = [0, 16], sizes = [8, 8], strides = [1, 1]} : vector<8x32xf32> to vector<8x8xf32>
    %234 = vector.extract_strided_slice %214 {offsets = [0, 24], sizes = [8, 8], strides = [1, 1]} : vector<8x32xf32> to vector<8x8xf32>
    %235 = vector.shape_cast %231 : vector<8x8xf32> to vector<1x8x8xf32>
    %236 = vector.shape_cast %232 : vector<8x8xf32> to vector<1x8x8xf32>
    %237 = vector.shape_cast %233 : vector<8x8xf32> to vector<1x8x8xf32>
    %238 = vector.shape_cast %234 : vector<8x8xf32> to vector<1x8x8xf32>
    %239 = tpu.concatenate %235, %236, %237, %238 in 0 : vector<1x8x8xf32>, vector<1x8x8xf32>, vector<1x8x8xf32>, vector<1x8x8xf32> -> vector<4x8x8xf32>
    %240 = vector.extract_strided_slice %221 {offsets = [0, 0], sizes = [8, 8], strides = [1, 1]} : vector<8x32xf32> to vector<8x8xf32>
    %241 = vector.extract_strided_slice %221 {offsets = [0, 8], sizes = [8, 8], strides = [1, 1]} : vector<8x32xf32> to vector<8x8xf32>
    %242 = vector.extract_strided_slice %221 {offsets = [0, 16], sizes = [8, 8], strides = [1, 1]} : vector<8x32xf32> to vector<8x8xf32>
    %243 = vector.extract_strided_slice %221 {offsets = [0, 24], sizes = [8, 8], strides = [1, 1]} : vector<8x32xf32> to vector<8x8xf32>
    %244 = vector.shape_cast %240 : vector<8x8xf32> to vector<1x8x8xf32>
    %245 = vector.shape_cast %241 : vector<8x8xf32> to vector<1x8x8xf32>
    %246 = vector.shape_cast %242 : vector<8x8xf32> to vector<1x8x8xf32>
    %247 = vector.shape_cast %243 : vector<8x8xf32> to vector<1x8x8xf32>
    %248 = tpu.concatenate %244, %245, %246, %247 in 0 : vector<1x8x8xf32>, vector<1x8x8xf32>, vector<1x8x8xf32>, vector<1x8x8xf32> -> vector<4x8x8xf32>
    "tpu.trace_start"() <{level = 10 : i32, message = "hsw,htw->hst"}> : () -> ()
    %cst_114 = arith.constant dense<0.000000e+00> : vector<4x8x8xf32>
    %249 = tpu.matmul %230, %239, %cst_114 {dimension_numbers = #tpu.dot_dimension_numbers<[2], [2], [1], [1], [0, 0, 0, 1, 1, 1], [0], [0]>} : vector<4x8x8xf32>, vector<4x8x8xf32>, vector<4x8x8xf32> -> vector<4x8x8xf32>
    "tpu.trace_stop"() : () -> ()
    %cst_115 = arith.constant 0.353553385 : f32
    %250 = vector.broadcast %cst_115 : f32 to vector<4x8x8xf32>
    %251 = arith.mulf %249, %250 : vector<4x8x8xf32>
    %cst_116 = arith.constant dense<0xFF800000> : vector<4x8xf32>
    %252 = vector.multi_reduction <maximumf>, %251, %cst_116 [2] : vector<4x8x8xf32> to vector<4x8xf32>
    %253 = vector.shape_cast %252 : vector<4x8xf32> to vector<4x8x1xf32>
    %254 = vector.broadcast %253 : vector<4x8x1xf32> to vector<4x8x8xf32>
    %255 = arith.subf %251, %254 : vector<4x8x8xf32>
    %256 = math.exp %255 : vector<4x8x8xf32>
    %cst_117 = arith.constant dense<0.000000e+00> : vector<4x8xf32>
    %257 = vector.multi_reduction <add>, %256, %cst_117 [2] : vector<4x8x8xf32> to vector<4x8xf32>
    %258 = vector.shape_cast %257 : vector<4x8xf32> to vector<4x8x1xf32>
    %259 = vector.broadcast %258 : vector<4x8x1xf32> to vector<4x8x8xf32>
    %260 = arith.divf %256, %259 : vector<4x8x8xf32>
    "tpu.trace_start"() <{level = 10 : i32, message = "hst,htw->hsw"}> : () -> ()
    %cst_118 = arith.constant dense<0.000000e+00> : vector<4x8x8xf32>
    %261 = tpu.matmul %260, %248, %cst_118 {dimension_numbers = #tpu.dot_dimension_numbers<[2], [1], [1], [2], [0, 0, 0, 1, 1, 2], [0], [0]>} : vector<4x8x8xf32>, vector<4x8x8xf32>, vector<4x8x8xf32> -> vector<4x8x8xf32>
    "tpu.trace_stop"() : () -> ()
    %262 = vector.extract_strided_slice %261 {offsets = [0, 0, 0], sizes = [1, 8, 8], strides = [1, 1, 1]} : vector<4x8x8xf32> to vector<1x8x8xf32>
    %263 = vector.shape_cast %262 : vector<1x8x8xf32> to vector<8x8xf32>
    %264 = vector.extract_strided_slice %261 {offsets = [1, 0, 0], sizes = [1, 8, 8], strides = [1, 1, 1]} : vector<4x8x8xf32> to vector<1x8x8xf32>
    %265 = vector.shape_cast %264 : vector<1x8x8xf32> to vector<8x8xf32>
    %266 = vector.extract_strided_slice %261 {offsets = [2, 0, 0], sizes = [1, 8, 8], strides = [1, 1, 1]} : vector<4x8x8xf32> to vector<1x8x8xf32>
    %267 = vector.shape_cast %266 : vector<1x8x8xf32> to vector<8x8xf32>
    %268 = vector.extract_strided_slice %261 {offsets = [3, 0, 0], sizes = [1, 8, 8], strides = [1, 1, 1]} : vector<4x8x8xf32> to vector<1x8x8xf32>
    %269 = vector.shape_cast %268 : vector<1x8x8xf32> to vector<8x8xf32>
    %270 = tpu.concatenate %263, %265, %267, %269 in 1 : vector<8x8xf32>, vector<8x8xf32>, vector<8x8xf32>, vector<8x8xf32> -> vector<8x32xf32>
    %c1_119 = arith.constant 1 : index
    %c0_120 = arith.constant 0 : index
    %c0_121 = arith.constant 0 : index
    %271 = vector.load %arg13[%c1_119, %c0_120, %c0_121] : memref<2x32x32xf32, #tpu.memory_space<vmem>>, vector<1x32x32xf32>
    %272 = vector.shape_cast %271 : vector<1x32x32xf32> to vector<32x32xf32>
    %cst_122 = arith.constant dense<0.000000e+00> : vector<8x32xf32>
    %273 = tpu.matmul %270, %272, %cst_122 {dimension_numbers = #tpu.dot_dimension_numbers<[1], [0], [0], [1], [0, 0, 1, 1], [], []>} : vector<8x32xf32>, vector<32x32xf32>, vector<8x32xf32> -> vector<8x32xf32>
    %c1_123 = arith.constant 1 : index
    %c0_124 = arith.constant 0 : index
    %c0_125 = arith.constant 0 : index
    %274 = vector.load %arg14[%c1_123, %c0_124, %c0_125] : memref<2x1x32xf32, #tpu.memory_space<vmem>>, vector<1x1x32xf32>
    %275 = vector.shape_cast %274 : vector<1x1x32xf32> to vector<1x32xf32>
    %276 = vector.broadcast %275 : vector<1x32xf32> to vector<8x32xf32>
    %277 = arith.addf %273, %276 : vector<8x32xf32>
    %278 = arith.addf %270, %277 : vector<8x32xf32>
    %c1_126 = arith.constant 1 : index
    %c0_127 = arith.constant 0 : index
    %c0_128 = arith.constant 0 : index
    %279 = vector.load %arg15[%c1_126, %c0_127, %c0_128] : memref<2x1x32xf32, #tpu.memory_space<vmem>>, vector<1x1x32xf32>
    %280 = vector.shape_cast %279 : vector<1x1x32xf32> to vector<1x32xf32>
    %c1_129 = arith.constant 1 : index
    %c0_130 = arith.constant 0 : index
    %c0_131 = arith.constant 0 : index
    %281 = vector.load %arg16[%c1_129, %c0_130, %c0_131] : memref<2x1x32xf32, #tpu.memory_space<vmem>>, vector<1x1x32xf32>
    %282 = vector.shape_cast %281 : vector<1x1x32xf32> to vector<1x32xf32>
    %cst_132 = arith.constant dense<0.000000e+00> : vector<8xf32>
    %283 = vector.multi_reduction <add>, %278, %cst_132 [1] : vector<8x32xf32> to vector<8xf32>
    %284 = vector.shape_cast %283 : vector<8xf32> to vector<8x1xf32>
    %cst_133 = arith.constant 3.200000e+01 : f32
    %285 = vector.broadcast %cst_133 : f32 to vector<8x1xf32>
    %286 = arith.divf %284, %285 : vector<8x1xf32>
    %287 = vector.broadcast %286 : vector<8x1xf32> to vector<8x32xf32>
    %288 = arith.subf %278, %287 : vector<8x32xf32>
    %289 = arith.mulf %288, %288 : vector<8x32xf32>
    %cst_134 = arith.constant dense<0.000000e+00> : vector<8xf32>
    %290 = vector.multi_reduction <add>, %289, %cst_134 [1] : vector<8x32xf32> to vector<8xf32>
    %291 = vector.shape_cast %290 : vector<8xf32> to vector<8x1xf32>
    %cst_135 = arith.constant 3.200000e+01 : f32
    %292 = vector.broadcast %cst_135 : f32 to vector<8x1xf32>
    %293 = arith.divf %291, %292 : vector<8x1xf32>
    %cst_136 = arith.constant 9.99999996E-13 : f32
    %294 = vector.broadcast %cst_136 : f32 to vector<8x1xf32>
    %295 = arith.addf %293, %294 : vector<8x1xf32>
    %296 = math.sqrt %295 : vector<8x1xf32>
    %297 = vector.broadcast %296 : vector<8x1xf32> to vector<8x32xf32>
    %298 = arith.divf %288, %297 : vector<8x32xf32>
    %299 = vector.broadcast %280 : vector<1x32xf32> to vector<8x32xf32>
    %300 = arith.mulf %299, %298 : vector<8x32xf32>
    %301 = vector.broadcast %282 : vector<1x32xf32> to vector<8x32xf32>
    %302 = arith.addf %300, %301 : vector<8x32xf32>
    %c1_137 = arith.constant 1 : index
    %c0_138 = arith.constant 0 : index
    %c0_139 = arith.constant 0 : index
    %303 = vector.load %arg17[%c1_137, %c0_138, %c0_139] : memref<2x32x64xf32, #tpu.memory_space<vmem>>, vector<1x32x64xf32>
    %304 = vector.shape_cast %303 : vector<1x32x64xf32> to vector<32x64xf32>
    %cst_140 = arith.constant dense<0.000000e+00> : vector<8x64xf32>
    %305 = tpu.matmul %302, %304, %cst_140 {dimension_numbers = #tpu.dot_dimension_numbers<[1], [0], [0], [1], [0, 0, 1, 1], [], []>} : vector<8x32xf32>, vector<32x64xf32>, vector<8x64xf32> -> vector<8x64xf32>
    %c1_141 = arith.constant 1 : index
    %c0_142 = arith.constant 0 : index
    %c0_143 = arith.constant 0 : index
    %306 = vector.load %arg18[%c1_141, %c0_142, %c0_143] : memref<2x1x64xf32, #tpu.memory_space<vmem>>, vector<1x1x64xf32>
    %307 = vector.shape_cast %306 : vector<1x1x64xf32> to vector<1x64xf32>
    %308 = vector.broadcast %307 : vector<1x64xf32> to vector<8x64xf32>
    %309 = arith.addf %305, %308 : vector<8x64xf32>
    %cst_144 = arith.constant 5.000000e-01 : f32
    %310 = vector.broadcast %cst_144 : f32 to vector<8x64xf32>
    %311 = arith.mulf %309, %310 : vector<8x64xf32>
    %cst_145 = arith.constant 1.41421354 : f32
    %312 = vector.broadcast %cst_145 : f32 to vector<8x64xf32>
    %313 = arith.divf %309, %312 : vector<8x64xf32>
    %314 = math.erf %313 : vector<8x64xf32>
    %cst_146 = arith.constant 1.000000e+00 : f32
    %315 = vector.broadcast %cst_146 : f32 to vector<8x64xf32>
    %316 = arith.addf %315, %314 : vector<8x64xf32>
    %317 = arith.mulf %311, %316 : vector<8x64xf32>
    %c1_147 = arith.constant 1 : index
    %c0_148 = arith.constant 0 : index
    %c0_149 = arith.constant 0 : index
    %318 = vector.load %arg19[%c1_147, %c0_148, %c0_149] : memref<2x64x32xf32, #tpu.memory_space<vmem>>, vector<1x64x32xf32>
    %319 = vector.shape_cast %318 : vector<1x64x32xf32> to vector<64x32xf32>
    %cst_150 = arith.constant dense<0.000000e+00> : vector<8x32xf32>
    %320 = tpu.matmul %317, %319, %cst_150 {dimension_numbers = #tpu.dot_dimension_numbers<[1], [0], [0], [1], [0, 0, 1, 1], [], []>} : vector<8x64xf32>, vector<64x32xf32>, vector<8x32xf32> -> vector<8x32xf32>
    %c1_151 = arith.constant 1 : index
    %c0_152 = arith.constant 0 : index
    %c0_153 = arith.constant 0 : index
    %321 = vector.load %arg20[%c1_151, %c0_152, %c0_153] : memref<2x1x32xf32, #tpu.memory_space<vmem>>, vector<1x1x32xf32>
    %322 = vector.shape_cast %321 : vector<1x1x32xf32> to vector<1x32xf32>
    %323 = vector.broadcast %322 : vector<1x32xf32> to vector<8x32xf32>
    %324 = arith.addf %320, %323 : vector<8x32xf32>
    %325 = arith.addf %302, %324 : vector<8x32xf32>
    %c1_154 = arith.constant 1 : index
    %c0_155 = arith.constant 0 : index
    %c0_156 = arith.constant 0 : index
    %326 = vector.load %arg21[%c1_154, %c0_155, %c0_156] : memref<2x1x32xf32, #tpu.memory_space<vmem>>, vector<1x1x32xf32>
    %327 = vector.shape_cast %326 : vector<1x1x32xf32> to vector<1x32xf32>
    %c1_157 = arith.constant 1 : index
    %c0_158 = arith.constant 0 : index
    %c0_159 = arith.constant 0 : index
    %328 = vector.load %arg22[%c1_157, %c0_158, %c0_159] : memref<2x1x32xf32, #tpu.memory_space<vmem>>, vector<1x1x32xf32>
    %329 = vector.shape_cast %328 : vector<1x1x32xf32> to vector<1x32xf32>
    %cst_160 = arith.constant dense<0.000000e+00> : vector<8xf32>
    %330 = vector.multi_reduction <add>, %325, %cst_160 [1] : vector<8x32xf32> to vector<8xf32>
    %331 = vector.shape_cast %330 : vector<8xf32> to vector<8x1xf32>
    %cst_161 = arith.constant 3.200000e+01 : f32
    %332 = vector.broadcast %cst_161 : f32 to vector<8x1xf32>
    %333 = arith.divf %331, %332 : vector<8x1xf32>
    %334 = vector.broadcast %333 : vector<8x1xf32> to vector<8x32xf32>
    %335 = arith.subf %325, %334 : vector<8x32xf32>
    %336 = arith.mulf %335, %335 : vector<8x32xf32>
    %cst_162 = arith.constant dense<0.000000e+00> : vector<8xf32>
    %337 = vector.multi_reduction <add>, %336, %cst_162 [1] : vector<8x32xf32> to vector<8xf32>
    %338 = vector.shape_cast %337 : vector<8xf32> to vector<8x1xf32>
    %cst_163 = arith.constant 3.200000e+01 : f32
    %339 = vector.broadcast %cst_163 : f32 to vector<8x1xf32>
    %340 = arith.divf %338, %339 : vector<8x1xf32>
    %cst_164 = arith.constant 9.99999996E-13 : f32
    %341 = vector.broadcast %cst_164 : f32 to vector<8x1xf32>
    %342 = arith.addf %340, %341 : vector<8x1xf32>
    %343 = math.sqrt %342 : vector<8x1xf32>
    %344 = vector.broadcast %343 : vector<8x1xf32> to vector<8x32xf32>
    %345 = arith.divf %335, %344 : vector<8x32xf32>
    %346 = vector.broadcast %327 : vector<1x32xf32> to vector<8x32xf32>
    %347 = arith.mulf %346, %345 : vector<8x32xf32>
    %348 = vector.broadcast %329 : vector<1x32xf32> to vector<8x32xf32>
    %349 = arith.addf %347, %348 : vector<8x32xf32>
    %350 = arith.addf %349, %200 : vector<8x32xf32>
    %c0_165 = arith.constant 0 : index
    %c0_166 = arith.constant 0 : index
    %c0_167 = arith.constant 0 : index
    %351 = vector.load %arg23[%c0_165, %c0_166, %c0_167] : memref<1x8x32xf32, #tpu.memory_space<vmem>>, vector<1x8x32xf32>
    %352 = vector.shape_cast %351 : vector<1x8x32xf32> to vector<8x32xf32>
    %353 = vector.shape_cast %350 : vector<8x32xf32> to vector<1x8x32xf32>
    tpu.vector_store %arg23[%c0_165, %c0_166, %c0_167], %353 {strides = array<i32>} : memref<1x8x32xf32, #tpu.memory_space<vmem>>, vector<1x8x32xf32>,
    return
  }
  func.func @transform_0(%arg0: i32) -> (i32, i32, i32) {
    %c0_i32 = arith.constant 0 : i32
    %c0_i32_0 = arith.constant 0 : i32
    %c0_i32_1 = arith.constant 0 : i32
    return %arg0, %c0_i32, %c0_i32_0 : i32, i32, i32
  }
  func.func @transform_1(%arg0: i32) -> (i32, i32) {
    %c0_i32 = arith.constant 0 : i32
    %c0_i32_0 = arith.constant 0 : i32
    %c0_i32_1 = arith.constant 0 : i32
    return %c0_i32, %c0_i32_0 : i32, i32
  }
  func.func @transform_2(%arg0: i32) -> (i32, i32) {
    %c0_i32 = arith.constant 0 : i32
    %c0_i32_0 = arith.constant 0 : i32
    %c0_i32_1 = arith.constant 0 : i32
    return %c0_i32, %c0_i32_0 : i32, i32
  }
  func.func @transform_3(%arg0: i32) -> (i32, i32) {
    %c0_i32 = arith.constant 0 : i32
    %c0_i32_0 = arith.constant 0 : i32
    %c0_i32_1 = arith.constant 0 : i32
    return %c0_i32, %c0_i32_0 : i32, i32
  }
  func.func @transform_4(%arg0: i32) -> (i32, i32) {
    %c0_i32 = arith.constant 0 : i32
    %c0_i32_0 = arith.constant 0 : i32
    %c0_i32_1 = arith.constant 0 : i32
    return %c0_i32, %c0_i32_0 : i32, i32
  }
  func.func @transform_5(%arg0: i32) -> (i32, i32) {
    %c0_i32 = arith.constant 0 : i32
    %c0_i32_0 = arith.constant 0 : i32
    %c0_i32_1 = arith.constant 0 : i32
    return %c0_i32, %c0_i32_0 : i32, i32
  }
  func.func @transform_6(%arg0: i32) -> (i32, i32, i32) {
    %c0_i32 = arith.constant 0 : i32
    %c0_i32_0 = arith.constant 0 : i32
    %c0_i32_1 = arith.constant 0 : i32
    %c0_i32_2 = arith.constant 0 : i32
    return %c0_i32, %c0_i32_0, %c0_i32_1 : i32, i32, i32
  }
  func.func @transform_7(%arg0: i32) -> (i32, i32, i32) {
    %c0_i32 = arith.constant 0 : i32
    %c0_i32_0 = arith.constant 0 : i32
    %c0_i32_1 = arith.constant 0 : i32
    %c0_i32_2 = arith.constant 0 : i32
    return %c0_i32, %c0_i32_0, %c0_i32_1 : i32, i32, i32
  }
  func.func @transform_8(%arg0: i32) -> (i32, i32, i32) {
    %c0_i32 = arith.constant 0 : i32
    %c0_i32_0 = arith.constant 0 : i32
    %c0_i32_1 = arith.constant 0 : i32
    %c0_i32_2 = arith.constant 0 : i32
    return %c0_i32, %c0_i32_0, %c0_i32_1 : i32, i32, i32
  }
  func.func @transform_9(%arg0: i32) -> (i32, i32, i32) {
    %c0_i32 = arith.constant 0 : i32
    %c0_i32_0 = arith.constant 0 : i32
    %c0_i32_1 = arith.constant 0 : i32
    %c0_i32_2 = arith.constant 0 : i32
    return %c0_i32, %c0_i32_0, %c0_i32_1 : i32, i32, i32
  }
  func.func @transform_10(%arg0: i32) -> (i32, i32, i32) {
    %c0_i32 = arith.constant 0 : i32
    %c0_i32_0 = arith.constant 0 : i32
    %c0_i32_1 = arith.constant 0 : i32
    %c0_i32_2 = arith.constant 0 : i32
    return %c0_i32, %c0_i32_0, %c0_i32_1 : i32, i32, i32
  }
  func.func @transform_11(%arg0: i32) -> (i32, i32, i32) {
    %c0_i32 = arith.constant 0 : i32
    %c0_i32_0 = arith.constant 0 : i32
    %c0_i32_1 = arith.constant 0 : i32
    %c0_i32_2 = arith.constant 0 : i32
    return %c0_i32, %c0_i32_0, %c0_i32_1 : i32, i32, i32
  }
  func.func @transform_12(%arg0: i32) -> (i32, i32, i32) {
    %c0_i32 = arith.constant 0 : i32
    %c0_i32_0 = arith.constant 0 : i32
    %c0_i32_1 = arith.constant 0 : i32
    %c0_i32_2 = arith.constant 0 : i32
    return %c0_i32, %c0_i32_0, %c0_i32_1 : i32, i32, i32
  }
  func.func @transform_13(%arg0: i32) -> (i32, i32, i32) {
    %c0_i32 = arith.constant 0 : i32
    %c0_i32_0 = arith.constant 0 : i32
    %c0_i32_1 = arith.constant 0 : i32
    %c0_i32_2 = arith.constant 0 : i32
    return %c0_i32, %c0_i32_0, %c0_i32_1 : i32, i32, i32
  }
  func.func @transform_14(%arg0: i32) -> (i32, i32, i32) {
    %c0_i32 = arith.constant 0 : i32
    %c0_i32_0 = arith.constant 0 : i32
    %c0_i32_1 = arith.constant 0 : i32
    %c0_i32_2 = arith.constant 0 : i32
    return %c0_i32, %c0_i32_0, %c0_i32_1 : i32, i32, i32
  }
  func.func @transform_15(%arg0: i32) -> (i32, i32, i32) {
    %c0_i32 = arith.constant 0 : i32
    %c0_i32_0 = arith.constant 0 : i32
    %c0_i32_1 = arith.constant 0 : i32
    %c0_i32_2 = arith.constant 0 : i32
    return %c0_i32, %c0_i32_0, %c0_i32_1 : i32, i32, i32
  }
  func.func @transform_16(%arg0: i32) -> (i32, i32, i32) {
    %c0_i32 = arith.constant 0 : i32
    %c0_i32_0 = arith.constant 0 : i32
    %c0_i32_1 = arith.constant 0 : i32
    %c0_i32_2 = arith.constant 0 : i32
    return %c0_i32, %c0_i32_0, %c0_i32_1 : i32, i32, i32
  }
  func.func @transform_17(%arg0: i32) -> (i32, i32, i32) {
    %c0_i32 = arith.constant 0 : i32
    %c0_i32_0 = arith.constant 0 : i32
    %c0_i32_1 = arith.constant 0 : i32
    %c0_i32_2 = arith.constant 0 : i32
    return %c0_i32, %c0_i32_0, %c0_i32_1 : i32, i32, i32
  }
  func.func @transform_18(%arg0: i32) -> (i32, i32, i32) {
    %c0_i32 = arith.constant 0 : i32
    %c0_i32_0 = arith.constant 0 : i32
    %c0_i32_1 = arith.constant 0 : i32
    %c0_i32_2 = arith.constant 0 : i32
    return %c0_i32, %c0_i32_0, %c0_i32_1 : i32, i32, i32
  }
  func.func @transform_19(%arg0: i32) -> (i32, i32, i32) {
    %c0_i32 = arith.constant 0 : i32
    %c0_i32_0 = arith.constant 0 : i32
    %c0_i32_1 = arith.constant 0 : i32
    %c0_i32_2 = arith.constant 0 : i32
    return %c0_i32, %c0_i32_0, %c0_i32_1 : i32, i32, i32
  }
  func.func @transform_20(%arg0: i32) -> (i32, i32, i32) {
    %c0_i32 = arith.constant 0 : i32
    %c0_i32_0 = arith.constant 0 : i32
    %c0_i32_1 = arith.constant 0 : i32
    %c0_i32_2 = arith.constant 0 : i32
    return %c0_i32, %c0_i32_0, %c0_i32_1 : i32, i32, i32
  }
  func.func @transform_21(%arg0: i32) -> (i32, i32, i32) {
    %c0_i32 = arith.constant 0 : i32
    %c0_i32_0 = arith.constant 0 : i32
    %c0_i32_1 = arith.constant 0 : i32
    %c0_i32_2 = arith.constant 0 : i32
    return %c0_i32, %c0_i32_0, %c0_i32_1 : i32, i32, i32
  }
  func.func @transform_22(%arg0: i32) -> (i32, i32, i32) {
    %c0_i32 = arith.constant 0 : i32
    %c0_i32_0 = arith.constant 0 : i32
    %c0_i32_1 = arith.constant 0 : i32
    return %arg0, %c0_i32, %c0_i32_0 : i32, i32, i32
  }
}

</mosaic_0001>

<llo_original>
// kernel: tpu_custom_call.1
$region0: #{tpu_custom_call.1}
  #allocation0 [shape = 'u32[]', space=smem, size = 0x4, offset = 0x4, fixed_abs, tag = 'smem constant byte address 0x4 - core index']
  #allocation1 [shape = 'u32[144,128]{1,0:T(1,128)}', space=vmem, size = 0x12000, scoped, tag = 'internal scratch']
  %s0 = inlined_call_operand.hbm [shape: f32[2,8,16], index: 0, kind: input, shape index: {}]
  %s1 = inlined_call_operand.hbm [shape: f32[16,32], index: 1, kind: input, shape index: {}]
  %s2 = inlined_call_operand.hbm [shape: f32[1,32], index: 2, kind: input, shape index: {}]
  %s3 = inlined_call_operand.hbm [shape: f32[8,32], index: 3, kind: input, shape index: {}]
  %s4 = inlined_call_operand.hbm [shape: f32[1,32], index: 4, kind: input, shape index: {}]
  %s5 = inlined_call_operand.hbm [shape: f32[1,32], index: 5, kind: input, shape index: {}]
  %s6 = inlined_call_operand.vmem [shape: f32[2,32,32], index: 6, kind: input, shape index: {}]
  %s7 = inlined_call_operand.vmem [shape: f32[2,1,32], index: 7, kind: input, shape index: {}]
  %s8 = inlined_call_operand.vmem [shape: f32[2,32,32], index: 8, kind: input, shape index: {}]
  %s9 = inlined_call_operand.vmem [shape: f32[2,1,32], index: 9, kind: input, shape index: {}]
  %s10 = inlined_call_operand.vmem [shape: f32[2,32,32], index: 10, kind: input, shape index: {}]
  %s11 = inlined_call_operand.hbm [shape: f32[2,1,32], index: 11, kind: input, shape index: {}]
  %s12 = inlined_call_operand.hbm [shape: f32[2,32,32], index: 12, kind: input, shape index: {}]
  %s13 = inlined_call_operand.hbm [shape: f32[2,1,32], index: 13, kind: input, shape index: {}]
  %s14 = inlined_call_operand.hbm [shape: f32[2,1,32], index: 14, kind: input, shape index: {}]
  %s15 = inlined_call_operand.hbm [shape: f32[2,1,32], index: 15, kind: input, shape index: {}]
  %s16 = inlined_call_operand.hbm [shape: f32[2,32,64], index: 16, kind: input, shape index: {}]
  %s17 = inlined_call_operand.hbm [shape: f32[2,1,64], index: 17, kind: input, shape index: {}]
  %s18 = inlined_call_operand.vmem [shape: f32[2,64,32], index: 18, kind: input, shape index: {}]
  %s19 = inlined_call_operand.vmem [shape: f32[2,1,32], index: 19, kind: input, shape index: {}]
  %s20 = inlined_call_operand.vmem [shape: f32[2,1,32], index: 20, kind: input, shape index: {}]
  %s21 = inlined_call_operand.vmem [shape: f32[2,1,32], index: 21, kind: input, shape index: {}]
  %s22 = inlined_call_operand.hbm [shape: f32[2,8,32], index: 22, kind: output, shape index: {}]
  %s23 = sld [smem:[#allocation0]]
  $region173: #{tpu_custom_call.1} parent=0
    _
  %s25 = ssub.s32 1, %s23
  %s26 = scalar_select 0, %s25, %s23
  $region1: #{tpu_custom_call.1} parent=0
    #allocation2 [shape = 'u8[8192]{0}', space=vmem, size = 0x2000, scoped, tag = 'input window, operand 0']
    #allocation3 [shape = 's32[2]{0}', space=sflag, size = 0x8, scoped, tag = 'scoped memory for tpu_custom_call.1']
    #allocation4 [shape = 's32[2]{0}', space=sflag, size = 0x8, scoped, tag = 'scoped memory for tpu_custom_call.1']
    #allocation5 [shape = 'u8[8192]{0}', space=vmem, size = 0x2000, scoped, tag = 'input window, operand 1, single buffered']
    #allocation6 [shape = 's32[1]{0}', space=sflag, size = 0x4, scoped, tag = 'scoped memory for tpu_custom_call.1']
    #allocation7 [shape = 'u8[512]{0}', space=vmem, size = 0x400, scoped, tag = 'input window, operand 2, single buffered']
    #allocation8 [shape = 'u8[4096]{0}', space=vmem, size = 0x1000, scoped, tag = 'input window, operand 3, single buffered']
    #allocation9 [shape = 's32[1]{0}', space=sflag, size = 0x4, scoped, tag = 'scoped memory for tpu_custom_call.1']
    #allocation10 [shape = 'u8[512]{0}', space=vmem, size = 0x400, scoped, tag = 'input window, operand 4, single buffered']
    #allocation11 [shape = 'u8[512]{0}', space=vmem, size = 0x400, scoped, tag = 'input window, operand 5, single buffered']
    #allocation12 [shape = 's32[1]{0}', space=sflag, size = 0x4, scoped, tag = 'scoped memory for tpu_custom_call.1']
    #allocation13 [shape = 'u8[1024]{0}', space=vmem, size = 0x400, scoped, tag = 'input window, operand 11, single buffered']
    #allocation14 [shape = 'u8[32768]{0}', space=vmem, size = 0x8000, scoped, tag = 'input window, operand 12, single buffered']
    #allocation15 [shape = 's32[1]{0}', space=sflag, size = 0x4, scoped, tag = 'scoped memory for tpu_custom_call.1']
    #allocation16 [shape = 'u8[1024]{0}', space=vmem, size = 0x400, scoped, tag = 'input window, operand 13, single buffered']
    #allocation17 [shape = 'u8[1024]{0}', space=vmem, size = 0x400, scoped, tag = 'input window, operand 14, single buffered']
    #allocation18 [shape = 's32[1]{0}', space=sflag, size = 0x4, scoped, tag = 'scoped memory for tpu_custom_call.1']
    #allocation19 [shape = 'u8[1024]{0}', space=vmem, size = 0x400, scoped, tag = 'input window, operand 15, single buffered']
    #allocation20 [shape = 'u8[32768]{0}', space=vmem, size = 0x8000, scoped, tag = 'input window, operand 16, single buffered']
    #allocation21 [shape = 's32[1]{0}', space=sflag, size = 0x4, scoped, tag = 'scoped memory for tpu_custom_call.1']
    #allocation22 [shape = 'u8[1024]{0}', space=vmem, size = 0x400, scoped, tag = 'input window, operand 17, single buffered']
    #allocation23 [shape = 'u8[8192]{0}', space=vmem, size = 0x2000, scoped, tag = 'output window, operand 0']
    %27 = vsyncpa [#allocation3], 0
    %s28 = scalar_lea.sflag [#allocation3], 1
    %29 = vsyncpa %s28, 0
    %30 = vsyncpa [#allocation6], 0
    %31 = vsyncpa [#allocation9], 0
    %32 = vsyncpa [#allocation12], 0
    %33 = vsyncpa [#allocation15], 0
    %34 = vsyncpa [#allocation18], 0
    %35 = vsyncpa [#allocation21], 0
    %36 = vsyncpa [#allocation4], 0
    %s37 = scalar_lea.sflag [#allocation4], 1
    %38 = vsyncpa %s37, 0
    loop: start=0, step=1, limit=4
    $region2: #{tpu_custom_call.1} parent=1 // loop_pre_header
      _
    $region3: #{tpu_custom_call.1} parent=1 // loop_header
      %s40 = sphi 0, %s44
      %p41 = scmp.ge.s32.totalorder %s40, 4
      %s50 = sphi 0, %s52
      %s53 = sphi 0, %s50
      %s54 = sphi 0, %s53
      %s70 = sphi 0, %s54
      %s74 = sphi 0, %s74
      %s76 = sphi 0, %s74
      %s77 = sphi 0, %s76
      %s91 = sphi 0, %s77
      %s95 = sphi 0, %s95
      %s97 = sphi 0, %s95
      %s98 = sphi 0, %s97
      %s112 = sphi 0, %s98
      %s116 = sphi 0, %s116
      %s118 = sphi 0, %s116
      %s119 = sphi 0, %s118
      %s133 = sphi 0, %s119
      %s137 = sphi 0, %s137
      %s139 = sphi 0, %s137
      %s140 = sphi 0, %s139
      %s154 = sphi 0, %s140
      %s158 = sphi 0, %s158
      %s160 = sphi 0, %s158
      %s161 = sphi 0, %s160
      %s175 = sphi 0, %s161
      %s179 = sphi 0, %s179
      %s181 = sphi 0, %s179
      %s182 = sphi 0, %s181
      %s196 = sphi 0, %s182
      %s200 = sphi 0, %s200
      %s202 = sphi 0, %s200
      %s203 = sphi 0, %s202
      %s217 = sphi 0, %s203
      %s221 = sphi 0, %s221
      %s223 = sphi 0, %s221
      %s224 = sphi 0, %s223
      %s238 = sphi 0, %s224
      %s242 = sphi 0, %s242
      %s244 = sphi 0, %s242
      %s245 = sphi 0, %s244
      %s259 = sphi 0, %s245
      %s263 = sphi 0, %s263
      %s265 = sphi 0, %s263
      %s266 = sphi 0, %s265
      %s280 = sphi 0, %s266
      %s284 = sphi 0, %s284
      %s286 = sphi 0, %s284
      %s287 = sphi 0, %s286
      %s301 = sphi 0, %s287
      %s305 = sphi 0, %s305
      %s307 = sphi 0, %s305
      %s308 = sphi 0, %s307
      %s322 = sphi 0, %s308
      %s326 = sphi 0, %s326
      %s328 = sphi 0, %s326
      %s329 = sphi 0, %s328
      %s343 = sphi 0, %s329
      %s347 = sphi 0, %s347
      %s349 = sphi 0, %s347
      %s350 = sphi 0, %s349
      %s364 = sphi 0, %s350
      %s368 = sphi 0, %s368
      %s370 = sphi 0, %s368
      %s371 = sphi 0, %s370
      %s385 = sphi 0, %s371
      %s389 = sphi 0, %s389
      %s391 = sphi 0, %s389
      %s392 = sphi 0, %s391
      %s406 = sphi 0, %s392
      %s410 = sphi 0, %s410
      %s412 = sphi 0, %s410
      %s413 = sphi 0, %s412
      %s427 = sphi 0, %s413
      %s431 = sphi 0, %s431
      %s433 = sphi 0, %s431
      %s434 = sphi 0, %s433
      %s448 = sphi 0, %s434
      %s452 = sphi 0, %s452
      %s454 = sphi 0, %s452
      %s455 = sphi 0, %s454
      %s469 = sphi 0, %s455
      %s473 = sphi 0, %s473
      %s475 = sphi 0, %s473
      %s476 = sphi 0, %s475
      %s490 = sphi 0, %s476
      %s494 = sphi 0, %s494
      %s496 = sphi 0, %s494
      %s497 = sphi 0, %s496
      %s511 = sphi 0, %s497
      %s517 = sphi 0, %s519
      %s520 = sphi 0, %s517
      %s521 = sphi 0, %s520
      %s537 = sphi 0, %s521
    $region4: #{tpu_custom_call.1} parent=1 // loop_header_branch
      %43 = sbr.rel (%p41) target = $region8
    $region5: #{tpu_custom_call.1} parent=1 // loop_body
      %s45 = ssub.s32 %s40, 1
      %s46 = ssub.s32 %s40, 2
      %s47 = sadd.s32 %s40, 1
      %s48 = ssub.s32 %s40, %s47
      %p49 = scmp.eq.s32.totalorder %s48, 0
      %s51 = sadd.s32 %s50, 1
      %s52 = scalar_select %p49, %s50, %s51
      %p55 = pneg %p49
      %p56 = scmp.eq.s32.totalorder %s40, 1
      %p57 = por %p55, %p56
      %p58 = scmp.ne.s32.totalorder %s50, %s53
      %p59 = scmp.eq.s32.totalorder %s40, 0
      %p60 = por %p58, %p59
      %p61 = scmp.ne.s32.totalorder %s50, %s53
      %p62 = scmp.eq.s32.totalorder %s45, 1
      %p63 = por %p61, %p62
      %p64 = scmp.ne.s32.totalorder %s53, %s54
      %p65 = scmp.eq.s32.totalorder %s45, 0
      %p66 = por %p64, %p65
      %p67 = scmp.ne.s32.totalorder %s53, %s54
      %p68 = scmp.eq.s32.totalorder %s46, 1
      %p69 = por %p67, %p68
      %p71 = scmp.ne.s32.totalorder %s54, %s70
      %p72 = scmp.eq.s32.totalorder %s46, 0
      %p73 = por %p71, %p72
      %s75 = sadd.s32 %s74, 1
      %p78 = scmp.eq.s32.totalorder %s40, 1
      %p79 = scmp.ne.s32.totalorder %s74, %s76
      %p80 = scmp.eq.s32.totalorder %s40, 0
      %p81 = por %p79, %p80
      %p82 = scmp.ne.s32.totalorder %s74, %s76
      %p83 = scmp.eq.s32.totalorder %s45, 1
      %p84 = por %p82, %p83
      %p85 = scmp.ne.s32.totalorder %s76, %s77
      %p86 = scmp.eq.s32.totalorder %s45, 0
      %p87 = por %p85, %p86
      %p88 = scmp.ne.s32.totalorder %s76, %s77
      %p89 = scmp.eq.s32.totalorder %s46, 1
      %p90 = por %p88, %p89
      %p92 = scmp.ne.s32.totalorder %s77, %s91
      %p93 = scmp.eq.s32.totalorder %s46, 0
      %p94 = por %p92, %p93
      %s96 = sadd.s32 %s95, 1
      %p99 = scmp.eq.s32.totalorder %s40, 1
      %p100 = scmp.ne.s32.totalorder %s95, %s97
      %p101 = scmp.eq.s32.totalorder %s40, 0
      %p102 = por %p100, %p101
      %p103 = scmp.ne.s32.totalorder %s95, %s97
      %p104 = scmp.eq.s32.totalorder %s45, 1
      %p105 = por %p103, %p104
      %p106 = scmp.ne.s32.totalorder %s97, %s98
      %p107 = scmp.eq.s32.totalorder %s45, 0
      %p108 = por %p106, %p107
      %p109 = scmp.ne.s32.totalorder %s97, %s98
      %p110 = scmp.eq.s32.totalorder %s46, 1
      %p111 = por %p109, %p110
      %p113 = scmp.ne.s32.totalorder %s98, %s112
      %p114 = scmp.eq.s32.totalorder %s46, 0
      %p115 = por %p113, %p114
      %s117 = sadd.s32 %s116, 1
      %p120 = scmp.eq.s32.totalorder %s40, 1
      %p121 = scmp.ne.s32.totalorder %s116, %s118
      %p122 = scmp.eq.s32.totalorder %s40, 0
      %p123 = por %p121, %p122
      %p124 = scmp.ne.s32.totalorder %s116, %s118
      %p125 = scmp.eq.s32.totalorder %s45, 1
      %p126 = por %p124, %p125
      %p127 = scmp.ne.s32.totalorder %s118, %s119
      %p128 = scmp.eq.s32.totalorder %s45, 0
      %p129 = por %p127, %p128
      %p130 = scmp.ne.s32.totalorder %s118, %s119
      %p131 = scmp.eq.s32.totalorder %s46, 1
      %p132 = por %p130, %p131
      %p134 = scmp.ne.s32.totalorder %s119, %s133
      %p135 = scmp.eq.s32.totalorder %s46, 0
      %p136 = por %p134, %p135
      %s138 = sadd.s32 %s137, 1
      %p141 = scmp.eq.s32.totalorder %s40, 1
      %p142 = scmp.ne.s32.totalorder %s137, %s139
      %p143 = scmp.eq.s32.totalorder %s40, 0
      %p144 = por %p142, %p143
      %p145 = scmp.ne.s32.totalorder %s137, %s139
      %p146 = scmp.eq.s32.totalorder %s45, 1
      %p147 = por %p145, %p146
      %p148 = scmp.ne.s32.totalorder %s139, %s140
      %p149 = scmp.eq.s32.totalorder %s45, 0
      %p150 = por %p148, %p149
      %p151 = scmp.ne.s32.totalorder %s139, %s140
      %p152 = scmp.eq.s32.totalorder %s46, 1
      %p153 = por %p151, %p152
      %p155 = scmp.ne.s32.totalorder %s140, %s154
      %p156 = scmp.eq.s32.totalorder %s46, 0
      %p157 = por %p155, %p156
      %s159 = sadd.s32 %s158, 1
      %p162 = scmp.eq.s32.totalorder %s40, 1
      %p163 = scmp.ne.s32.totalorder %s158, %s160
      %p164 = scmp.eq.s32.totalorder %s40, 0
      %p165 = por %p163, %p164
      %p166 = scmp.ne.s32.totalorder %s158, %s160
      %p167 = scmp.eq.s32.totalorder %s45, 1
      %p168 = por %p166, %p167
      %p169 = scmp.ne.s32.totalorder %s160, %s161
      %p170 = scmp.eq.s32.totalorder %s45, 0
      %p171 = por %p169, %p170
      %p172 = scmp.ne.s32.totalorder %s160, %s161
      %p173 = scmp.eq.s32.totalorder %s46, 1
      %p174 = por %p172, %p173
      %p176 = scmp.ne.s32.totalorder %s161, %s175
      %p177 = scmp.eq.s32.totalorder %s46, 0
      %p178 = por %p176, %p177
      %s180 = sadd.s32 %s179, 1
      %p183 = scmp.eq.s32.totalorder %s40, 1
      %p184 = scmp.ne.s32.totalorder %s179, %s181
      %p185 = scmp.eq.s32.totalorder %s40, 0
      %p186 = por %p184, %p185
      %p187 = scmp.ne.s32.totalorder %s179, %s181
      %p188 = scmp.eq.s32.totalorder %s45, 1
      %p189 = por %p187, %p188
      %p190 = scmp.ne.s32.totalorder %s181, %s182
      %p191 = scmp.eq.s32.totalorder %s45, 0
      %p192 = por %p190, %p191
      %p193 = scmp.ne.s32.totalorder %s181, %s182
      %p194 = scmp.eq.s32.totalorder %s46, 1
      %p195 = por %p193, %p194
      %p197 = scmp.ne.s32.totalorder %s182, %s196
      %p198 = scmp.eq.s32.totalorder %s46, 0
      %p199 = por %p197, %p198
      %s201 = sadd.s32 %s200, 1
      %p204 = scmp.eq.s32.totalorder %s40, 1
      %p205 = scmp.ne.s32.totalorder %s200, %s202
      %p206 = scmp.eq.s32.totalorder %s40, 0
      %p207 = por %p205, %p206
      %p208 = scmp.ne.s32.totalorder %s200, %s202
      %p209 = scmp.eq.s32.totalorder %s45, 1
      %p210 = por %p208, %p209
      %p211 = scmp.ne.s32.totalorder %s202, %s203
      %p212 = scmp.eq.s32.totalorder %s45, 0
      %p213 = por %p211, %p212
      %p214 = scmp.ne.s32.totalorder %s202, %s203
      %p215 = scmp.eq.s32.totalorder %s46, 1
      %p216 = por %p214, %p215
      %p218 = scmp.ne.s32.totalorder %s203, %s217
      %p219 = scmp.eq.s32.totalorder %s46, 0
      %p220 = por %p218, %p219
      %s222 = sadd.s32 %s221, 1
      %p225 = scmp.eq.s32.totalorder %s40, 1
      %p226 = scmp.ne.s32.totalorder %s221, %s223
      %p227 = scmp.eq.s32.totalorder %s40, 0
      %p228 = por %p226, %p227
      %p229 = scmp.ne.s32.totalorder %s221, %s223
      %p230 = scmp.eq.s32.totalorder %s45, 1
      %p231 = por %p229, %p230
      %p232 = scmp.ne.s32.totalorder %s223, %s224
      %p233 = scmp.eq.s32.totalorder %s45, 0
      %p234 = por %p232, %p233
      %p235 = scmp.ne.s32.totalorder %s223, %s224
      %p236 = scmp.eq.s32.totalorder %s46, 1
      %p237 = por %p235, %p236
      %p239 = scmp.ne.s32.totalorder %s224, %s238
      %p240 = scmp.eq.s32.totalorder %s46, 0
      %p241 = por %p239, %p240
      %s243 = sadd.s32 %s242, 1
      %p246 = scmp.eq.s32.totalorder %s40, 1
      %p247 = scmp.ne.s32.totalorder %s242, %s244
      %p248 = scmp.eq.s32.totalorder %s40, 0
      %p249 = por %p247, %p248
      %p250 = scmp.ne.s32.totalorder %s242, %s244
      %p251 = scmp.eq.s32.totalorder %s45, 1
      %p252 = por %p250, %p251
      %p253 = scmp.ne.s32.totalorder %s244, %s245
      %p254 = scmp.eq.s32.totalorder %s45, 0
      %p255 = por %p253, %p254
      %p256 = scmp.ne.s32.totalorder %s244, %s245
      %p257 = scmp.eq.s32.totalorder %s46, 1
      %p258 = por %p256, %p257
      %p260 = scmp.ne.s32.totalorder %s245, %s259
      %p261 = scmp.eq.s32.totalorder %s46, 0
      %p262 = por %p260, %p261
      %s264 = sadd.s32 %s263, 1
      %p267 = scmp.eq.s32.totalorder %s40, 1
      %p268 = scmp.ne.s32.totalorder %s263, %s265
      %p269 = scmp.eq.s32.totalorder %s40, 0
      %p270 = por %p268, %p269
      %p271 = scmp.ne.s32.totalorder %s263, %s265
      %p272 = scmp.eq.s32.totalorder %s45, 1
      %p273 = por %p271, %p272
      %p274 = scmp.ne.s32.totalorder %s265, %s266
      %p275 = scmp.eq.s32.totalorder %s45, 0
      %p276 = por %p274, %p275
      %p277 = scmp.ne.s32.totalorder %s265, %s266
      %p278 = scmp.eq.s32.totalorder %s46, 1
      %p279 = por %p277, %p278
      %p281 = scmp.ne.s32.totalorder %s266, %s280
      %p282 = scmp.eq.s32.totalorder %s46, 0
      %p283 = por %p281, %p282
      %s285 = sadd.s32 %s284, 1
      %p288 = scmp.eq.s32.totalorder %s40, 1
      %p289 = scmp.ne.s32.totalorder %s284, %s286
      %p290 = scmp.eq.s32.totalorder %s40, 0
      %p291 = por %p289, %p290
      %p292 = scmp.ne.s32.totalorder %s284, %s286
      %p293 = scmp.eq.s32.totalorder %s45, 1
      %p294 = por %p292, %p293
      %p295 = scmp.ne.s32.totalorder %s286, %s287
      %p296 = scmp.eq.s32.totalorder %s45, 0
      %p297 = por %p295, %p296
      %p298 = scmp.ne.s32.totalorder %s286, %s287
      %p299 = scmp.eq.s32.totalorder %s46, 1
      %p300 = por %p298, %p299
      %p302 = scmp.ne.s32.totalorder %s287, %s301
      %p303 = scmp.eq.s32.totalorder %s46, 0
      %p304 = por %p302, %p303
      %s306 = sadd.s32 %s305, 1
      %p309 = scmp.eq.s32.totalorder %s40, 1
      %p310 = scmp.ne.s32.totalorder %s305, %s307
      %p311 = scmp.eq.s32.totalorder %s40, 0
      %p312 = por %p310, %p311
      %p313 = scmp.ne.s32.totalorder %s305, %s307
      %p314 = scmp.eq.s32.totalorder %s45, 1
      %p315 = por %p313, %p314
      %p316 = scmp.ne.s32.totalorder %s307, %s308
      %p317 = scmp.eq.s32.totalorder %s45, 0
      %p318 = por %p316, %p317
      %p319 = scmp.ne.s32.totalorder %s307, %s308
      %p320 = scmp.eq.s32.totalorder %s46, 1
      %p321 = por %p319, %p320
      %p323 = scmp.ne.s32.totalorder %s308, %s322
      %p324 = scmp.eq.s32.totalorder %s46, 0
      %p325 = por %p323, %p324
      %s327 = sadd.s32 %s326, 1
      %p330 = scmp.eq.s32.totalorder %s40, 1
      %p331 = scmp.ne.s32.totalorder %s326, %s328
      %p332 = scmp.eq.s32.totalorder %s40, 0
      %p333 = por %p331, %p332
      %p334 = scmp.ne.s32.totalorder %s326, %s328
      %p335 = scmp.eq.s32.totalorder %s45, 1
      %p336 = por %p334, %p335
      %p337 = scmp.ne.s32.totalorder %s328, %s329
      %p338 = scmp.eq.s32.totalorder %s45, 0
      %p339 = por %p337, %p338
      %p340 = scmp.ne.s32.totalorder %s328, %s329
      %p341 = scmp.eq.s32.totalorder %s46, 1
      %p342 = por %p340, %p341
      %p344 = scmp.ne.s32.totalorder %s329, %s343
      %p345 = scmp.eq.s32.totalorder %s46, 0
      %p346 = por %p344, %p345
      %s348 = sadd.s32 %s347, 1
      %p351 = scmp.eq.s32.totalorder %s40, 1
      %p352 = scmp.ne.s32.totalorder %s347, %s349
      %p353 = scmp.eq.s32.totalorder %s40, 0
      %p354 = por %p352, %p353
      %p355 = scmp.ne.s32.totalorder %s347, %s349
      %p356 = scmp.eq.s32.totalorder %s45, 1
      %p357 = por %p355, %p356
      %p358 = scmp.ne.s32.totalorder %s349, %s350
      %p359 = scmp.eq.s32.totalorder %s45, 0
      %p360 = por %p358, %p359
      %p361 = scmp.ne.s32.totalorder %s349, %s350
      %p362 = scmp.eq.s32.totalorder %s46, 1
      %p363 = por %p361, %p362
      %p365 = scmp.ne.s32.totalorder %s350, %s364
      %p366 = scmp.eq.s32.totalorder %s46, 0
      %p367 = por %p365, %p366
      %s369 = sadd.s32 %s368, 1
      %p372 = scmp.eq.s32.totalorder %s40, 1
      %p373 = scmp.ne.s32.totalorder %s368, %s370
      %p374 = scmp.eq.s32.totalorder %s40, 0
      %p375 = por %p373, %p374
      %p376 = scmp.ne.s32.totalorder %s368, %s370
      %p377 = scmp.eq.s32.totalorder %s45, 1
      %p378 = por %p376, %p377
      %p379 = scmp.ne.s32.totalorder %s370, %s371
      %p380 = scmp.eq.s32.totalorder %s45, 0
      %p381 = por %p379, %p380
      %p382 = scmp.ne.s32.totalorder %s370, %s371
      %p383 = scmp.eq.s32.totalorder %s46, 1
      %p384 = por %p382, %p383
      %p386 = scmp.ne.s32.totalorder %s371, %s385
      %p387 = scmp.eq.s32.totalorder %s46, 0
      %p388 = por %p386, %p387
      %s390 = sadd.s32 %s389, 1
      %p393 = scmp.eq.s32.totalorder %s40, 1
      %p394 = scmp.ne.s32.totalorder %s389, %s391
      %p395 = scmp.eq.s32.totalorder %s40, 0
      %p396 = por %p394, %p395
      %p397 = scmp.ne.s32.totalorder %s389, %s391
      %p398 = scmp.eq.s32.totalorder %s45, 1
      %p399 = por %p397, %p398
      %p400 = scmp.ne.s32.totalorder %s391, %s392
      %p401 = scmp.eq.s32.totalorder %s45, 0
      %p402 = por %p400, %p401
      %p403 = scmp.ne.s32.totalorder %s391, %s392
      %p404 = scmp.eq.s32.totalorder %s46, 1
      %p405 = por %p403, %p404
      %p407 = scmp.ne.s32.totalorder %s392, %s406
      %p408 = scmp.eq.s32.totalorder %s46, 0
      %p409 = por %p407, %p408
      %s411 = sadd.s32 %s410, 1
      %p414 = scmp.eq.s32.totalorder %s40, 1
      %p415 = scmp.ne.s32.totalorder %s410, %s412
      %p416 = scmp.eq.s32.totalorder %s40, 0
      %p417 = por %p415, %p416
      %p418 = scmp.ne.s32.totalorder %s410, %s412
      %p419 = scmp.eq.s32.totalorder %s45, 1
      %p420 = por %p418, %p419
      %p421 = scmp.ne.s32.totalorder %s412, %s413
      %p422 = scmp.eq.s32.totalorder %s45, 0
      %p423 = por %p421, %p422
      %p424 = scmp.ne.s32.totalorder %s412, %s413
      %p425 = scmp.eq.s32.totalorder %s46, 1
      %p426 = por %p424, %p425
      %p428 = scmp.ne.s32.totalorder %s413, %s427
      %p429 = scmp.eq.s32.totalorder %s46, 0
      %p430 = por %p428, %p429
      %s432 = sadd.s32 %s431, 1
      %p435 = scmp.eq.s32.totalorder %s40, 1
      %p436 = scmp.ne.s32.totalorder %s431, %s433
      %p437 = scmp.eq.s32.totalorder %s40, 0
      %p438 = por %p436, %p437
      %p439 = scmp.ne.s32.totalorder %s431, %s433
      %p440 = scmp.eq.s32.totalorder %s45, 1
      %p441 = por %p439, %p440
      %p442 = scmp.ne.s32.totalorder %s433, %s434
      %p443 = scmp.eq.s32.totalorder %s45, 0
      %p444 = por %p442, %p443
      %p445 = scmp.ne.s32.totalorder %s433, %s434
      %p446 = scmp.eq.s32.totalorder %s46, 1
      %p447 = por %p445, %p446
      %p449 = scmp.ne.s32.totalorder %s434, %s448
      %p450 = scmp.eq.s32.totalorder %s46, 0
      %p451 = por %p449, %p450
      %s453 = sadd.s32 %s452, 1
      %p456 = scmp.eq.s32.totalorder %s40, 1
      %p457 = scmp.ne.s32.totalorder %s452, %s454
      %p458 = scmp.eq.s32.totalorder %s40, 0
      %p459 = por %p457, %p458
      %p460 = scmp.ne.s32.totalorder %s452, %s454
      %p461 = scmp.eq.s32.totalorder %s45, 1
      %p462 = por %p460, %p461
      %p463 = scmp.ne.s32.totalorder %s454, %s455
      %p464 = scmp.eq.s32.totalorder %s45, 0
      %p465 = por %p463, %p464
      %p466 = scmp.ne.s32.totalorder %s454, %s455
      %p467 = scmp.eq.s32.totalorder %s46, 1
      %p468 = por %p466, %p467
      %p470 = scmp.ne.s32.totalorder %s455, %s469
      %p471 = scmp.eq.s32.totalorder %s46, 0
      %p472 = por %p470, %p471
      %s474 = sadd.s32 %s473, 1
      %p477 = scmp.eq.s32.totalorder %s40, 1
      %p478 = scmp.ne.s32.totalorder %s473, %s475
      %p479 = scmp.eq.s32.totalorder %s40, 0
      %p480 = por %p478, %p479
      %p481 = scmp.ne.s32.totalorder %s473, %s475
      %p482 = scmp.eq.s32.totalorder %s45, 1
      %p483 = por %p481, %p482
      %p484 = scmp.ne.s32.totalorder %s475, %s476
      %p485 = scmp.eq.s32.totalorder %s45, 0
      %p486 = por %p484, %p485
      %p487 = scmp.ne.s32.totalorder %s475, %s476
      %p488 = scmp.eq.s32.totalorder %s46, 1
      %p489 = por %p487, %p488
      %p491 = scmp.ne.s32.totalorder %s476, %s490
      %p492 = scmp.eq.s32.totalorder %s46, 0
      %p493 = por %p491, %p492
      %s495 = sadd.s32 %s494, 1
      %p498 = scmp.eq.s32.totalorder %s40, 1
      %p499 = scmp.ne.s32.totalorder %s494, %s496
      %p500 = scmp.eq.s32.totalorder %s40, 0
      %p501 = por %p499, %p500
      %p502 = scmp.ne.s32.totalorder %s494, %s496
      %p503 = scmp.eq.s32.totalorder %s45, 1
      %p504 = por %p502, %p503
      %p505 = scmp.ne.s32.totalorder %s496, %s497
      %p506 = scmp.eq.s32.totalorder %s45, 0
      %p507 = por %p505, %p506
      %p508 = scmp.ne.s32.totalorder %s496, %s497
      %p509 = scmp.eq.s32.totalorder %s46, 1
      %p510 = por %p508, %p509
      %p512 = scmp.ne.s32.totalorder %s497, %s511
      %p513 = scmp.eq.s32.totalorder %s46, 0
      %p514 = por %p512, %p513
      %s515 = ssub.s32 %s40, %s47
      %p516 = scmp.eq.s32.totalorder %s515, 0
      %s518 = sadd.s32 %s517, 1
      %s519 = scalar_select %p516, %s517, %s518
      %p522 = pneg %p516
      %p523 = scmp.eq.s32.totalorder %s40, 1
      %p524 = por %p522, %p523
      %p525 = scmp.ne.s32.totalorder %s517, %s520
      %p526 = scmp.eq.s32.totalorder %s40, 0
      %p527 = por %p525, %p526
      %p528 = scmp.ne.s32.totalorder %s517, %s520
      %p529 = scmp.eq.s32.totalorder %s45, 1
      %p530 = por %p528, %p529
      %p531 = scmp.ne.s32.totalorder %s520, %s521
      %p532 = scmp.eq.s32.totalorder %s45, 0
      %p533 = por %p531, %p532
      %p534 = scmp.ne.s32.totalorder %s520, %s521
      %p535 = scmp.eq.s32.totalorder %s46, 1
      %p536 = por %p534, %p535
      %p538 = scmp.ne.s32.totalorder %s521, %s537
      %p539 = scmp.eq.s32.totalorder %s46, 0
      %p540 = por %p538, %p539
      %p541 = scmp.le.s32.totalorder 1, %s40
      %p542 = scmp.lt.s32.totalorder %s40, 3
      %p543 = pnand %p541, %p542
      %p544 = pneg %p543
      // Predicated region
      $region9: #{tpu_custom_call.1} parent=5 // pred_check
        _
      $region10: #{tpu_custom_call.1} parent=5 // pred_check_branch
        %546 = sbr.rel (%p543) target = $region12
      $region11: #{tpu_custom_call.1} parent=5 // pred_region
        %s547 = ssub.s32 %s40, 1
        // Predicated region
        $region13: #{tpu_custom_call.1} parent=11 // pred_check
          %p548 = pneg %p87
        $region14: #{tpu_custom_call.1} parent=11 // pred_check_branch
          %550 = sbr.rel (%p548) target = $region16
        $region15: #{tpu_custom_call.1} parent=11 // pred_region
          %s552 = ssub.s32 256, 256
          %553 = vsyncadd [#allocation6], %s552
          %s554 = sshll.u32 [#allocation5], 4
          %s555 = int_to_ptr.vmem [resolvable:$true] %s554
          %560 = dma.hbm_to_vmem [thread:$0]  %s1, 256, %s555, [#allocation6], 128, 128, 8
        $region16: #{tpu_custom_call.1} parent=11 // pred_fallthru
          _
        // Predicated region
        $region17: #{tpu_custom_call.1} parent=11 // pred_check
          %p561 = pneg %p108
        $region18: #{tpu_custom_call.1} parent=11 // pred_check_branch
          %563 = sbr.rel (%p561) target = $region20
        $region19: #{tpu_custom_call.1} parent=11 // pred_region
          %s565 = ssub.s32 16, 16
          %566 = vsyncadd [#allocation6], %s565
          %s568 = sshll.u32 [#allocation7], 4
          %s569 = int_to_ptr.vmem [resolvable:$true] %s568
          %571 = dma.hbm_to_vmem [thread:$0]  %s2, 16, %s569, [#allocation6]
        $region20: #{tpu_custom_call.1} parent=11 // pred_fallthru
          _
        // Predicated region
        $region21: #{tpu_custom_call.1} parent=11 // pred_check
          %p572 = pneg %p129
        $region22: #{tpu_custom_call.1} parent=11 // pred_check_branch
          %574 = sbr.rel (%p572) target = $region24
        $region23: #{tpu_custom_call.1} parent=11 // pred_region
          %s576 = ssub.s32 128, 128
          %577 = vsyncadd [#allocation9], %s576
          %s579 = sshll.u32 [#allocation8], 4
          %s580 = int_to_ptr.vmem [resolvable:$true] %s579
          %582 = dma.hbm_to_vmem [thread:$0]  %s3, 128, %s580, [#allocation9]
        $region24: #{tpu_custom_call.1} parent=11 // pred_fallthru
          _
        // Predicated region
        $region25: #{tpu_custom_call.1} parent=11 // pred_check
          %p583 = pneg %p150
        $region26: #{tpu_custom_call.1} parent=11 // pred_check_branch
          %585 = sbr.rel (%p583) target = $region28
        $region27: #{tpu_custom_call.1} parent=11 // pred_region
          %s587 = ssub.s32 16, 16
          %588 = vsyncadd [#allocation9], %s587
          %s590 = sshll.u32 [#allocation10], 4
          %s591 = int_to_ptr.vmem [resolvable:$true] %s590
          %593 = dma.hbm_to_vmem [thread:$0]  %s4, 16, %s591, [#allocation9]
        $region28: #{tpu_custom_call.1} parent=11 // pred_fallthru
          _
        // Predicated region
        $region29: #{tpu_custom_call.1} parent=11 // pred_check
          %p594 = pneg %p171
        $region30: #{tpu_custom_call.1} parent=11 // pred_check_branch
          %596 = sbr.rel (%p594) target = $region32
        $region31: #{tpu_custom_call.1} parent=11 // pred_region
          %s598 = ssub.s32 16, 16
          %599 = vsyncadd [#allocation12], %s598
          %s601 = sshll.u32 [#allocation11], 4
          %s602 = int_to_ptr.vmem [resolvable:$true] %s601
          %604 = dma.hbm_to_vmem [thread:$0]  %s5, 16, %s602, [#allocation12]
        $region32: #{tpu_custom_call.1} parent=11 // pred_fallthru
          _
        // Predicated region
        $region33: #{tpu_custom_call.1} parent=11 // pred_check
          %p605 = pneg %p192
        $region34: #{tpu_custom_call.1} parent=11 // pred_check_branch
          %607 = sbr.rel (%p605) target = $region36
        $region35: #{tpu_custom_call.1} parent=11 // pred_region
          _
        $region36: #{tpu_custom_call.1} parent=11 // pred_fallthru
          _
        // Predicated region
        $region37: #{tpu_custom_call.1} parent=11 // pred_check
          %p608 = pneg %p213
        $region38: #{tpu_custom_call.1} parent=11 // pred_check_branch
          %610 = sbr.rel (%p608) target = $region40
        $region39: #{tpu_custom_call.1} parent=11 // pred_region
          _
        $region40: #{tpu_custom_call.1} parent=11 // pred_fallthru
          _
        // Predicated region
        $region41: #{tpu_custom_call.1} parent=11 // pred_check
          %p611 = pneg %p234
        $region42: #{tpu_custom_call.1} parent=11 // pred_check_branch
          %613 = sbr.rel (%p611) target = $region44
        $region43: #{tpu_custom_call.1} parent=11 // pred_region
          _
        $region44: #{tpu_custom_call.1} parent=11 // pred_fallthru
          _
        // Predicated region
        $region45: #{tpu_custom_call.1} parent=11 // pred_check
          %p614 = pneg %p255
        $region46: #{tpu_custom_call.1} parent=11 // pred_check_branch
          %616 = sbr.rel (%p614) target = $region48
        $region47: #{tpu_custom_call.1} parent=11 // pred_region
          _
        $region48: #{tpu_custom_call.1} parent=11 // pred_fallthru
          _
        // Predicated region
        $region49: #{tpu_custom_call.1} parent=11 // pred_check
          %p617 = pneg %p276
        $region50: #{tpu_custom_call.1} parent=11 // pred_check_branch
          %619 = sbr.rel (%p617) target = $region52
        $region51: #{tpu_custom_call.1} parent=11 // pred_region
          _
        $region52: #{tpu_custom_call.1} parent=11 // pred_fallthru
          _
        // Predicated region
        $region53: #{tpu_custom_call.1} parent=11 // pred_check
          %p620 = pneg %p297
        $region54: #{tpu_custom_call.1} parent=11 // pred_check_branch
          %622 = sbr.rel (%p620) target = $region56
        $region55: #{tpu_custom_call.1} parent=11 // pred_region
          %s624 = ssub.s32 32, 32
          %625 = vsyncadd [#allocation12], %s624
          %s626 = sshll.u32 [#allocation13], 4
          %s627 = int_to_ptr.vmem [resolvable:$true] %s626
          %632 = dma.hbm_to_vmem [thread:$0]  %s11, 32, %s627, [#allocation12], 16, 16, 1
        $region56: #{tpu_custom_call.1} parent=11 // pred_fallthru
          _
        // Predicated region
        $region57: #{tpu_custom_call.1} parent=11 // pred_check
          %p633 = pneg %p318
        $region58: #{tpu_custom_call.1} parent=11 // pred_check_branch
          %635 = sbr.rel (%p633) target = $region60
        $region59: #{tpu_custom_call.1} parent=11 // pred_region
          %s637 = ssub.s32 1024, 1024
          %638 = vsyncadd [#allocation15], %s637
          %s639 = sshll.u32 [#allocation14], 4
          %s640 = int_to_ptr.vmem [resolvable:$true] %s639
          %645 = dma.hbm_to_vmem [thread:$0]  %s12, 1024, %s640, [#allocation15], 128, 128, 8
        $region60: #{tpu_custom_call.1} parent=11 // pred_fallthru
          _
        // Predicated region
        $region61: #{tpu_custom_call.1} parent=11 // pred_check
          %p646 = pneg %p339
        $region62: #{tpu_custom_call.1} parent=11 // pred_check_branch
          %648 = sbr.rel (%p646) target = $region64
        $region63: #{tpu_custom_call.1} parent=11 // pred_region
          %s650 = ssub.s32 32, 32
          %651 = vsyncadd [#allocation15], %s650
          %s652 = sshll.u32 [#allocation16], 4
          %s653 = int_to_ptr.vmem [resolvable:$true] %s652
          %658 = dma.hbm_to_vmem [thread:$0]  %s13, 32, %s653, [#allocation15], 16, 16, 1
        $region64: #{tpu_custom_call.1} parent=11 // pred_fallthru
          _
        // Predicated region
        $region65: #{tpu_custom_call.1} parent=11 // pred_check
          %p659 = pneg %p360
        $region66: #{tpu_custom_call.1} parent=11 // pred_check_branch
          %661 = sbr.rel (%p659) target = $region68
        $region67: #{tpu_custom_call.1} parent=11 // pred_region
          %s663 = ssub.s32 32, 32
          %664 = vsyncadd [#allocation18], %s663
          %s665 = sshll.u32 [#allocation17], 4
          %s666 = int_to_ptr.vmem [resolvable:$true] %s665
          %671 = dma.hbm_to_vmem [thread:$0]  %s14, 32, %s666, [#allocation18], 16, 16, 1
        $region68: #{tpu_custom_call.1} parent=11 // pred_fallthru
          _
        // Predicated region
        $region69: #{tpu_custom_call.1} parent=11 // pred_check
          %p672 = pneg %p381
        $region70: #{tpu_custom_call.1} parent=11 // pred_check_branch
          %674 = sbr.rel (%p672) target = $region72
        $region71: #{tpu_custom_call.1} parent=11 // pred_region
          %s676 = ssub.s32 32, 32
          %677 = vsyncadd [#allocation18], %s676
          %s678 = sshll.u32 [#allocation19], 4
          %s679 = int_to_ptr.vmem [resolvable:$true] %s678
          %684 = dma.hbm_to_vmem [thread:$0]  %s15, 32, %s679, [#allocation18], 16, 16, 1
        $region72: #{tpu_custom_call.1} parent=11 // pred_fallthru
          _
        // Predicated region
        $region73: #{tpu_custom_call.1} parent=11 // pred_check
          %p685 = pneg %p402
        $region74: #{tpu_custom_call.1} parent=11 // pred_check_branch
          %687 = sbr.rel (%p685) target = $region76
        $region75: #{tpu_custom_call.1} parent=11 // pred_region
          %s689 = ssub.s32 1024, 1024
          %690 = vsyncadd [#allocation21], %s689
          %s691 = sshll.u32 [#allocation20], 4
          %s692 = int_to_ptr.vmem [resolvable:$true] %s691
          %697 = dma.hbm_to_vmem [thread:$0]  %s16, 1024, %s692, [#allocation21], 128, 128, 8
        $region76: #{tpu_custom_call.1} parent=11 // pred_fallthru
          _
        // Predicated region
        $region77: #{tpu_custom_call.1} parent=11 // pred_check
          %p698 = pneg %p423
        $region78: #{tpu_custom_call.1} parent=11 // pred_check_branch
          %700 = sbr.rel (%p698) target = $region80
        $region79: #{tpu_custom_call.1} parent=11 // pred_region
          %s702 = ssub.s32 32, 32
          %703 = vsyncadd [#allocation21], %s702
          %s704 = sshll.u32 [#allocation22], 4
          %s705 = int_to_ptr.vmem [resolvable:$true] %s704
          %710 = dma.hbm_to_vmem [thread:$0]  %s17, 32, %s705, [#allocation21], 16, 16, 1
        $region80: #{tpu_custom_call.1} parent=11 // pred_fallthru
          _
        // Predicated region
        $region81: #{tpu_custom_call.1} parent=11 // pred_check
          %p711 = pneg %p444
        $region82: #{tpu_custom_call.1} parent=11 // pred_check_branch
          %713 = sbr.rel (%p711) target = $region84
        $region83: #{tpu_custom_call.1} parent=11 // pred_region
          _
        $region84: #{tpu_custom_call.1} parent=11 // pred_fallthru
          _
        // Predicated region
        $region85: #{tpu_custom_call.1} parent=11 // pred_check
          %p714 = pneg %p465
        $region86: #{tpu_custom_call.1} parent=11 // pred_check_branch
          %716 = sbr.rel (%p714) target = $region88
        $region87: #{tpu_custom_call.1} parent=11 // pred_region
          _
        $region88: #{tpu_custom_call.1} parent=11 // pred_fallthru
          _
        // Predicated region
        $region89: #{tpu_custom_call.1} parent=11 // pred_check
          %p717 = pneg %p486
        $region90: #{tpu_custom_call.1} parent=11 // pred_check_branch
          %719 = sbr.rel (%p717) target = $region92
        $region91: #{tpu_custom_call.1} parent=11 // pred_region
          _
        $region92: #{tpu_custom_call.1} parent=11 // pred_fallthru
          _
        // Predicated region
        $region93: #{tpu_custom_call.1} parent=11 // pred_check
          %p720 = pneg %p507
        $region94: #{tpu_custom_call.1} parent=11 // pred_check_branch
          %722 = sbr.rel (%p720) target = $region96
        $region95: #{tpu_custom_call.1} parent=11 // pred_region
          _
        $region96: #{tpu_custom_call.1} parent=11 // pred_fallthru
          _
      $region12: #{tpu_custom_call.1} parent=5 // pred_fallthru
        _
      %p723 = scmp.lt.s32.totalorder %s40, 2
      // Predicated region
      $region97: #{tpu_custom_call.1} parent=5 // pred_check
        %p724 = pneg %p723
      $region98: #{tpu_custom_call.1} parent=5 // pred_check_branch
        %726 = sbr.rel (%p724) target = $region100
      $region99: #{tpu_custom_call.1} parent=5 // pred_region
        // Predicated region
        $region101: #{tpu_custom_call.1} parent=99 // pred_check
          %p727 = pneg %p60
        $region102: #{tpu_custom_call.1} parent=99 // pred_check_branch
          %729 = sbr.rel (%p727) target = $region104
        $region103: #{tpu_custom_call.1} parent=99 // pred_region
          %s730 = sand.u32 %s50, 1
          %s731 = scalar_lea.sflag [#allocation3], %s730
          %s732 = sand.u32 %s50, 1
          %s733 = smul.addr %s732, 8
          %s734 = scalar_lea.vmem [#allocation2], %s733
          %s736 = ssub.s32 128, 128
          %737 = vsyncadd %s731, %s736
          %s738 = smul.addr %s40, 128
          %s739 = scalar_lea.hbm %s0, %s738
          %s741 = sshll.u32 %s734, 4
          %s742 = int_to_ptr.vmem [resolvable:$true] %s741
          %744 = dma.hbm_to_vmem [thread:$0]  %s739, 128, %s742, %s731
        $region104: #{tpu_custom_call.1} parent=99 // pred_fallthru
          _
      $region100: #{tpu_custom_call.1} parent=5 // pred_fallthru
        _
      %p745 = scmp.le.s32.totalorder 1, %s40
      %p746 = scmp.lt.s32.totalorder %s40, 3
      %p747 = pnand %p745, %p746
      %p748 = pneg %p747
      // Predicated region
      $region105: #{tpu_custom_call.1} parent=5 // pred_check
        _
      $region106: #{tpu_custom_call.1} parent=5 // pred_check_branch
        %750 = sbr.rel (%p747) target = $region108
      $region107: #{tpu_custom_call.1} parent=5 // pred_region
        %s751 = ssub.s32 %s40, 1
        %s752 = sand.u32 %s53, 1
        %s753 = scalar_lea.sflag [#allocation3], %s752
        %s754 = sand.u32 %s53, 1
        %s755 = smul.addr %s754, 8
        %s756 = scalar_lea.vmem [#allocation2], %s755
        // Predicated region
        $region109: #{tpu_custom_call.1} parent=107 // pred_check
          %p757 = pneg %p66
        $region110: #{tpu_custom_call.1} parent=107 // pred_check_branch
          %759 = sbr.rel (%p757) target = $region112
        $region111: #{tpu_custom_call.1} parent=107 // pred_region
          %760 = dma.done %s753, 128
        $region112: #{tpu_custom_call.1} parent=107 // pred_fallthru
          _
        // Predicated region
        $region113: #{tpu_custom_call.1} parent=107 // pred_check
          %p761 = pneg %p87
        $region114: #{tpu_custom_call.1} parent=107 // pred_check_branch
          %763 = sbr.rel (%p761) target = $region116
        $region115: #{tpu_custom_call.1} parent=107 // pred_region
          %764 = dma.done [#allocation6], 256
        $region116: #{tpu_custom_call.1} parent=107 // pred_fallthru
          _
        // Predicated region
        $region117: #{tpu_custom_call.1} parent=107 // pred_check
          %p765 = pneg %p108
        $region118: #{tpu_custom_call.1} parent=107 // pred_check_branch
          %767 = sbr.rel (%p765) target = $region120
        $region119: #{tpu_custom_call.1} parent=107 // pred_region
          %768 = dma.done [#allocation6], 16
        $region120: #{tpu_custom_call.1} parent=107 // pred_fallthru
          _
        // Predicated region
        $region121: #{tpu_custom_call.1} parent=107 // pred_check
          %p769 = pneg %p129
        $region122: #{tpu_custom_call.1} parent=107 // pred_check_branch
          %771 = sbr.rel (%p769) target = $region124
        $region123: #{tpu_custom_call.1} parent=107 // pred_region
          %772 = dma.done [#allocation9], 128
        $region124: #{tpu_custom_call.1} parent=107 // pred_fallthru
          _
        // Predicated region
        $region125: #{tpu_custom_call.1} parent=107 // pred_check
          %p773 = pneg %p150
        $region126: #{tpu_custom_call.1} parent=107 // pred_check_branch
          %775 = sbr.rel (%p773) target = $region128
        $region127: #{tpu_custom_call.1} parent=107 // pred_region
          %776 = dma.done [#allocation9], 16
        $region128: #{tpu_custom_call.1} parent=107 // pred_fallthru
          _
        // Predicated region
        $region129: #{tpu_custom_call.1} parent=107 // pred_check
          %p777 = pneg %p171
        $region130: #{tpu_custom_call.1} parent=107 // pred_check_branch
          %779 = sbr.rel (%p777) target = $region132
        $region131: #{tpu_custom_call.1} parent=107 // pred_region
          %780 = dma.done [#allocation12], 16
        $region132: #{tpu_custom_call.1} parent=107 // pred_fallthru
          _
        // Predicated region
        $region133: #{tpu_custom_call.1} parent=107 // pred_check
          %p781 = pneg %p297
        $region134: #{tpu_custom_call.1} parent=107 // pred_check_branch
          %783 = sbr.rel (%p781) target = $region136
        $region135: #{tpu_custom_call.1} parent=107 // pred_region
          %784 = dma.done [#allocation12], 32
        $region136: #{tpu_custom_call.1} parent=107 // pred_fallthru
          _
        // Predicated region
        $region137: #{tpu_custom_call.1} parent=107 // pred_check
          %p785 = pneg %p318
        $region138: #{tpu_custom_call.1} parent=107 // pred_check_branch
          %787 = sbr.rel (%p785) target = $region140
        $region139: #{tpu_custom_call.1} parent=107 // pred_region
          %788 = dma.done [#allocation15], 1024
        $region140: #{tpu_custom_call.1} parent=107 // pred_fallthru
          _
        // Predicated region
        $region141: #{tpu_custom_call.1} parent=107 // pred_check
          %p789 = pneg %p339
        $region142: #{tpu_custom_call.1} parent=107 // pred_check_branch
          %791 = sbr.rel (%p789) target = $region144
        $region143: #{tpu_custom_call.1} parent=107 // pred_region
          %792 = dma.done [#allocation15], 32
        $region144: #{tpu_custom_call.1} parent=107 // pred_fallthru
          _
        // Predicated region
        $region145: #{tpu_custom_call.1} parent=107 // pred_check
          %p793 = pneg %p360
        $region146: #{tpu_custom_call.1} parent=107 // pred_check_branch
          %795 = sbr.rel (%p793) target = $region148
        $region147: #{tpu_custom_call.1} parent=107 // pred_region
          %796 = dma.done [#allocation18], 32
        $region148: #{tpu_custom_call.1} parent=107 // pred_fallthru
          _
        // Predicated region
        $region149: #{tpu_custom_call.1} parent=107 // pred_check
          %p797 = pneg %p381
        $region150: #{tpu_custom_call.1} parent=107 // pred_check_branch
          %799 = sbr.rel (%p797) target = $region152
        $region151: #{tpu_custom_call.1} parent=107 // pred_region
          %800 = dma.done [#allocation18], 32
        $region152: #{tpu_custom_call.1} parent=107 // pred_fallthru
          _
        // Predicated region
        $region153: #{tpu_custom_call.1} parent=107 // pred_check
          %p801 = pneg %p402
        $region154: #{tpu_custom_call.1} parent=107 // pred_check_branch
          %803 = sbr.rel (%p801) target = $region156
        $region155: #{tpu_custom_call.1} parent=107 // pred_region
          %804 = dma.done [#allocation21], 1024
        $region156: #{tpu_custom_call.1} parent=107 // pred_fallthru
          _
        // Predicated region
        $region157: #{tpu_custom_call.1} parent=107 // pred_check
          %p805 = pneg %p423
        $region158: #{tpu_custom_call.1} parent=107 // pred_check_branch
          %807 = sbr.rel (%p805) target = $region160
        $region159: #{tpu_custom_call.1} parent=107 // pred_region
          %808 = dma.done [#allocation21], 32
        $region160: #{tpu_custom_call.1} parent=107 // pred_fallthru
          _
        %s809 = sand.u32 %s53, 1
        %s810 = scalar_lea.sflag [#allocation3], %s809
        %s811 = sand.u32 %s53, 1
        %s812 = smul.addr %s811, 8
        %s813 = scalar_lea.vmem [#allocation2], %s812
        %p814 = pneg %p66
        %p815 = pneg %p63
        %p816 = pneg %p87
        %p817 = pneg %p84
        %p818 = pneg %p108
        %p819 = pneg %p105
        %p820 = pneg %p129
        %p821 = pneg %p126
        %p822 = pneg %p150
        %p823 = pneg %p147
        %p824 = pneg %p171
        %p825 = pneg %p168
        %p826 = pneg %p192
        %p827 = pneg %p189
        %p828 = pneg %p213
        %p829 = pneg %p210
        %p830 = pneg %p234
        %p831 = pneg %p231
        %p832 = pneg %p255
        %p833 = pneg %p252
        %p834 = pneg %p276
        %p835 = pneg %p273
        %p836 = pneg %p297
        %p837 = pneg %p294
        %p838 = pneg %p318
        %p839 = pneg %p315
        %p840 = pneg %p339
        %p841 = pneg %p336
        %p842 = pneg %p360
        %p843 = pneg %p357
        %p844 = pneg %p381
        %p845 = pneg %p378
        %p846 = pneg %p402
        %p847 = pneg %p399
        %p848 = pneg %p423
        %p849 = pneg %p420
        %p850 = pneg %p444
        %p851 = pneg %p441
        %p852 = pneg %p465
        %p853 = pneg %p462
        %p854 = pneg %p486
        %p855 = pneg %p483
        %p856 = pneg %p507
        %p857 = pneg %p504
        %p858 = pneg %p533
        %p859 = pneg %p530
        %s860 = sand.u32 %s520, 1
        %s861 = scalar_lea.sflag [#allocation4], %s860
        %s862 = sand.u32 %s520, 1
        %s863 = smul.addr %s862, 8
        %s864 = scalar_lea.vmem [#allocation23], %s863
        %v865 = vld [vmem:[%s756] sm:$0xff]
        %v866 = vld [vmem:[#allocation10] sm:$0x1]
        %v867 = vld [vmem:[#allocation11] sm:$0x1]
        %v868 = vld [vmem:[#allocation5] sm:$0xff]
        %v869 = vld [vmem:[#allocation5 + $0x8] sm:$0xff]
        %v870 = vld [vmem:[#allocation7] sm:$0x1]
        %v872 = vlaneseq
        %v873 = vshrl.u32 %v872, 7
        %v874 = vsub.s32 0, %v873
        %v875 = vrot.slane %v870, %v874
        %vm877 = vcmask 130048
        %v879 = vsel %vm877, %v865, 0
        %881 = vmatprep.subr.mxu0 0.0
        %882 = vmatpush1.msra.mxu0 %v868
        %883 = vmatprep.subr.mxu0 0.0
        %884 = vmatpush1.msra.mxu0 %v869
        %885 = vmatprep.subr.mxu0 0.0
        %886 = vmatpush1.msra.mxu0 0.0
        %887 = vmatprep.subr.mxu0 0.0
        %888 = vmatpush1.msra.mxu0 0.0
        %889 = vmatprep.subr.mxu0 0.0
        %890 = vmatpush1.msra.mxu0 0.0
        %891 = vmatprep.subr.mxu0 0.0
        %892 = vmatpush1.msra.mxu0 0.0
        %893 = vmatprep.subr.mxu0 0.0
        %894 = vmatpush1.msra.mxu0 0.0
        %895 = vmatprep.subr.mxu0 0.0
        %896 = vmatpush1.msra.mxu0 0.0
        %897 = vmatprep.subr.mxu0 0.0
        %898 = vmatpush1.msra.mxu0 0.0
        %899 = vmatprep.subr.mxu0 0.0
        %900 = vmatpush1.msra.mxu0 0.0
        %901 = vmatprep.subr.mxu0 0.0
        %902 = vmatpush1.msra.mxu0 0.0
        %903 = vmatprep.subr.mxu0 0.0
        %904 = vmatpush1.msra.mxu0 0.0
        %905 = vmatprep.subr.mxu0 0.0
        %906 = vmatpush1.msra.mxu0 0.0
        %907 = vmatprep.subr.mxu0 0.0
        %908 = vmatpush1.msra.mxu0 0.0
        %909 = vmatprep.subr.mxu0 0.0
        %910 = vmatpush1.msra.mxu0 0.0
        %911 = vmatprep.subr.mxu0 0.0
        %912 = vmatpush1.msra.mxu0 0.0
        %913 = vmatprep.subr.mxu0 0.0
        %914 = vmatpush1.msra.mxu0 0.0
        %915 = vmatprep.subr.mxu0 0.0
        %916 = vmatpush1.msra.mxu0 0.0
        %917 = vmatprep.subr.mxu0 0.0
        %918 = vmatpush1.msra.mxu0 0.0
        %919 = vmatprep.subr.mxu0 0.0
        %920 = vmatpush1.msra.mxu0 0.0
        %921 = vmatprep.subr.mxu0 0.0
        %922 = vmatpush1.msra.mxu0 0.0
        %923 = vmatprep.subr.mxu0 0.0
        %924 = vmatpush1.msra.mxu0 0.0
        %925 = vmatprep.subr.mxu0 0.0
        %926 = vmatpush1.msra.mxu0 0.0
        %927 = vmatprep.subr.mxu0 0.0
        %928 = vmatpush1.msra.mxu0 0.0
        %929 = vmatprep.subr.mxu0 0.0
        %930 = vmatpush1.msra.mxu0 0.0
        %931 = vmatprep.subr.mxu0 0.0
        %932 = vmatpush1.msra.mxu0 0.0
        %933 = vmatprep.subr.mxu0 0.0
        %934 = vmatpush1.msra.mxu0 0.0
        %935 = vmatprep.subr.mxu0 0.0
        %936 = vmatpush1.msra.mxu0 0.0
        %937 = vmatprep.subr.mxu0 0.0
        %938 = vmatpush1.msra.mxu0 0.0
        %939 = vmatprep.subr.mxu0 0.0
        %940 = vmatpush1.msra.mxu0 0.0
        %941 = vmatprep.subr.mxu0 0.0
        %942 = vmatpush1.msra.mxu0 0.0
        %943 = vmatprep.subr.mxu0 0.0
        %944 = vmatpush1.msra.mxu0 0.0
        %945 = vmatprep.mubr.f32.mxu0 0.0
        %946 = vmatmul.mubr.f32.gmra.mrb[0].mxu0 %v879
        %v947 = vpop.f32.mrb[0].mxu0
        %v948 = vadd.f32 %v875, %v947
        %v949 = vpop.f32.mrb[0].mxu0
        %950 = vdwg.mxu0
        %vm951 = vcmask 261120
        %v952 = vsel %vm951, %v948, 0.0
        %953 = vadd.xlane.f32.xlu0 %v952
        %v954 = vpop.xlane.xlu0 %953
        %v955 = vrcp.pop 32.0
        %v956 = vmul.f32 %v954, %v955
        %v957 = vsub.f32 %v948, %v956
        %v958 = vmul.f32 %v957, %v957
        %v959 = vsel %vm951, %v958, 0.0
        %960 = vadd.xlane.f32.xlu0 %v959
        %v961 = vpop.xlane.xlu0 %960
        %v962 = vmul.f32 %v961, %v955
        %v963 = vadd.f32 %v962, 1e-12
        %v964 = vrsqrt.pop %v963
        %v965 = vmul.f32 %v963, %v964
        %vm966 = vcmp.eq.f32.partialorder %v963, inf
        %v967 = vsel %vm966, %v963, %v965
        %vm968 = vcmp.eq.f32.partialorder %v963, 0.0
        %v969 = vand.u32 %v963, 2147483648
        %v970 = vsel %vm968, %v969, %v967
        %v971 = vrcp.pop %v970
        %v972 = vmul.f32 %v957, %v971
        %v974 = vlaneseq
        %v975 = vshrl.u32 %v974, 7
        %v976 = vsub.s32 0, %v975
        %v977 = vrot.slane %v866, %v976
        %v979 = vmul.f32 %v977, %v972
        %v981 = vlaneseq
        %v982 = vshrl.u32 %v981, 7
        %v983 = vsub.s32 0, %v982
        %v984 = vrot.slane %v867, %v983
        %v986 = vadd.f32 %v979, %v984
        %v987 = vld [vmem:[#allocation8] sm:$0xff]
        %v988 = vadd.f32 %v986, %v987
        %v989 = vsel %vm951, %v988, 0.0
        %990 = vadd.xlane.f32.xlu0 %v989
        %v991 = vpop.xlane.xlu0 %990
        %v992 = vmul.f32 %v991, %v955
        %v993 = vsub.f32 %v988, %v992
        %v994 = vmul.f32 %v993, %v993
        %v995 = vsel %vm951, %v994, 0.0
        %996 = vadd.xlane.f32.xlu0 %v995
        %v997 = vpop.xlane.xlu0 %996
        %v998 = vmul.f32 %v997, %v955
        %v999 = vadd.f32 %v998, 1e-12
        %v1000 = vrsqrt.pop %v999
        %v1001 = vmul.f32 %v999, %v1000
        %vm1002 = vcmp.eq.f32.partialorder %v999, inf
        %v1003 = vsel %vm1002, %v999, %v1001
        %vm1004 = vcmp.eq.f32.partialorder %v999, 0.0
        %v1005 = vand.u32 %v999, 2147483648
        %v1006 = vsel %vm1004, %v1005, %v1003
        %v1007 = vrcp.pop %v1006
        %v1008 = vmul.f32 %v993, %v1007
        %v1009 = vmul.f32 %v977, %v1008
        %v1010 = vadd.f32 %v1009, %v984
        %v1011 = vld [vmem:[%s6] sm:$0xff]
        %v1012 = vld [vmem:[%s6 + $0x8] sm:$0xff]
        %v1013 = vld [vmem:[%s6 + $0x10] sm:$0xff]
        %v1014 = vld [vmem:[%s6 + $0x18] sm:$0xff]
        %v1015 = vld [vmem:[%s7] sm:$0x1]
        %v1017 = vlaneseq
        %v1018 = vshrl.u32 %v1017, 7
        %v1019 = vsub.s32 0, %v1018
        %v1020 = vrot.slane %v1015, %v1019
        %v1023 = vsel %vm951, %v1010, 0
        %1025 = vmatprep.subr.mxu0 0.0
        %1026 = vmatpush1.msra.mxu0 %v1011
        %1027 = vmatprep.subr.mxu0 0.0
        %1028 = vmatpush1.msra.mxu0 %v1012
        %1029 = vmatprep.subr.mxu0 0.0
        %1030 = vmatpush1.msra.mxu0 %v1013
        %1031 = vmatprep.subr.mxu0 0.0
        %1032 = vmatpush1.msra.mxu0 %v1014
        %1033 = vmatprep.subr.mxu0 0.0
        %1034 = vmatpush1.msra.mxu0 0.0
        %1035 = vmatprep.subr.mxu0 0.0
        %1036 = vmatpush1.msra.mxu0 0.0
        %1037 = vmatprep.subr.mxu0 0.0
        %1038 = vmatpush1.msra.mxu0 0.0
        %1039 = vmatprep.subr.mxu0 0.0
        %1040 = vmatpush1.msra.mxu0 0.0
        %1041 = vmatprep.subr.mxu0 0.0
        %1042 = vmatpush1.msra.mxu0 0.0
        %1043 = vmatprep.subr.mxu0 0.0
        %1044 = vmatpush1.msra.mxu0 0.0
        %1045 = vmatprep.subr.mxu0 0.0
        %1046 = vmatpush1.msra.mxu0 0.0
        %1047 = vmatprep.subr.mxu0 0.0
        %1048 = vmatpush1.msra.mxu0 0.0
        %1049 = vmatprep.subr.mxu0 0.0
        %1050 = vmatpush1.msra.mxu0 0.0
        %1051 = vmatprep.subr.mxu0 0.0
        %1052 = vmatpush1.msra.mxu0 0.0
        %1053 = vmatprep.subr.mxu0 0.0
        %1054 = vmatpush1.msra.mxu0 0.0
        %1055 = vmatprep.subr.mxu0 0.0
        %1056 = vmatpush1.msra.mxu0 0.0
        %1057 = vmatprep.subr.mxu0 0.0
        %1058 = vmatpush1.msra.mxu0 0.0
        %1059 = vmatprep.subr.mxu0 0.0
        %1060 = vmatpush1.msra.mxu0 0.0
        %1061 = vmatprep.subr.mxu0 0.0
        %1062 = vmatpush1.msra.mxu0 0.0
        %1063 = vmatprep.subr.mxu0 0.0
        %1064 = vmatpush1.msra.mxu0 0.0
        %1065 = vmatprep.subr.mxu0 0.0
        %1066 = vmatpush1.msra.mxu0 0.0
        %1067 = vmatprep.subr.mxu0 0.0
        %1068 = vmatpush1.msra.mxu0 0.0
        %1069 = vmatprep.subr.mxu0 0.0
        %1070 = vmatpush1.msra.mxu0 0.0
        %1071 = vmatprep.subr.mxu0 0.0
        %1072 = vmatpush1.msra.mxu0 0.0
        %1073 = vmatprep.subr.mxu0 0.0
        %1074 = vmatpush1.msra.mxu0 0.0
        %1075 = vmatprep.subr.mxu0 0.0
        %1076 = vmatpush1.msra.mxu0 0.0
        %1077 = vmatprep.subr.mxu0 0.0
        %1078 = vmatpush1.msra.mxu0 0.0
        %1079 = vmatprep.subr.mxu0 0.0
        %1080 = vmatpush1.msra.mxu0 0.0
        %1081 = vmatprep.subr.mxu0 0.0
        %1082 = vmatpush1.msra.mxu0 0.0
        %1083 = vmatprep.subr.mxu0 0.0
        %1084 = vmatpush1.msra.mxu0 0.0
        %1085 = vmatprep.subr.mxu0 0.0
        %1086 = vmatpush1.msra.mxu0 0.0
        %1087 = vmatprep.subr.mxu0 0.0
        %1088 = vmatpush1.msra.mxu0 0.0
        %1089 = vmatprep.mubr.f32.mxu0 0.0
        %1090 = vmatmul.mubr.f32.gmra.mrb[0].mxu0 %v1023
        %v1091 = vpop.f32.mrb[0].mxu0
        %v1092 = vadd.f32 %v1020, %v1091
        %v1093 = vpop.f32.mrb[0].mxu0
        %1094 = vdwg.mxu0
        %v1095 = vld [vmem:[%s8] sm:$0xff]
        %v1096 = vld [vmem:[%s8 + $0x8] sm:$0xff]
        %v1097 = vld [vmem:[%s8 + $0x10] sm:$0xff]
        %v1098 = vld [vmem:[%s8 + $0x18] sm:$0xff]
        %v1099 = vld [vmem:[%s9] sm:$0x1]
        %v1101 = vlaneseq
        %v1102 = vshrl.u32 %v1101, 7
        %v1103 = vsub.s32 0, %v1102
        %v1104 = vrot.slane %v1099, %v1103
        %1106 = vmatprep.subr.mxu0 0.0
        %1107 = vmatpush1.msra.mxu0 %v1095
        %1108 = vmatprep.subr.mxu0 0.0
        %1109 = vmatpush1.msra.mxu0 %v1096
        %1110 = vmatprep.subr.mxu0 0.0
        %1111 = vmatpush1.msra.mxu0 %v1097
        %1112 = vmatprep.subr.mxu0 0.0
        %1113 = vmatpush1.msra.mxu0 %v1098
        %1114 = vmatprep.subr.mxu0 0.0
        %1115 = vmatpush1.msra.mxu0 0.0
        %1116 = vmatprep.subr.mxu0 0.0
        %1117 = vmatpush1.msra.mxu0 0.0
        %1118 = vmatprep.subr.mxu0 0.0
        %1119 = vmatpush1.msra.mxu0 0.0
        %1120 = vmatprep.subr.mxu0 0.0
        %1121 = vmatpush1.msra.mxu0 0.0
        %1122 = vmatprep.subr.mxu0 0.0
        %1123 = vmatpush1.msra.mxu0 0.0
        %1124 = vmatprep.subr.mxu0 0.0
        %1125 = vmatpush1.msra.mxu0 0.0
        %1126 = vmatprep.subr.mxu0 0.0
        %1127 = vmatpush1.msra.mxu0 0.0
        %1128 = vmatprep.subr.mxu0 0.0
        %1129 = vmatpush1.msra.mxu0 0.0
        %1130 = vmatprep.subr.mxu0 0.0
        %1131 = vmatpush1.msra.mxu0 0.0
        %1132 = vmatprep.subr.mxu0 0.0
        %1133 = vmatpush1.msra.mxu0 0.0
        %1134 = vmatprep.subr.mxu0 0.0
        %1135 = vmatpush1.msra.mxu0 0.0
        %1136 = vmatprep.subr.mxu0 0.0
        %1137 = vmatpush1.msra.mxu0 0.0
        %1138 = vmatprep.subr.mxu0 0.0
        %1139 = vmatpush1.msra.mxu0 0.0
        %1140 = vmatprep.subr.mxu0 0.0
        %1141 = vmatpush1.msra.mxu0 0.0
        %1142 = vmatprep.subr.mxu0 0.0
        %1143 = vmatpush1.msra.mxu0 0.0
        %1144 = vmatprep.subr.mxu0 0.0
        %1145 = vmatpush1.msra.mxu0 0.0
        %1146 = vmatprep.subr.mxu0 0.0
        %1147 = vmatpush1.msra.mxu0 0.0
        %1148 = vmatprep.subr.mxu0 0.0
        %1149 = vmatpush1.msra.mxu0 0.0
        %1150 = vmatprep.subr.mxu0 0.0
        %1151 = vmatpush1.msra.mxu0 0.0
        %1152 = vmatprep.subr.mxu0 0.0
        %1153 = vmatpush1.msra.mxu0 0.0
        %1154 = vmatprep.subr.mxu0 0.0
        %1155 = vmatpush1.msra.mxu0 0.0
        %1156 = vmatprep.subr.mxu0 0.0
        %1157 = vmatpush1.msra.mxu0 0.0
        %1158 = vmatprep.subr.mxu0 0.0
        %1159 = vmatpush1.msra.mxu0 0.0
        %1160 = vmatprep.subr.mxu0 0.0
        %1161 = vmatpush1.msra.mxu0 0.0
        %1162 = vmatprep.subr.mxu0 0.0
        %1163 = vmatpush1.msra.mxu0 0.0
        %1164 = vmatprep.subr.mxu0 0.0
        %1165 = vmatpush1.msra.mxu0 0.0
        %1166 = vmatprep.subr.mxu0 0.0
        %1167 = vmatpush1.msra.mxu0 0.0
        %1168 = vmatprep.subr.mxu0 0.0
        %1169 = vmatpush1.msra.mxu0 0.0
        %1170 = vmatprep.mubr.f32.mxu0 0.0
        %1171 = vmatmul.mubr.f32.gmra.mrb[0].mxu0 %v1023
        %v1172 = vpop.f32.mrb[0].mxu0
        %v1173 = vadd.f32 %v1104, %v1172
        %v1174 = vpop.f32.mrb[0].mxu0
        %1175 = vdwg.mxu0
        %v1176 = vld [vmem:[%s10] sm:$0xff]
        %v1177 = vld [vmem:[%s10 + $0x8] sm:$0xff]
        %v1178 = vld [vmem:[%s10 + $0x10] sm:$0xff]
        %v1179 = vld [vmem:[%s10 + $0x18] sm:$0xff]
        %v1180 = vld [vmem:[#allocation13] sm:$0x1]
        %v1182 = vlaneseq
        %v1183 = vshrl.u32 %v1182, 7
        %v1184 = vsub.s32 0, %v1183
        %v1185 = vrot.slane %v1180, %v1184
        %1187 = vmatprep.subr.mxu0 0.0
        %1188 = vmatpush1.msra.mxu0 %v1176
        %1189 = vmatprep.subr.mxu0 0.0
        %1190 = vmatpush1.msra.mxu0 %v1177
        %1191 = vmatprep.subr.mxu0 0.0
        %1192 = vmatpush1.msra.mxu0 %v1178
        %1193 = vmatprep.subr.mxu0 0.0
        %1194 = vmatpush1.msra.mxu0 %v1179
        %1195 = vmatprep.subr.mxu0 0.0
        %1196 = vmatpush1.msra.mxu0 0.0
        %1197 = vmatprep.subr.mxu0 0.0
        %1198 = vmatpush1.msra.mxu0 0.0
        %1199 = vmatprep.subr.mxu0 0.0
        %1200 = vmatpush1.msra.mxu0 0.0
        %1201 = vmatprep.subr.mxu0 0.0
        %1202 = vmatpush1.msra.mxu0 0.0
        %1203 = vmatprep.subr.mxu0 0.0
        %1204 = vmatpush1.msra.mxu0 0.0
        %1205 = vmatprep.subr.mxu0 0.0
        %1206 = vmatpush1.msra.mxu0 0.0
        %1207 = vmatprep.subr.mxu0 0.0
        %1208 = vmatpush1.msra.mxu0 0.0
        %1209 = vmatprep.subr.mxu0 0.0
        %1210 = vmatpush1.msra.mxu0 0.0
        %1211 = vmatprep.subr.mxu0 0.0
        %1212 = vmatpush1.msra.mxu0 0.0
        %1213 = vmatprep.subr.mxu0 0.0
        %1214 = vmatpush1.msra.mxu0 0.0
        %1215 = vmatprep.subr.mxu0 0.0
        %1216 = vmatpush1.msra.mxu0 0.0
        %1217 = vmatprep.subr.mxu0 0.0
        %1218 = vmatpush1.msra.mxu0 0.0
        %1219 = vmatprep.subr.mxu0 0.0
        %1220 = vmatpush1.msra.mxu0 0.0
        %1221 = vmatprep.subr.mxu0 0.0
        %1222 = vmatpush1.msra.mxu0 0.0
        %1223 = vmatprep.subr.mxu0 0.0
        %1224 = vmatpush1.msra.mxu0 0.0
        %1225 = vmatprep.subr.mxu0 0.0
        %1226 = vmatpush1.msra.mxu0 0.0
        %1227 = vmatprep.subr.mxu0 0.0
        %1228 = vmatpush1.msra.mxu0 0.0
        %1229 = vmatprep.subr.mxu0 0.0
        %1230 = vmatpush1.msra.mxu0 0.0
        %1231 = vmatprep.subr.mxu0 0.0
        %1232 = vmatpush1.msra.mxu0 0.0
        %1233 = vmatprep.subr.mxu0 0.0
        %1234 = vmatpush1.msra.mxu0 0.0
        %1235 = vmatprep.subr.mxu0 0.0
        %1236 = vmatpush1.msra.mxu0 0.0
        %1237 = vmatprep.subr.mxu0 0.0
        %1238 = vmatpush1.msra.mxu0 0.0
        %1239 = vmatprep.subr.mxu0 0.0
        %1240 = vmatpush1.msra.mxu0 0.0
        %1241 = vmatprep.subr.mxu0 0.0
        %1242 = vmatpush1.msra.mxu0 0.0
        %1243 = vmatprep.subr.mxu0 0.0
        %1244 = vmatpush1.msra.mxu0 0.0
        %1245 = vmatprep.subr.mxu0 0.0
        %1246 = vmatpush1.msra.mxu0 0.0
        %1247 = vmatprep.subr.mxu0 0.0
        %1248 = vmatpush1.msra.mxu0 0.0
        %1249 = vmatprep.subr.mxu0 0.0
        %1250 = vmatpush1.msra.mxu0 0.0
        %1251 = vmatprep.mubr.f32.mxu0 0.0
        %1252 = vmatmul.mubr.f32.gmra.mrb[0].mxu0 %v1023
        %v1253 = vpop.f32.mrb[0].mxu0
        %v1254 = vadd.f32 %v1185, %v1253
        %v1255 = vpop.f32.mrb[0].mxu0
        %1256 = vdwg.mxu0
        %1258 = vrot.lane.b32.xlu0 %v1092, 120
        %v1259 = vpop.permute.xlu0 %1258
        %1260 = vrot.lane.b32.xlu0 %v1092, 112
        %v1261 = vpop.permute.xlu0 %1260
        %1262 = vrot.lane.b32.xlu0 %v1092, 104
        %v1263 = vpop.permute.xlu0 %1262
        %1265 = vrot.lane.b32.xlu0 %v1173, 120
        %v1266 = vpop.permute.xlu0 %1265
        %1267 = vrot.lane.b32.xlu0 %v1173, 112
        %v1268 = vpop.permute.xlu0 %1267
        %1269 = vrot.lane.b32.xlu0 %v1173, 104
        %v1270 = vpop.permute.xlu0 %1269
        %1272 = vrot.lane.b32.xlu0 %v1254, 120
        %v1273 = vpop.permute.xlu0 %1272
        %1275 = vrot.lane.b32.xlu0 %v1254, 112
        %v1276 = vpop.permute.xlu0 %1275
        %1278 = vrot.lane.b32.xlu0 %v1254, 104
        %v1279 = vpop.permute.xlu0 %1278
        %vm1281 = vcmask 64512
        %v1282 = vsel %vm1281, %v1092, 0
        %v1284 = vsel %vm1281, %v1173, 0
        %1286 = vmatprep.subr.mxu0 0.0
        %1287 = vmatpush1.xpose.msra.mxu0 %v1284
        %1288 = vmatprep.subr.mxu0 0.0
        %1289 = vmatpush1.xpose.msra.mxu0 0.0
        %1290 = vmatprep.subr.mxu0 0.0
        %1291 = vmatpush1.xpose.msra.mxu0 0.0
        %1292 = vmatprep.subr.mxu0 0.0
        %1293 = vmatpush1.xpose.msra.mxu0 0.0
        %1294 = vmatprep.subr.mxu0 0.0
        %1295 = vmatpush1.xpose.msra.mxu0 0.0
        %1296 = vmatprep.subr.mxu0 0.0
        %1297 = vmatpush1.xpose.msra.mxu0 0.0
        %1298 = vmatprep.subr.mxu0 0.0
        %1299 = vmatpush1.xpose.msra.mxu0 0.0
        %1300 = vmatprep.subr.mxu0 0.0
        %1301 = vmatpush1.xpose.msra.mxu0 0.0
        %1302 = vmatprep.subr.mxu0 0.0
        %1303 = vmatpush1.xpose.msra.mxu0 0.0
        %1304 = vmatprep.subr.mxu0 0.0
        %1305 = vmatpush1.xpose.msra.mxu0 0.0
        %1306 = vmatprep.subr.mxu0 0.0
        %1307 = vmatpush1.xpose.msra.mxu0 0.0
        %1308 = vmatprep.subr.mxu0 0.0
        %1309 = vmatpush1.xpose.msra.mxu0 0.0
        %1310 = vmatprep.subr.mxu0 0.0
        %1311 = vmatpush1.xpose.msra.mxu0 0.0
        %1312 = vmatprep.subr.mxu0 0.0
        %1313 = vmatpush1.xpose.msra.mxu0 0.0
        %1314 = vmatprep.subr.mxu0 0.0
        %1315 = vmatpush1.xpose.msra.mxu0 0.0
        %1316 = vmatprep.subr.mxu0 0.0
        %1317 = vmatpush1.xpose.msra.mxu0 0.0
        %1318 = vmatprep.subr.mxu0 0.0
        %1319 = vmatpush1.xpose.msra.mxu0 0.0
        %1320 = vmatprep.subr.mxu0 0.0
        %1321 = vmatpush1.xpose.msra.mxu0 0.0
        %1322 = vmatprep.subr.mxu0 0.0
        %1323 = vmatpush1.xpose.msra.mxu0 0.0
        %1324 = vmatprep.subr.mxu0 0.0
        %1325 = vmatpush1.xpose.msra.mxu0 0.0
        %1326 = vmatprep.subr.mxu0 0.0
        %1327 = vmatpush1.xpose.msra.mxu0 0.0
        %1328 = vmatprep.subr.mxu0 0.0
        %1329 = vmatpush1.xpose.msra.mxu0 0.0
        %1330 = vmatprep.subr.mxu0 0.0
        %1331 = vmatpush1.xpose.msra.mxu0 0.0
        %1332 = vmatprep.subr.mxu0 0.0
        %1333 = vmatpush1.xpose.msra.mxu0 0.0
        %1334 = vmatprep.subr.mxu0 0.0
        %1335 = vmatpush1.xpose.msra.mxu0 0.0
        %1336 = vmatprep.subr.mxu0 0.0
        %1337 = vmatpush1.xpose.msra.mxu0 0.0
        %1338 = vmatprep.subr.mxu0 0.0
        %1339 = vmatpush1.xpose.msra.mxu0 0.0
        %1340 = vmatprep.subr.mxu0 0.0
        %1341 = vmatpush1.xpose.msra.mxu0 0.0
        %1342 = vmatprep.subr.mxu0 0.0
        %1343 = vmatpush1.xpose.msra.mxu0 0.0
        %1344 = vmatprep.subr.mxu0 0.0
        %1345 = vmatpush1.xpose.msra.mxu0 0.0
        %1346 = vmatprep.subr.mxu0 0.0
        %1347 = vmatpush1.xpose.msra.mxu0 0.0
        %1348 = vmatprep.subr.mxu0 0.0
        %1349 = vmatpush1.xpose.msra.mxu0 0.0
        %1350 = vmatprep.mubr.f32.mxu0 0.0
        %1351 = vmatmul.mubr.f32.gmra.mrb[0].mxu0 %v1282
        %v1352 = vpop.f32.mrb[0].mxu0
        %v1353 = vadd.f32 0.0, %v1352
        %v1354 = vpop.f32.mrb[0].mxu0
        %1355 = vdwg.mxu0
        %v1356 = vsel %vm1281, %v1259, 0
        %v1358 = vsel %vm1281, %v1266, 0
        %1360 = vmatprep.subr.mxu0 0.0
        %1361 = vmatpush1.xpose.msra.mxu0 %v1358
        %1362 = vmatprep.subr.mxu0 0.0
        %1363 = vmatpush1.xpose.msra.mxu0 0.0
        %1364 = vmatprep.subr.mxu0 0.0
        %1365 = vmatpush1.xpose.msra.mxu0 0.0
        %1366 = vmatprep.subr.mxu0 0.0
        %1367 = vmatpush1.xpose.msra.mxu0 0.0
        %1368 = vmatprep.subr.mxu0 0.0
        %1369 = vmatpush1.xpose.msra.mxu0 0.0
        %1370 = vmatprep.subr.mxu0 0.0
        %1371 = vmatpush1.xpose.msra.mxu0 0.0
        %1372 = vmatprep.subr.mxu0 0.0
        %1373 = vmatpush1.xpose.msra.mxu0 0.0
        %1374 = vmatprep.subr.mxu0 0.0
        %1375 = vmatpush1.xpose.msra.mxu0 0.0
        %1376 = vmatprep.subr.mxu0 0.0
        %1377 = vmatpush1.xpose.msra.mxu0 0.0
        %1378 = vmatprep.subr.mxu0 0.0
        %1379 = vmatpush1.xpose.msra.mxu0 0.0
        %1380 = vmatprep.subr.mxu0 0.0
        %1381 = vmatpush1.xpose.msra.mxu0 0.0
        %1382 = vmatprep.subr.mxu0 0.0
        %1383 = vmatpush1.xpose.msra.mxu0 0.0
        %1384 = vmatprep.subr.mxu0 0.0
        %1385 = vmatpush1.xpose.msra.mxu0 0.0
        %1386 = vmatprep.subr.mxu0 0.0
        %1387 = vmatpush1.xpose.msra.mxu0 0.0
        %1388 = vmatprep.subr.mxu0 0.0
        %1389 = vmatpush1.xpose.msra.mxu0 0.0
        %1390 = vmatprep.subr.mxu0 0.0
        %1391 = vmatpush1.xpose.msra.mxu0 0.0
        %1392 = vmatprep.subr.mxu0 0.0
        %1393 = vmatpush1.xpose.msra.mxu0 0.0
        %1394 = vmatprep.subr.mxu0 0.0
        %1395 = vmatpush1.xpose.msra.mxu0 0.0
        %1396 = vmatprep.subr.mxu0 0.0
        %1397 = vmatpush1.xpose.msra.mxu0 0.0
        %1398 = vmatprep.subr.mxu0 0.0
        %1399 = vmatpush1.xpose.msra.mxu0 0.0
        %1400 = vmatprep.subr.mxu0 0.0
        %1401 = vmatpush1.xpose.msra.mxu0 0.0
        %1402 = vmatprep.subr.mxu0 0.0
        %1403 = vmatpush1.xpose.msra.mxu0 0.0
        %1404 = vmatprep.subr.mxu0 0.0
        %1405 = vmatpush1.xpose.msra.mxu0 0.0
        %1406 = vmatprep.subr.mxu0 0.0
        %1407 = vmatpush1.xpose.msra.mxu0 0.0
        %1408 = vmatprep.subr.mxu0 0.0
        %1409 = vmatpush1.xpose.msra.mxu0 0.0
        %1410 = vmatprep.subr.mxu0 0.0
        %1411 = vmatpush1.xpose.msra.mxu0 0.0
        %1412 = vmatprep.subr.mxu0 0.0
        %1413 = vmatpush1.xpose.msra.mxu0 0.0
        %1414 = vmatprep.subr.mxu0 0.0
        %1415 = vmatpush1.xpose.msra.mxu0 0.0
        %1416 = vmatprep.subr.mxu0 0.0
        %1417 = vmatpush1.xpose.msra.mxu0 0.0
        %1418 = vmatprep.subr.mxu0 0.0
        %1419 = vmatpush1.xpose.msra.mxu0 0.0
        %1420 = vmatprep.subr.mxu0 0.0
        %1421 = vmatpush1.xpose.msra.mxu0 0.0
        %1422 = vmatprep.subr.mxu0 0.0
        %1423 = vmatpush1.xpose.msra.mxu0 0.0
        %1424 = vmatprep.mubr.f32.mxu0 0.0
        %1425 = vmatmul.mubr.f32.gmra.mrb[0].mxu0 %v1356
        %v1426 = vpop.f32.mrb[0].mxu0
        %v1427 = vadd.f32 0.0, %v1426
        %v1428 = vpop.f32.mrb[0].mxu0
        %1429 = vdwg.mxu0
        %v1430 = vsel %vm1281, %v1261, 0
        %v1432 = vsel %vm1281, %v1268, 0
        %1434 = vmatprep.subr.mxu0 0.0
        %1435 = vmatpush1.xpose.msra.mxu0 %v1432
        %1436 = vmatprep.subr.mxu0 0.0
        %1437 = vmatpush1.xpose.msra.mxu0 0.0
        %1438 = vmatprep.subr.mxu0 0.0
        %1439 = vmatpush1.xpose.msra.mxu0 0.0
        %1440 = vmatprep.subr.mxu0 0.0
        %1441 = vmatpush1.xpose.msra.mxu0 0.0
        %1442 = vmatprep.subr.mxu0 0.0
        %1443 = vmatpush1.xpose.msra.mxu0 0.0
        %1444 = vmatprep.subr.mxu0 0.0
        %1445 = vmatpush1.xpose.msra.mxu0 0.0
        %1446 = vmatprep.subr.mxu0 0.0
        %1447 = vmatpush1.xpose.msra.mxu0 0.0
        %1448 = vmatprep.subr.mxu0 0.0
        %1449 = vmatpush1.xpose.msra.mxu0 0.0
        %1450 = vmatprep.subr.mxu0 0.0
        %1451 = vmatpush1.xpose.msra.mxu0 0.0
        %1452 = vmatprep.subr.mxu0 0.0
        %1453 = vmatpush1.xpose.msra.mxu0 0.0
        %1454 = vmatprep.subr.mxu0 0.0
        %1455 = vmatpush1.xpose.msra.mxu0 0.0
        %1456 = vmatprep.subr.mxu0 0.0
        %1457 = vmatpush1.xpose.msra.mxu0 0.0
        %1458 = vmatprep.subr.mxu0 0.0
        %1459 = vmatpush1.xpose.msra.mxu0 0.0
        %1460 = vmatprep.subr.mxu0 0.0
        %1461 = vmatpush1.xpose.msra.mxu0 0.0
        %1462 = vmatprep.subr.mxu0 0.0
        %1463 = vmatpush1.xpose.msra.mxu0 0.0
        %1464 = vmatprep.subr.mxu0 0.0
        %1465 = vmatpush1.xpose.msra.mxu0 0.0
        %1466 = vmatprep.subr.mxu0 0.0
        %1467 = vmatpush1.xpose.msra.mxu0 0.0
        %1468 = vmatprep.subr.mxu0 0.0
        %1469 = vmatpush1.xpose.msra.mxu0 0.0
        %1470 = vmatprep.subr.mxu0 0.0
        %1471 = vmatpush1.xpose.msra.mxu0 0.0
        %1472 = vmatprep.subr.mxu0 0.0
        %1473 = vmatpush1.xpose.msra.mxu0 0.0
        %1474 = vmatprep.subr.mxu0 0.0
        %1475 = vmatpush1.xpose.msra.mxu0 0.0
        %1476 = vmatprep.subr.mxu0 0.0
        %1477 = vmatpush1.xpose.msra.mxu0 0.0
        %1478 = vmatprep.subr.mxu0 0.0
        %1479 = vmatpush1.xpose.msra.mxu0 0.0
        %1480 = vmatprep.subr.mxu0 0.0
        %1481 = vmatpush1.xpose.msra.mxu0 0.0
        %1482 = vmatprep.subr.mxu0 0.0
        %1483 = vmatpush1.xpose.msra.mxu0 0.0
        %1484 = vmatprep.subr.mxu0 0.0
        %1485 = vmatpush1.xpose.msra.mxu0 0.0
        %1486 = vmatprep.subr.mxu0 0.0
        %1487 = vmatpush1.xpose.msra.mxu0 0.0
        %1488 = vmatprep.subr.mxu0 0.0
        %1489 = vmatpush1.xpose.msra.mxu0 0.0
        %1490 = vmatprep.subr.mxu0 0.0
        %1491 = vmatpush1.xpose.msra.mxu0 0.0
        %1492 = vmatprep.subr.mxu0 0.0
        %1493 = vmatpush1.xpose.msra.mxu0 0.0
        %1494 = vmatprep.subr.mxu0 0.0
        %1495 = vmatpush1.xpose.msra.mxu0 0.0
        %1496 = vmatprep.subr.mxu0 0.0
        %1497 = vmatpush1.xpose.msra.mxu0 0.0
        %1498 = vmatprep.mubr.f32.mxu0 0.0
        %1499 = vmatmul.mubr.f32.gmra.mrb[0].mxu0 %v1430
        %v1500 = vpop.f32.mrb[0].mxu0
        %v1501 = vadd.f32 0.0, %v1500
        %v1502 = vpop.f32.mrb[0].mxu0
        %1503 = vdwg.mxu0
        %v1504 = vsel %vm1281, %v1263, 0
        %v1506 = vsel %vm1281, %v1270, 0
        %1508 = vmatprep.subr.mxu0 0.0
        %1509 = vmatpush1.xpose.msra.mxu0 %v1506
        %1510 = vmatprep.subr.mxu0 0.0
        %1511 = vmatpush1.xpose.msra.mxu0 0.0
        %1512 = vmatprep.subr.mxu0 0.0
        %1513 = vmatpush1.xpose.msra.mxu0 0.0
        %1514 = vmatprep.subr.mxu0 0.0
        %1515 = vmatpush1.xpose.msra.mxu0 0.0
        %1516 = vmatprep.subr.mxu0 0.0
        %1517 = vmatpush1.xpose.msra.mxu0 0.0
        %1518 = vmatprep.subr.mxu0 0.0
        %1519 = vmatpush1.xpose.msra.mxu0 0.0
        %1520 = vmatprep.subr.mxu0 0.0
        %1521 = vmatpush1.xpose.msra.mxu0 0.0
        %1522 = vmatprep.subr.mxu0 0.0
        %1523 = vmatpush1.xpose.msra.mxu0 0.0
        %1524 = vmatprep.subr.mxu0 0.0
        %1525 = vmatpush1.xpose.msra.mxu0 0.0
        %1526 = vmatprep.subr.mxu0 0.0
        %1527 = vmatpush1.xpose.msra.mxu0 0.0
        %1528 = vmatprep.subr.mxu0 0.0
        %1529 = vmatpush1.xpose.msra.mxu0 0.0
        %1530 = vmatprep.subr.mxu0 0.0
        %1531 = vmatpush1.xpose.msra.mxu0 0.0
        %1532 = vmatprep.subr.mxu0 0.0
        %1533 = vmatpush1.xpose.msra.mxu0 0.0
        %1534 = vmatprep.subr.mxu0 0.0
        %1535 = vmatpush1.xpose.msra.mxu0 0.0
        %1536 = vmatprep.subr.mxu0 0.0
        %1537 = vmatpush1.xpose.msra.mxu0 0.0
        %1538 = vmatprep.subr.mxu0 0.0
        %1539 = vmatpush1.xpose.msra.mxu0 0.0
        %1540 = vmatprep.subr.mxu0 0.0
        %1541 = vmatpush1.xpose.msra.mxu0 0.0
        %1542 = vmatprep.subr.mxu0 0.0
        %1543 = vmatpush1.xpose.msra.mxu0 0.0
        %1544 = vmatprep.subr.mxu0 0.0
        %1545 = vmatpush1.xpose.msra.mxu0 0.0
        %1546 = vmatprep.subr.mxu0 0.0
        %1547 = vmatpush1.xpose.msra.mxu0 0.0
        %1548 = vmatprep.subr.mxu0 0.0
        %1549 = vmatpush1.xpose.msra.mxu0 0.0
        %1550 = vmatprep.subr.mxu0 0.0
        %1551 = vmatpush1.xpose.msra.mxu0 0.0
        %1552 = vmatprep.subr.mxu0 0.0
        %1553 = vmatpush1.xpose.msra.mxu0 0.0
        %1554 = vmatprep.subr.mxu0 0.0
        %1555 = vmatpush1.xpose.msra.mxu0 0.0
        %1556 = vmatprep.subr.mxu0 0.0
        %1557 = vmatpush1.xpose.msra.mxu0 0.0
        %1558 = vmatprep.subr.mxu0 0.0
        %1559 = vmatpush1.xpose.msra.mxu0 0.0
        %1560 = vmatprep.subr.mxu0 0.0
        %1561 = vmatpush1.xpose.msra.mxu0 0.0
        %1562 = vmatprep.subr.mxu0 0.0
        %1563 = vmatpush1.xpose.msra.mxu0 0.0
        %1564 = vmatprep.subr.mxu0 0.0
        %1565 = vmatpush1.xpose.msra.mxu0 0.0
        %1566 = vmatprep.subr.mxu0 0.0
        %1567 = vmatpush1.xpose.msra.mxu0 0.0
        %1568 = vmatprep.subr.mxu0 0.0
        %1569 = vmatpush1.xpose.msra.mxu0 0.0
        %1570 = vmatprep.subr.mxu0 0.0
        %1571 = vmatpush1.xpose.msra.mxu0 0.0
        %1572 = vmatprep.mubr.f32.mxu0 0.0
        %1573 = vmatmul.mubr.f32.gmra.mrb[0].mxu0 %v1504
        %v1574 = vpop.f32.mrb[0].mxu0
        %v1575 = vadd.f32 0.0, %v1574
        %v1576 = vpop.f32.mrb[0].mxu0
        %1577 = vdwg.mxu0
        %v1578 = vmul.f32 %v1353, 0.35355338
        %v1579 = vmul.f32 %v1427, 0.35355338
        %v1580 = vmul.f32 %v1501, 0.35355338
        %v1581 = vmul.f32 %v1575, 0.35355338
        %v1582 = vsel %vm1281, %v1578, -inf
        %1583 = vmax.xlane.f32.xlu0 %v1582
        %v1584 = vpop.xlane.xlu0 %1583
        %v1585 = vsel %vm1281, %v1579, -inf
        %1586 = vmax.xlane.f32.xlu0 %v1585
        %v1587 = vpop.xlane.xlu0 %1586
        %v1588 = vsel %vm1281, %v1580, -inf
        %1589 = vmax.xlane.f32.xlu0 %v1588
        %v1590 = vpop.xlane.xlu0 %1589
        %v1591 = vsel %vm1281, %v1581, -inf
        %1592 = vmax.xlane.f32.xlu0 %v1591
        %v1593 = vpop.xlane.xlu0 %1592
        %v1594 = vsub.f32 %v1578, %v1584
        %v1595 = vsub.f32 %v1579, %v1587
        %v1596 = vsub.f32 %v1580, %v1590
        %v1597 = vsub.f32 %v1581, %v1593
        %v1598 = vmul.f32 %v1594, 1.442695
        %v1599 = vpow.pop %v1598
        %v1600 = vmul.f32 %v1595, 1.442695
        %v1601 = vpow.pop %v1600
        %v1602 = vmul.f32 %v1596, 1.442695
        %v1603 = vpow.pop %v1602
        %v1604 = vmul.f32 %v1597, 1.442695
        %v1605 = vpow.pop %v1604
        %v1606 = vsel %vm1281, %v1599, 0.0
        %1607 = vadd.xlane.f32.xlu0 %v1606
        %v1608 = vpop.xlane.xlu0 %1607
        %v1609 = vsel %vm1281, %v1601, 0.0
        %1610 = vadd.xlane.f32.xlu0 %v1609
        %v1611 = vpop.xlane.xlu0 %1610
        %v1612 = vsel %vm1281, %v1603, 0.0
        %1613 = vadd.xlane.f32.xlu0 %v1612
        %v1614 = vpop.xlane.xlu0 %1613
        %v1615 = vsel %vm1281, %v1605, 0.0
        %1616 = vadd.xlane.f32.xlu0 %v1615
        %v1617 = vpop.xlane.xlu0 %1616
        %v1618 = vrcp.pop %v1608
        %v1619 = vmul.f32 %v1599, %v1618
        %v1620 = vrcp.pop %v1611
        %v1621 = vmul.f32 %v1601, %v1620
        %v1622 = vrcp.pop %v1614
        %v1623 = vmul.f32 %v1603, %v1622
        %v1624 = vrcp.pop %v1617
        %v1625 = vmul.f32 %v1605, %v1624
        %v1627 = vsel %vm1281, %v1619, 0
        %1629 = vmatprep.subr.mxu0 0.0
        %1630 = vmatpush1.msra.mxu0 %v1254
        %1631 = vmatprep.subr.mxu0 0.0
        %1632 = vmatpush1.msra.mxu0 0.0
        %1633 = vmatprep.subr.mxu0 0.0
        %1634 = vmatpush1.msra.mxu0 0.0
        %1635 = vmatprep.subr.mxu0 0.0
        %1636 = vmatpush1.msra.mxu0 0.0
        %1637 = vmatprep.subr.mxu0 0.0
        %1638 = vmatpush1.msra.mxu0 0.0
        %1639 = vmatprep.subr.mxu0 0.0
        %1640 = vmatpush1.msra.mxu0 0.0
        %1641 = vmatprep.subr.mxu0 0.0
        %1642 = vmatpush1.msra.mxu0 0.0
        %1643 = vmatprep.subr.mxu0 0.0
        %1644 = vmatpush1.msra.mxu0 0.0
        %1645 = vmatprep.subr.mxu0 0.0
        %1646 = vmatpush1.msra.mxu0 0.0
        %1647 = vmatprep.subr.mxu0 0.0
        %1648 = vmatpush1.msra.mxu0 0.0
        %1649 = vmatprep.subr.mxu0 0.0
        %1650 = vmatpush1.msra.mxu0 0.0
        %1651 = vmatprep.subr.mxu0 0.0
        %1652 = vmatpush1.msra.mxu0 0.0
        %1653 = vmatprep.subr.mxu0 0.0
        %1654 = vmatpush1.msra.mxu0 0.0
        %1655 = vmatprep.subr.mxu0 0.0
        %1656 = vmatpush1.msra.mxu0 0.0
        %1657 = vmatprep.subr.mxu0 0.0
        %1658 = vmatpush1.msra.mxu0 0.0
        %1659 = vmatprep.subr.mxu0 0.0
        %1660 = vmatpush1.msra.mxu0 0.0
        %1661 = vmatprep.subr.mxu0 0.0
        %1662 = vmatpush1.msra.mxu0 0.0
        %1663 = vmatprep.subr.mxu0 0.0
        %1664 = vmatpush1.msra.mxu0 0.0
        %1665 = vmatprep.subr.mxu0 0.0
        %1666 = vmatpush1.msra.mxu0 0.0
        %1667 = vmatprep.subr.mxu0 0.0
        %1668 = vmatpush1.msra.mxu0 0.0
        %1669 = vmatprep.subr.mxu0 0.0
        %1670 = vmatpush1.msra.mxu0 0.0
        %1671 = vmatprep.subr.mxu0 0.0
        %1672 = vmatpush1.msra.mxu0 0.0
        %1673 = vmatprep.subr.mxu0 0.0
        %1674 = vmatpush1.msra.mxu0 0.0
        %1675 = vmatprep.subr.mxu0 0.0
        %1676 = vmatpush1.msra.mxu0 0.0
        %1677 = vmatprep.subr.mxu0 0.0
        %1678 = vmatpush1.msra.mxu0 0.0
        %1679 = vmatprep.subr.mxu0 0.0
        %1680 = vmatpush1.msra.mxu0 0.0
        %1681 = vmatprep.subr.mxu0 0.0
        %1682 = vmatpush1.msra.mxu0 0.0
        %1683 = vmatprep.subr.mxu0 0.0
        %1684 = vmatpush1.msra.mxu0 0.0
        %1685 = vmatprep.subr.mxu0 0.0
        %1686 = vmatpush1.msra.mxu0 0.0
        %1687 = vmatprep.subr.mxu0 0.0
        %1688 = vmatpush1.msra.mxu0 0.0
        %1689 = vmatprep.subr.mxu0 0.0
        %1690 = vmatpush1.msra.mxu0 0.0
        %1691 = vmatprep.subr.mxu0 0.0
        %1692 = vmatpush1.msra.mxu0 0.0
        %1693 = vmatprep.mubr.f32.mxu0 0.0
        %1694 = vmatmul.mubr.f32.gmra.mrb[0].mxu0 %v1627
        %v1695 = vpop.f32.mrb[0].mxu0
        %v1696 = vadd.f32 0.0, %v1695
        %v1697 = vpop.f32.mrb[0].mxu0
        %1698 = vdwg.mxu0
        %v1700 = vsel %vm1281, %v1621, 0
        %1702 = vmatprep.subr.mxu0 0.0
        %1703 = vmatpush1.msra.mxu0 %v1273
        %1704 = vmatprep.subr.mxu0 0.0
        %1705 = vmatpush1.msra.mxu0 0.0
        %1706 = vmatprep.subr.mxu0 0.0
        %1707 = vmatpush1.msra.mxu0 0.0
        %1708 = vmatprep.subr.mxu0 0.0
        %1709 = vmatpush1.msra.mxu0 0.0
        %1710 = vmatprep.subr.mxu0 0.0
        %1711 = vmatpush1.msra.mxu0 0.0
        %1712 = vmatprep.subr.mxu0 0.0
        %1713 = vmatpush1.msra.mxu0 0.0
        %1714 = vmatprep.subr.mxu0 0.0
        %1715 = vmatpush1.msra.mxu0 0.0
        %1716 = vmatprep.subr.mxu0 0.0
        %1717 = vmatpush1.msra.mxu0 0.0
        %1718 = vmatprep.subr.mxu0 0.0
        %1719 = vmatpush1.msra.mxu0 0.0
        %1720 = vmatprep.subr.mxu0 0.0
        %1721 = vmatpush1.msra.mxu0 0.0
        %1722 = vmatprep.subr.mxu0 0.0
        %1723 = vmatpush1.msra.mxu0 0.0
        %1724 = vmatprep.subr.mxu0 0.0
        %1725 = vmatpush1.msra.mxu0 0.0
        %1726 = vmatprep.subr.mxu0 0.0
        %1727 = vmatpush1.msra.mxu0 0.0
        %1728 = vmatprep.subr.mxu0 0.0
        %1729 = vmatpush1.msra.mxu0 0.0
        %1730 = vmatprep.subr.mxu0 0.0
        %1731 = vmatpush1.msra.mxu0 0.0
        %1732 = vmatprep.subr.mxu0 0.0
        %1733 = vmatpush1.msra.mxu0 0.0
        %1734 = vmatprep.subr.mxu0 0.0
        %1735 = vmatpush1.msra.mxu0 0.0
        %1736 = vmatprep.subr.mxu0 0.0
        %1737 = vmatpush1.msra.mxu0 0.0
        %1738 = vmatprep.subr.mxu0 0.0
        %1739 = vmatpush1.msra.mxu0 0.0
        %1740 = vmatprep.subr.mxu0 0.0
        %1741 = vmatpush1.msra.mxu0 0.0
        %1742 = vmatprep.subr.mxu0 0.0
        %1743 = vmatpush1.msra.mxu0 0.0
        %1744 = vmatprep.subr.mxu0 0.0
        %1745 = vmatpush1.msra.mxu0 0.0
        %1746 = vmatprep.subr.mxu0 0.0
        %1747 = vmatpush1.msra.mxu0 0.0
        %1748 = vmatprep.subr.mxu0 0.0
        %1749 = vmatpush1.msra.mxu0 0.0
        %1750 = vmatprep.subr.mxu0 0.0
        %1751 = vmatpush1.msra.mxu0 0.0
        %1752 = vmatprep.subr.mxu0 0.0
        %1753 = vmatpush1.msra.mxu0 0.0
        %1754 = vmatprep.subr.mxu0 0.0
        %1755 = vmatpush1.msra.mxu0 0.0
        %1756 = vmatprep.subr.mxu0 0.0
        %1757 = vmatpush1.msra.mxu0 0.0
        %1758 = vmatprep.subr.mxu0 0.0
        %1759 = vmatpush1.msra.mxu0 0.0
        %1760 = vmatprep.subr.mxu0 0.0
        %1761 = vmatpush1.msra.mxu0 0.0
        %1762 = vmatprep.subr.mxu0 0.0
        %1763 = vmatpush1.msra.mxu0 0.0
        %1764 = vmatprep.subr.mxu0 0.0
        %1765 = vmatpush1.msra.mxu0 0.0
        %1766 = vmatprep.mubr.f32.mxu0 0.0
        %1767 = vmatmul.mubr.f32.gmra.mrb[0].mxu0 %v1700
        %v1768 = vpop.f32.mrb[0].mxu0
        %v1769 = vadd.f32 0.0, %v1768
        %v1770 = vpop.f32.mrb[0].mxu0
        %1771 = vdwg.mxu0
        %v1773 = vsel %vm1281, %v1623, 0
        %1775 = vmatprep.subr.mxu0 0.0
        %1776 = vmatpush1.msra.mxu0 %v1276
        %1777 = vmatprep.subr.mxu0 0.0
        %1778 = vmatpush1.msra.mxu0 0.0
        %1779 = vmatprep.subr.mxu0 0.0
        %1780 = vmatpush1.msra.mxu0 0.0
        %1781 = vmatprep.subr.mxu0 0.0
        %1782 = vmatpush1.msra.mxu0 0.0
        %1783 = vmatprep.subr.mxu0 0.0
        %1784 = vmatpush1.msra.mxu0 0.0
        %1785 = vmatprep.subr.mxu0 0.0
        %1786 = vmatpush1.msra.mxu0 0.0
        %1787 = vmatprep.subr.mxu0 0.0
        %1788 = vmatpush1.msra.mxu0 0.0
        %1789 = vmatprep.subr.mxu0 0.0
        %1790 = vmatpush1.msra.mxu0 0.0
        %1791 = vmatprep.subr.mxu0 0.0
        %1792 = vmatpush1.msra.mxu0 0.0
        %1793 = vmatprep.subr.mxu0 0.0
        %1794 = vmatpush1.msra.mxu0 0.0
        %1795 = vmatprep.subr.mxu0 0.0
        %1796 = vmatpush1.msra.mxu0 0.0
        %1797 = vmatprep.subr.mxu0 0.0
        %1798 = vmatpush1.msra.mxu0 0.0
        %1799 = vmatprep.subr.mxu0 0.0
        %1800 = vmatpush1.msra.mxu0 0.0
        %1801 = vmatprep.subr.mxu0 0.0
        %1802 = vmatpush1.msra.mxu0 0.0
        %1803 = vmatprep.subr.mxu0 0.0
        %1804 = vmatpush1.msra.mxu0 0.0
        %1805 = vmatprep.subr.mxu0 0.0
        %1806 = vmatpush1.msra.mxu0 0.0
        %1807 = vmatprep.subr.mxu0 0.0
        %1808 = vmatpush1.msra.mxu0 0.0
        %1809 = vmatprep.subr.mxu0 0.0
        %1810 = vmatpush1.msra.mxu0 0.0
        %1811 = vmatprep.subr.mxu0 0.0
        %1812 = vmatpush1.msra.mxu0 0.0
        %1813 = vmatprep.subr.mxu0 0.0
        %1814 = vmatpush1.msra.mxu0 0.0
        %1815 = vmatprep.subr.mxu0 0.0
        %1816 = vmatpush1.msra.mxu0 0.0
        %1817 = vmatprep.subr.mxu0 0.0
        %1818 = vmatpush1.msra.mxu0 0.0
        %1819 = vmatprep.subr.mxu0 0.0
        %1820 = vmatpush1.msra.mxu0 0.0
        %1821 = vmatprep.subr.mxu0 0.0
        %1822 = vmatpush1.msra.mxu0 0.0
        %1823 = vmatprep.subr.mxu0 0.0
        %1824 = vmatpush1.msra.mxu0 0.0
        %1825 = vmatprep.subr.mxu0 0.0
        %1826 = vmatpush1.msra.mxu0 0.0
        %1827 = vmatprep.subr.mxu0 0.0
        %1828 = vmatpush1.msra.mxu0 0.0
        %1829 = vmatprep.subr.mxu0 0.0
        %1830 = vmatpush1.msra.mxu0 0.0
        %1831 = vmatprep.subr.mxu0 0.0
        %1832 = vmatpush1.msra.mxu0 0.0
        %1833 = vmatprep.subr.mxu0 0.0
        %1834 = vmatpush1.msra.mxu0 0.0
        %1835 = vmatprep.subr.mxu0 0.0
        %1836 = vmatpush1.msra.mxu0 0.0
        %1837 = vmatprep.subr.mxu0 0.0
        %1838 = vmatpush1.msra.mxu0 0.0
        %1839 = vmatprep.mubr.f32.mxu0 0.0
        %1840 = vmatmul.mubr.f32.gmra.mrb[0].mxu0 %v1773
        %v1841 = vpop.f32.mrb[0].mxu0
        %v1842 = vadd.f32 0.0, %v1841
        %v1843 = vpop.f32.mrb[0].mxu0
        %1844 = vdwg.mxu0
        %v1846 = vsel %vm1281, %v1625, 0
        %1848 = vmatprep.subr.mxu0 0.0
        %1849 = vmatpush1.msra.mxu0 %v1279
        %1850 = vmatprep.subr.mxu0 0.0
        %1851 = vmatpush1.msra.mxu0 0.0
        %1852 = vmatprep.subr.mxu0 0.0
        %1853 = vmatpush1.msra.mxu0 0.0
        %1854 = vmatprep.subr.mxu0 0.0
        %1855 = vmatpush1.msra.mxu0 0.0
        %1856 = vmatprep.subr.mxu0 0.0
        %1857 = vmatpush1.msra.mxu0 0.0
        %1858 = vmatprep.subr.mxu0 0.0
        %1859 = vmatpush1.msra.mxu0 0.0
        %1860 = vmatprep.subr.mxu0 0.0
        %1861 = vmatpush1.msra.mxu0 0.0
        %1862 = vmatprep.subr.mxu0 0.0
        %1863 = vmatpush1.msra.mxu0 0.0
        %1864 = vmatprep.subr.mxu0 0.0
        %1865 = vmatpush1.msra.mxu0 0.0
        %1866 = vmatprep.subr.mxu0 0.0
        %1867 = vmatpush1.msra.mxu0 0.0
        %1868 = vmatprep.subr.mxu0 0.0
        %1869 = vmatpush1.msra.mxu0 0.0
        %1870 = vmatprep.subr.mxu0 0.0
        %1871 = vmatpush1.msra.mxu0 0.0
        %1872 = vmatprep.subr.mxu0 0.0
        %1873 = vmatpush1.msra.mxu0 0.0
        %1874 = vmatprep.subr.mxu0 0.0
        %1875 = vmatpush1.msra.mxu0 0.0
        %1876 = vmatprep.subr.mxu0 0.0
        %1877 = vmatpush1.msra.mxu0 0.0
        %1878 = vmatprep.subr.mxu0 0.0
        %1879 = vmatpush1.msra.mxu0 0.0
        %1880 = vmatprep.subr.mxu0 0.0
        %1881 = vmatpush1.msra.mxu0 0.0
        %1882 = vmatprep.subr.mxu0 0.0
        %1883 = vmatpush1.msra.mxu0 0.0
        %1884 = vmatprep.subr.mxu0 0.0
        %1885 = vmatpush1.msra.mxu0 0.0
        %1886 = vmatprep.subr.mxu0 0.0
        %1887 = vmatpush1.msra.mxu0 0.0
        %1888 = vmatprep.subr.mxu0 0.0
        %1889 = vmatpush1.msra.mxu0 0.0
        %1890 = vmatprep.subr.mxu0 0.0
        %1891 = vmatpush1.msra.mxu0 0.0
        %1892 = vmatprep.subr.mxu0 0.0
        %1893 = vmatpush1.msra.mxu0 0.0
        %1894 = vmatprep.subr.mxu0 0.0
        %1895 = vmatpush1.msra.mxu0 0.0
        %1896 = vmatprep.subr.mxu0 0.0
        %1897 = vmatpush1.msra.mxu0 0.0
        %1898 = vmatprep.subr.mxu0 0.0
        %1899 = vmatpush1.msra.mxu0 0.0
        %1900 = vmatprep.subr.mxu0 0.0
        %1901 = vmatpush1.msra.mxu0 0.0
        %1902 = vmatprep.subr.mxu0 0.0
        %1903 = vmatpush1.msra.mxu0 0.0
        %1904 = vmatprep.subr.mxu0 0.0
        %1905 = vmatpush1.msra.mxu0 0.0
        %1906 = vmatprep.subr.mxu0 0.0
        %1907 = vmatpush1.msra.mxu0 0.0
        %1908 = vmatprep.subr.mxu0 0.0
        %1909 = vmatpush1.msra.mxu0 0.0
        %1910 = vmatprep.subr.mxu0 0.0
        %1911 = vmatpush1.msra.mxu0 0.0
        %1912 = vmatprep.mubr.f32.mxu0 0.0
        %1913 = vmatmul.mubr.f32.gmra.mrb[0].mxu0 %v1846
        %v1914 = vpop.f32.mrb[0].mxu0
        %v1915 = vadd.f32 0.0, %v1914
        %v1916 = vpop.f32.mrb[0].mxu0
        %1917 = vdwg.mxu0
        %1919 = vrot.lane.b32.xlu0 %v1769, 8
        %v1920 = vpop.permute.xlu0 %1919
        %1923 = vrot.lane.b32.xlu0 %v1842, 16
        %v1924 = vpop.permute.xlu0 %1923
        %1927 = vrot.lane.b32.xlu0 %v1915, 24
        %v1928 = vpop.permute.xlu0 %1927
        %v1930 = vsel %vm1281, %v1696, %v1920
        %v1931 = vsel %vm877, %v1930, %v1924
        %vm1932 = vcmask 195584
        %v1933 = vsel %vm1932, %v1931, %v1928
        %v1934 = vld [vmem:[#allocation14] sm:$0xff]
        %v1935 = vld [vmem:[#allocation14 + $0x8] sm:$0xff]
        %v1936 = vld [vmem:[#allocation14 + $0x10] sm:$0xff]
        %v1937 = vld [vmem:[#allocation14 + $0x18] sm:$0xff]
        %v1938 = vld [vmem:[#allocation16] sm:$0x1]
        %v1940 = vlaneseq
        %v1941 = vshrl.u32 %v1940, 7
        %v1942 = vsub.s32 0, %v1941
        %v1943 = vrot.slane %v1938, %v1942
        %v1946 = vsel %vm951, %v1933, 0
        %1948 = vmatprep.subr.mxu0 0.0
        %1949 = vmatpush1.msra.mxu0 %v1934
        %1950 = vmatprep.subr.mxu0 0.0
        %1951 = vmatpush1.msra.mxu0 %v1935
        %1952 = vmatprep.subr.mxu0 0.0
        %1953 = vmatpush1.msra.mxu0 %v1936
        %1954 = vmatprep.subr.mxu0 0.0
        %1955 = vmatpush1.msra.mxu0 %v1937
        %1956 = vmatprep.subr.mxu0 0.0
        %1957 = vmatpush1.msra.mxu0 0.0
        %1958 = vmatprep.subr.mxu0 0.0
        %1959 = vmatpush1.msra.mxu0 0.0
        %1960 = vmatprep.subr.mxu0 0.0
        %1961 = vmatpush1.msra.mxu0 0.0
        %1962 = vmatprep.subr.mxu0 0.0
        %1963 = vmatpush1.msra.mxu0 0.0
        %1964 = vmatprep.subr.mxu0 0.0
        %1965 = vmatpush1.msra.mxu0 0.0
        %1966 = vmatprep.subr.mxu0 0.0
        %1967 = vmatpush1.msra.mxu0 0.0
        %1968 = vmatprep.subr.mxu0 0.0
        %1969 = vmatpush1.msra.mxu0 0.0
        %1970 = vmatprep.subr.mxu0 0.0
        %1971 = vmatpush1.msra.mxu0 0.0
        %1972 = vmatprep.subr.mxu0 0.0
        %1973 = vmatpush1.msra.mxu0 0.0
        %1974 = vmatprep.subr.mxu0 0.0
        %1975 = vmatpush1.msra.mxu0 0.0
        %1976 = vmatprep.subr.mxu0 0.0
        %1977 = vmatpush1.msra.mxu0 0.0
        %1978 = vmatprep.subr.mxu0 0.0
        %1979 = vmatpush1.msra.mxu0 0.0
        %1980 = vmatprep.subr.mxu0 0.0
        %1981 = vmatpush1.msra.mxu0 0.0
        %1982 = vmatprep.subr.mxu0 0.0
        %1983 = vmatpush1.msra.mxu0 0.0
        %1984 = vmatprep.subr.mxu0 0.0
        %1985 = vmatpush1.msra.mxu0 0.0
        %1986 = vmatprep.subr.mxu0 0.0
        %1987 = vmatpush1.msra.mxu0 0.0
        %1988 = vmatprep.subr.mxu0 0.0
        %1989 = vmatpush1.msra.mxu0 0.0
        %1990 = vmatprep.subr.mxu0 0.0
        %1991 = vmatpush1.msra.mxu0 0.0
        %1992 = vmatprep.subr.mxu0 0.0
        %1993 = vmatpush1.msra.mxu0 0.0
        %1994 = vmatprep.subr.mxu0 0.0
        %1995 = vmatpush1.msra.mxu0 0.0
        %1996 = vmatprep.subr.mxu0 0.0
        %1997 = vmatpush1.msra.mxu0 0.0
        %1998 = vmatprep.subr.mxu0 0.0
        %1999 = vmatpush1.msra.mxu0 0.0
        %2000 = vmatprep.subr.mxu0 0.0
        %2001 = vmatpush1.msra.mxu0 0.0
        %2002 = vmatprep.subr.mxu0 0.0
        %2003 = vmatpush1.msra.mxu0 0.0
        %2004 = vmatprep.subr.mxu0 0.0
        %2005 = vmatpush1.msra.mxu0 0.0
        %2006 = vmatprep.subr.mxu0 0.0
        %2007 = vmatpush1.msra.mxu0 0.0
        %2008 = vmatprep.subr.mxu0 0.0
        %2009 = vmatpush1.msra.mxu0 0.0
        %2010 = vmatprep.subr.mxu0 0.0
        %2011 = vmatpush1.msra.mxu0 0.0
        %2012 = vmatprep.mubr.f32.mxu0 0.0
        %2013 = vmatmul.mubr.f32.gmra.mrb[0].mxu0 %v1946
        %v2014 = vpop.f32.mrb[0].mxu0
        %v2015 = vadd.f32 %v1943, %v2014
        %v2016 = vpop.f32.mrb[0].mxu0
        %2017 = vdwg.mxu0
        %v2018 = vadd.f32 %v1933, %v2015
        %v2019 = vld [vmem:[#allocation17] sm:$0x1]
        %v2020 = vld [vmem:[#allocation19] sm:$0x1]
        %v2021 = vsel %vm951, %v2018, 0.0
        %2022 = vadd.xlane.f32.xlu0 %v2021
        %v2023 = vpop.xlane.xlu0 %2022
        %v2024 = vmul.f32 %v2023, %v955
        %v2025 = vsub.f32 %v2018, %v2024
        %v2026 = vmul.f32 %v2025, %v2025
        %v2027 = vsel %vm951, %v2026, 0.0
        %2028 = vadd.xlane.f32.xlu0 %v2027
        %v2029 = vpop.xlane.xlu0 %2028
        %v2030 = vmul.f32 %v2029, %v955
        %v2031 = vadd.f32 %v2030, 1e-12
        %v2032 = vrsqrt.pop %v2031
        %v2033 = vmul.f32 %v2031, %v2032
        %vm2034 = vcmp.eq.f32.partialorder %v2031, inf
        %v2035 = vsel %vm2034, %v2031, %v2033
        %vm2036 = vcmp.eq.f32.partialorder %v2031, 0.0
        %v2037 = vand.u32 %v2031, 2147483648
        %v2038 = vsel %vm2036, %v2037, %v2035
        %v2039 = vrcp.pop %v2038
        %v2040 = vmul.f32 %v2025, %v2039
        %v2042 = vlaneseq
        %v2043 = vshrl.u32 %v2042, 7
        %v2044 = vsub.s32 0, %v2043
        %v2045 = vrot.slane %v2019, %v2044
        %v2047 = vmul.f32 %v2045, %v2040
        %v2049 = vlaneseq
        %v2050 = vshrl.u32 %v2049, 7
        %v2051 = vsub.s32 0, %v2050
        %v2052 = vrot.slane %v2020, %v2051
        %v2054 = vadd.f32 %v2047, %v2052
        %v2055 = vld [vmem:[#allocation20] sm:$0xff]
        %v2056 = vld [vmem:[#allocation20 + $0x8] sm:$0xff]
        %v2057 = vld [vmem:[#allocation20 + $0x10] sm:$0xff]
        %v2058 = vld [vmem:[#allocation20 + $0x18] sm:$0xff]
        %v2059 = vld [vmem:[#allocation22] sm:$0x1]
        %v2061 = vlaneseq
        %v2062 = vshrl.u32 %v2061, 7
        %v2063 = vsub.s32 0, %v2062
        %v2064 = vrot.slane %v2059, %v2063
        %v2067 = vsel %vm951, %v2054, 0
        %2069 = vmatprep.subr.mxu0 0.0
        %2070 = vmatpush1.msra.mxu0 %v2055
        %2071 = vmatprep.subr.mxu0 0.0
        %2072 = vmatpush1.msra.mxu0 %v2056
        %2073 = vmatprep.subr.mxu0 0.0
        %2074 = vmatpush1.msra.mxu0 %v2057
        %2075 = vmatprep.subr.mxu0 0.0
        %2076 = vmatpush1.msra.mxu0 %v2058
        %2077 = vmatprep.subr.mxu0 0.0
        %2078 = vmatpush1.msra.mxu0 0.0
        %2079 = vmatprep.subr.mxu0 0.0
        %2080 = vmatpush1.msra.mxu0 0.0
        %2081 = vmatprep.subr.mxu0 0.0
        %2082 = vmatpush1.msra.mxu0 0.0
        %2083 = vmatprep.subr.mxu0 0.0
        %2084 = vmatpush1.msra.mxu0 0.0
        %2085 = vmatprep.subr.mxu0 0.0
        %2086 = vmatpush1.msra.mxu0 0.0
        %2087 = vmatprep.subr.mxu0 0.0
        %2088 = vmatpush1.msra.mxu0 0.0
        %2089 = vmatprep.subr.mxu0 0.0
        %2090 = vmatpush1.msra.mxu0 0.0
        %2091 = vmatprep.subr.mxu0 0.0
        %2092 = vmatpush1.msra.mxu0 0.0
        %2093 = vmatprep.subr.mxu0 0.0
        %2094 = vmatpush1.msra.mxu0 0.0
        %2095 = vmatprep.subr.mxu0 0.0
        %2096 = vmatpush1.msra.mxu0 0.0
        %2097 = vmatprep.subr.mxu0 0.0
        %2098 = vmatpush1.msra.mxu0 0.0
        %2099 = vmatprep.subr.mxu0 0.0
        %2100 = vmatpush1.msra.mxu0 0.0
        %2101 = vmatprep.subr.mxu0 0.0
        %2102 = vmatpush1.msra.mxu0 0.0
        %2103 = vmatprep.subr.mxu0 0.0
        %2104 = vmatpush1.msra.mxu0 0.0
        %2105 = vmatprep.subr.mxu0 0.0
        %2106 = vmatpush1.msra.mxu0 0.0
        %2107 = vmatprep.subr.mxu0 0.0
        %2108 = vmatpush1.msra.mxu0 0.0
        %2109 = vmatprep.subr.mxu0 0.0
        %2110 = vmatpush1.msra.mxu0 0.0
        %2111 = vmatprep.subr.mxu0 0.0
        %2112 = vmatpush1.msra.mxu0 0.0
        %2113 = vmatprep.subr.mxu0 0.0
        %2114 = vmatpush1.msra.mxu0 0.0
        %2115 = vmatprep.subr.mxu0 0.0
        %2116 = vmatpush1.msra.mxu0 0.0
        %2117 = vmatprep.subr.mxu0 0.0
        %2118 = vmatpush1.msra.mxu0 0.0
        %2119 = vmatprep.subr.mxu0 0.0
        %2120 = vmatpush1.msra.mxu0 0.0
        %2121 = vmatprep.subr.mxu0 0.0
        %2122 = vmatpush1.msra.mxu0 0.0
        %2123 = vmatprep.subr.mxu0 0.0
        %2124 = vmatpush1.msra.mxu0 0.0
        %2125 = vmatprep.subr.mxu0 0.0
        %2126 = vmatpush1.msra.mxu0 0.0
        %2127 = vmatprep.subr.mxu0 0.0
        %2128 = vmatpush1.msra.mxu0 0.0
        %2129 = vmatprep.subr.mxu0 0.0
        %2130 = vmatpush1.msra.mxu0 0.0
        %2131 = vmatprep.subr.mxu0 0.0
        %2132 = vmatpush1.msra.mxu0 0.0
        %2133 = vmatprep.mubr.f32.mxu0 0.0
        %2134 = vmatmul.mubr.f32.gmra.mrb[0].mxu0 %v2067
        %v2135 = vpop.f32.mrb[0].mxu0
        %v2136 = vadd.f32 %v2064, %v2135
        %v2137 = vpop.f32.mrb[0].mxu0
        %2138 = vdwg.mxu0
        %v2139 = vmul.f32 %v2136, 0.5
        %v2140 = vrcp.pop 1.4142135
        %v2141 = vmul.f32 %v2136, %v2140
        %v2142 = verf.f32.pop %v2141
        %v2143 = vadd.f32 %v2142, 1.0
        %v2144 = vmul.f32 %v2139, %v2143
        %v2145 = vld [vmem:[%s18] sm:$0xff]
        %v2146 = vld [vmem:[%s18 + $0x8] sm:$0xff]
        %v2147 = vld [vmem:[%s18 + $0x10] sm:$0xff]
        %v2148 = vld [vmem:[%s18 + $0x18] sm:$0xff]
        %v2149 = vld [vmem:[%s18 + $0x20] sm:$0xff]
        %v2150 = vld [vmem:[%s18 + $0x28] sm:$0xff]
        %v2151 = vld [vmem:[%s18 + $0x30] sm:$0xff]
        %v2152 = vld [vmem:[%s18 + $0x38] sm:$0xff]
        %v2153 = vld [vmem:[%s19] sm:$0x1]
        %v2155 = vlaneseq
        %v2156 = vshrl.u32 %v2155, 7
        %v2157 = vsub.s32 0, %v2156
        %v2158 = vrot.slane %v2153, %v2157
        %vm2160 = vcmask 523264
        %v2162 = vsel %vm2160, %v2144, 0
        %2164 = vmatprep.subr.mxu0 0.0
        %2165 = vmatpush1.msra.mxu0 %v2145
        %2166 = vmatprep.subr.mxu0 0.0
        %2167 = vmatpush1.msra.mxu0 %v2146
        %2168 = vmatprep.subr.mxu0 0.0
        %2169 = vmatpush1.msra.mxu0 %v2147
        %2170 = vmatprep.subr.mxu0 0.0
        %2171 = vmatpush1.msra.mxu0 %v2148
        %2172 = vmatprep.subr.mxu0 0.0
        %2173 = vmatpush1.msra.mxu0 %v2149
        %2174 = vmatprep.subr.mxu0 0.0
        %2175 = vmatpush1.msra.mxu0 %v2150
        %2176 = vmatprep.subr.mxu0 0.0
        %2177 = vmatpush1.msra.mxu0 %v2151
        %2178 = vmatprep.subr.mxu0 0.0
        %2179 = vmatpush1.msra.mxu0 %v2152
        %2180 = vmatprep.subr.mxu0 0.0
        %2181 = vmatpush1.msra.mxu0 0.0
        %2182 = vmatprep.subr.mxu0 0.0
        %2183 = vmatpush1.msra.mxu0 0.0
        %2184 = vmatprep.subr.mxu0 0.0
        %2185 = vmatpush1.msra.mxu0 0.0
        %2186 = vmatprep.subr.mxu0 0.0
        %2187 = vmatpush1.msra.mxu0 0.0
        %2188 = vmatprep.subr.mxu0 0.0
        %2189 = vmatpush1.msra.mxu0 0.0
        %2190 = vmatprep.subr.mxu0 0.0
        %2191 = vmatpush1.msra.mxu0 0.0
        %2192 = vmatprep.subr.mxu0 0.0
        %2193 = vmatpush1.msra.mxu0 0.0
        %2194 = vmatprep.subr.mxu0 0.0
        %2195 = vmatpush1.msra.mxu0 0.0
        %2196 = vmatprep.subr.mxu0 0.0
        %2197 = vmatpush1.msra.mxu0 0.0
        %2198 = vmatprep.subr.mxu0 0.0
        %2199 = vmatpush1.msra.mxu0 0.0
        %2200 = vmatprep.subr.mxu0 0.0
        %2201 = vmatpush1.msra.mxu0 0.0
        %2202 = vmatprep.subr.mxu0 0.0
        %2203 = vmatpush1.msra.mxu0 0.0
        %2204 = vmatprep.subr.mxu0 0.0
        %2205 = vmatpush1.msra.mxu0 0.0
        %2206 = vmatprep.subr.mxu0 0.0
        %2207 = vmatpush1.msra.mxu0 0.0
        %2208 = vmatprep.subr.mxu0 0.0
        %2209 = vmatpush1.msra.mxu0 0.0
        %2210 = vmatprep.subr.mxu0 0.0
        %2211 = vmatpush1.msra.mxu0 0.0
        %2212 = vmatprep.subr.mxu0 0.0
        %2213 = vmatpush1.msra.mxu0 0.0
        %2214 = vmatprep.subr.mxu0 0.0
        %2215 = vmatpush1.msra.mxu0 0.0
        %2216 = vmatprep.subr.mxu0 0.0
        %2217 = vmatpush1.msra.mxu0 0.0
        %2218 = vmatprep.subr.mxu0 0.0
        %2219 = vmatpush1.msra.mxu0 0.0
        %2220 = vmatprep.subr.mxu0 0.0
        %2221 = vmatpush1.msra.mxu0 0.0
        %2222 = vmatprep.subr.mxu0 0.0
        %2223 = vmatpush1.msra.mxu0 0.0
        %2224 = vmatprep.subr.mxu0 0.0
        %2225 = vmatpush1.msra.mxu0 0.0
        %2226 = vmatprep.subr.mxu0 0.0
        %2227 = vmatpush1.msra.mxu0 0.0
        %2228 = vmatprep.mubr.f32.mxu0 0.0
        %2229 = vmatmul.mubr.f32.gmra.mrb[0].mxu0 %v2162
        %v2230 = vpop.f32.mrb[0].mxu0
        %v2231 = vadd.f32 %v2158, %v2230
        %v2232 = vpop.f32.mrb[0].mxu0
        %2233 = vdwg.mxu0
        %v2234 = vadd.f32 %v2054, %v2231
        %v2235 = vld [vmem:[%s20] sm:$0x1]
        %v2236 = vld [vmem:[%s21] sm:$0x1]
        %v2237 = vsel %vm951, %v2234, 0.0
        %2238 = vadd.xlane.f32.xlu0 %v2237
        %v2239 = vpop.xlane.xlu0 %2238
        %v2240 = vmul.f32 %v2239, %v955
        %v2241 = vsub.f32 %v2234, %v2240
        %v2242 = vmul.f32 %v2241, %v2241
        %v2243 = vsel %vm951, %v2242, 0.0
        %2244 = vadd.xlane.f32.xlu0 %v2243
        %v2245 = vpop.xlane.xlu0 %2244
        %v2246 = vmul.f32 %v2245, %v955
        %v2247 = vadd.f32 %v2246, 1e-12
        %v2248 = vrsqrt.pop %v2247
        %v2249 = vmul.f32 %v2247, %v2248
        %vm2250 = vcmp.eq.f32.partialorder %v2247, inf
        %v2251 = vsel %vm2250, %v2247, %v2249
        %vm2252 = vcmp.eq.f32.partialorder %v2247, 0.0
        %v2253 = vand.u32 %v2247, 2147483648
        %v2254 = vsel %vm2252, %v2253, %v2251
        %v2255 = vrcp.pop %v2254
        %v2256 = vmul.f32 %v2241, %v2255
        %v2258 = vlaneseq
        %v2259 = vshrl.u32 %v2258, 7
        %v2260 = vsub.s32 0, %v2259
        %v2261 = vrot.slane %v2235, %v2260
        %v2263 = vmul.f32 %v2261, %v2256
        %v2265 = vlaneseq
        %v2266 = vshrl.u32 %v2265, 7
        %v2267 = vsub.s32 0, %v2266
        %v2268 = vrot.slane %v2236, %v2267
        %v2270 = vadd.f32 %v2263, %v2268
        %v2271 = vadd.f32 %v2270, %v1010
        %s2272 = scalar_lea.vmem %s6, 32
        %v2273 = vld [vmem:[%s2272] sm:$0xff]
        %v2274 = vld [vmem:[%s2272 + $0x8] sm:$0xff]
        %v2275 = vld [vmem:[%s2272 + $0x10] sm:$0xff]
        %v2276 = vld [vmem:[%s2272 + $0x18] sm:$0xff]
        %s2277 = scalar_lea.vmem %s7, 1
        %v2278 = vld [vmem:[%s2277] sm:$0x1]
        %v2280 = vlaneseq
        %v2281 = vshrl.u32 %v2280, 7
        %v2282 = vsub.s32 0, %v2281
        %v2283 = vrot.slane %v2278, %v2282
        %v2286 = vsel %vm951, %v2271, 0
        %2288 = vmatprep.subr.mxu0 0.0
        %2289 = vmatpush1.msra.mxu0 %v2273
        %2290 = vmatprep.subr.mxu0 0.0
        %2291 = vmatpush1.msra.mxu0 %v2274
        %2292 = vmatprep.subr.mxu0 0.0
        %2293 = vmatpush1.msra.mxu0 %v2275
        %2294 = vmatprep.subr.mxu0 0.0
        %2295 = vmatpush1.msra.mxu0 %v2276
        %2296 = vmatprep.subr.mxu0 0.0
        %2297 = vmatpush1.msra.mxu0 0.0
        %2298 = vmatprep.subr.mxu0 0.0
        %2299 = vmatpush1.msra.mxu0 0.0
        %2300 = vmatprep.subr.mxu0 0.0
        %2301 = vmatpush1.msra.mxu0 0.0
        %2302 = vmatprep.subr.mxu0 0.0
        %2303 = vmatpush1.msra.mxu0 0.0
        %2304 = vmatprep.subr.mxu0 0.0
        %2305 = vmatpush1.msra.mxu0 0.0
        %2306 = vmatprep.subr.mxu0 0.0
        %2307 = vmatpush1.msra.mxu0 0.0
        %2308 = vmatprep.subr.mxu0 0.0
        %2309 = vmatpush1.msra.mxu0 0.0
        %2310 = vmatprep.subr.mxu0 0.0
        %2311 = vmatpush1.msra.mxu0 0.0
        %2312 = vmatprep.subr.mxu0 0.0
        %2313 = vmatpush1.msra.mxu0 0.0
        %2314 = vmatprep.subr.mxu0 0.0
        %2315 = vmatpush1.msra.mxu0 0.0
        %2316 = vmatprep.subr.mxu0 0.0
        %2317 = vmatpush1.msra.mxu0 0.0
        %2318 = vmatprep.subr.mxu0 0.0
        %2319 = vmatpush1.msra.mxu0 0.0
        %2320 = vmatprep.subr.mxu0 0.0
        %2321 = vmatpush1.msra.mxu0 0.0
        %2322 = vmatprep.subr.mxu0 0.0
        %2323 = vmatpush1.msra.mxu0 0.0
        %2324 = vmatprep.subr.mxu0 0.0
        %2325 = vmatpush1.msra.mxu0 0.0
        %2326 = vmatprep.subr.mxu0 0.0
        %2327 = vmatpush1.msra.mxu0 0.0
        %2328 = vmatprep.subr.mxu0 0.0
        %2329 = vmatpush1.msra.mxu0 0.0
        %2330 = vmatprep.subr.mxu0 0.0
        %2331 = vmatpush1.msra.mxu0 0.0
        %2332 = vmatprep.subr.mxu0 0.0
        %2333 = vmatpush1.msra.mxu0 0.0
        %2334 = vmatprep.subr.mxu0 0.0
        %2335 = vmatpush1.msra.mxu0 0.0
        %2336 = vmatprep.subr.mxu0 0.0
        %2337 = vmatpush1.msra.mxu0 0.0
        %2338 = vmatprep.subr.mxu0 0.0
        %2339 = vmatpush1.msra.mxu0 0.0
        %2340 = vmatprep.subr.mxu0 0.0
        %2341 = vmatpush1.msra.mxu0 0.0
        %2342 = vmatprep.subr.mxu0 0.0
        %2343 = vmatpush1.msra.mxu0 0.0
        %2344 = vmatprep.subr.mxu0 0.0
        %2345 = vmatpush1.msra.mxu0 0.0
        %2346 = vmatprep.subr.mxu0 0.0
        %2347 = vmatpush1.msra.mxu0 0.0
        %2348 = vmatprep.subr.mxu0 0.0
        %2349 = vmatpush1.msra.mxu0 0.0
        %2350 = vmatprep.subr.mxu0 0.0
        %2351 = vmatpush1.msra.mxu0 0.0
        %2352 = vmatprep.mubr.f32.mxu0 0.0
        %2353 = vmatmul.mubr.f32.gmra.mrb[0].mxu0 %v2286
        %v2354 = vpop.f32.mrb[0].mxu0
        %v2355 = vadd.f32 %v2283, %v2354
        %v2356 = vpop.f32.mrb[0].mxu0
        %2357 = vdwg.mxu0
        %s2358 = scalar_lea.vmem %s8, 32
        %v2359 = vld [vmem:[%s2358] sm:$0xff]
        %v2360 = vld [vmem:[%s2358 + $0x8] sm:$0xff]
        %v2361 = vld [vmem:[%s2358 + $0x10] sm:$0xff]
        %v2362 = vld [vmem:[%s2358 + $0x18] sm:$0xff]
        %s2363 = scalar_lea.vmem %s9, 1
        %v2364 = vld [vmem:[%s2363] sm:$0x1]
        %v2366 = vlaneseq
        %v2367 = vshrl.u32 %v2366, 7
        %v2368 = vsub.s32 0, %v2367
        %v2369 = vrot.slane %v2364, %v2368
        %2371 = vmatprep.subr.mxu0 0.0
        %2372 = vmatpush1.msra.mxu0 %v2359
        %2373 = vmatprep.subr.mxu0 0.0
        %2374 = vmatpush1.msra.mxu0 %v2360
        %2375 = vmatprep.subr.mxu0 0.0
        %2376 = vmatpush1.msra.mxu0 %v2361
        %2377 = vmatprep.subr.mxu0 0.0
        %2378 = vmatpush1.msra.mxu0 %v2362
        %2379 = vmatprep.subr.mxu0 0.0
        %2380 = vmatpush1.msra.mxu0 0.0
        %2381 = vmatprep.subr.mxu0 0.0
        %2382 = vmatpush1.msra.mxu0 0.0
        %2383 = vmatprep.subr.mxu0 0.0
        %2384 = vmatpush1.msra.mxu0 0.0
        %2385 = vmatprep.subr.mxu0 0.0
        %2386 = vmatpush1.msra.mxu0 0.0
        %2387 = vmatprep.subr.mxu0 0.0
        %2388 = vmatpush1.msra.mxu0 0.0
        %2389 = vmatprep.subr.mxu0 0.0
        %2390 = vmatpush1.msra.mxu0 0.0
        %2391 = vmatprep.subr.mxu0 0.0
        %2392 = vmatpush1.msra.mxu0 0.0
        %2393 = vmatprep.subr.mxu0 0.0
        %2394 = vmatpush1.msra.mxu0 0.0
        %2395 = vmatprep.subr.mxu0 0.0
        %2396 = vmatpush1.msra.mxu0 0.0
        %2397 = vmatprep.subr.mxu0 0.0
        %2398 = vmatpush1.msra.mxu0 0.0
        %2399 = vmatprep.subr.mxu0 0.0
        %2400 = vmatpush1.msra.mxu0 0.0
        %2401 = vmatprep.subr.mxu0 0.0
        %2402 = vmatpush1.msra.mxu0 0.0
        %2403 = vmatprep.subr.mxu0 0.0
        %2404 = vmatpush1.msra.mxu0 0.0
        %2405 = vmatprep.subr.mxu0 0.0
        %2406 = vmatpush1.msra.mxu0 0.0
        %2407 = vmatprep.subr.mxu0 0.0
        %2408 = vmatpush1.msra.mxu0 0.0
        %2409 = vmatprep.subr.mxu0 0.0
        %2410 = vmatpush1.msra.mxu0 0.0
        %2411 = vmatprep.subr.mxu0 0.0
        %2412 = vmatpush1.msra.mxu0 0.0
        %2413 = vmatprep.subr.mxu0 0.0
        %2414 = vmatpush1.msra.mxu0 0.0
        %2415 = vmatprep.subr.mxu0 0.0
        %2416 = vmatpush1.msra.mxu0 0.0
        %2417 = vmatprep.subr.mxu0 0.0
        %2418 = vmatpush1.msra.mxu0 0.0
        %2419 = vmatprep.subr.mxu0 0.0
        %2420 = vmatpush1.msra.mxu0 0.0
        %2421 = vmatprep.subr.mxu0 0.0
        %2422 = vmatpush1.msra.mxu0 0.0
        %2423 = vmatprep.subr.mxu0 0.0
        %2424 = vmatpush1.msra.mxu0 0.0
        %2425 = vmatprep.subr.mxu0 0.0
        %2426 = vmatpush1.msra.mxu0 0.0
        %2427 = vmatprep.subr.mxu0 0.0
        %2428 = vmatpush1.msra.mxu0 0.0
        %2429 = vmatprep.subr.mxu0 0.0
        %2430 = vmatpush1.msra.mxu0 0.0
        %2431 = vmatprep.subr.mxu0 0.0
        %2432 = vmatpush1.msra.mxu0 0.0
        %2433 = vmatprep.subr.mxu0 0.0
        %2434 = vmatpush1.msra.mxu0 0.0
        %2435 = vmatprep.mubr.f32.mxu0 0.0
        %2436 = vmatmul.mubr.f32.gmra.mrb[0].mxu0 %v2286
        %v2437 = vpop.f32.mrb[0].mxu0
        %v2438 = vadd.f32 %v2369, %v2437
        %v2439 = vpop.f32.mrb[0].mxu0
        %2440 = vdwg.mxu0
        %s2441 = scalar_lea.vmem %s10, 32
        %v2442 = vld [vmem:[%s2441] sm:$0xff]
        %v2443 = vld [vmem:[%s2441 + $0x8] sm:$0xff]
        %v2444 = vld [vmem:[%s2441 + $0x10] sm:$0xff]
        %v2445 = vld [vmem:[%s2441 + $0x18] sm:$0xff]
        %s2446 = scalar_lea.vmem [#allocation13], 1
        %v2447 = vld [vmem:[%s2446] sm:$0x1]
        %v2449 = vlaneseq
        %v2450 = vshrl.u32 %v2449, 7
        %v2451 = vsub.s32 0, %v2450
        %v2452 = vrot.slane %v2447, %v2451
        %2454 = vmatprep.subr.mxu0 0.0
        %2455 = vmatpush1.msra.mxu0 %v2442
        %2456 = vmatprep.subr.mxu0 0.0
        %2457 = vmatpush1.msra.mxu0 %v2443
        %2458 = vmatprep.subr.mxu0 0.0
        %2459 = vmatpush1.msra.mxu0 %v2444
        %2460 = vmatprep.subr.mxu0 0.0
        %2461 = vmatpush1.msra.mxu0 %v2445
        %2462 = vmatprep.subr.mxu0 0.0
        %2463 = vmatpush1.msra.mxu0 0.0
        %2464 = vmatprep.subr.mxu0 0.0
        %2465 = vmatpush1.msra.mxu0 0.0
        %2466 = vmatprep.subr.mxu0 0.0
        %2467 = vmatpush1.msra.mxu0 0.0
        %2468 = vmatprep.subr.mxu0 0.0
        %2469 = vmatpush1.msra.mxu0 0.0
        %2470 = vmatprep.subr.mxu0 0.0
        %2471 = vmatpush1.msra.mxu0 0.0
        %2472 = vmatprep.subr.mxu0 0.0
        %2473 = vmatpush1.msra.mxu0 0.0
        %2474 = vmatprep.subr.mxu0 0.0
        %2475 = vmatpush1.msra.mxu0 0.0
        %2476 = vmatprep.subr.mxu0 0.0
        %2477 = vmatpush1.msra.mxu0 0.0
        %2478 = vmatprep.subr.mxu0 0.0
        %2479 = vmatpush1.msra.mxu0 0.0
        %2480 = vmatprep.subr.mxu0 0.0
        %2481 = vmatpush1.msra.mxu0 0.0
        %2482 = vmatprep.subr.mxu0 0.0
        %2483 = vmatpush1.msra.mxu0 0.0
        %2484 = vmatprep.subr.mxu0 0.0
        %2485 = vmatpush1.msra.mxu0 0.0
        %2486 = vmatprep.subr.mxu0 0.0
        %2487 = vmatpush1.msra.mxu0 0.0
        %2488 = vmatprep.subr.mxu0 0.0
        %2489 = vmatpush1.msra.mxu0 0.0
        %2490 = vmatprep.subr.mxu0 0.0
        %2491 = vmatpush1.msra.mxu0 0.0
        %2492 = vmatprep.subr.mxu0 0.0
        %2493 = vmatpush1.msra.mxu0 0.0
        %2494 = vmatprep.subr.mxu0 0.0
        %2495 = vmatpush1.msra.mxu0 0.0
        %2496 = vmatprep.subr.mxu0 0.0
        %2497 = vmatpush1.msra.mxu0 0.0
        %2498 = vmatprep.subr.mxu0 0.0
        %2499 = vmatpush1.msra.mxu0 0.0
        %2500 = vmatprep.subr.mxu0 0.0
        %2501 = vmatpush1.msra.mxu0 0.0
        %2502 = vmatprep.subr.mxu0 0.0
        %2503 = vmatpush1.msra.mxu0 0.0
        %2504 = vmatprep.subr.mxu0 0.0
        %2505 = vmatpush1.msra.mxu0 0.0
        %2506 = vmatprep.subr.mxu0 0.0
        %2507 = vmatpush1.msra.mxu0 0.0
        %2508 = vmatprep.subr.mxu0 0.0
        %2509 = vmatpush1.msra.mxu0 0.0
        %2510 = vmatprep.subr.mxu0 0.0
        %2511 = vmatpush1.msra.mxu0 0.0
        %2512 = vmatprep.subr.mxu0 0.0
        %2513 = vmatpush1.msra.mxu0 0.0
        %2514 = vmatprep.subr.mxu0 0.0
        %2515 = vmatpush1.msra.mxu0 0.0
        %2516 = vmatprep.subr.mxu0 0.0
        %2517 = vmatpush1.msra.mxu0 0.0
        %2518 = vmatprep.mubr.f32.mxu0 0.0
        %2519 = vmatmul.mubr.f32.gmra.mrb[0].mxu0 %v2286
        %v2520 = vpop.f32.mrb[0].mxu0
        %v2521 = vadd.f32 %v2452, %v2520
        %v2522 = vpop.f32.mrb[0].mxu0
        %2523 = vdwg.mxu0
        %2525 = vrot.lane.b32.xlu0 %v2355, 120
        %v2526 = vpop.permute.xlu0 %2525
        %2527 = vrot.lane.b32.xlu0 %v2355, 112
        %v2528 = vpop.permute.xlu0 %2527
        %2529 = vrot.lane.b32.xlu0 %v2355, 104
        %v2530 = vpop.permute.xlu0 %2529
        %2532 = vrot.lane.b32.xlu0 %v2438, 120
        %v2533 = vpop.permute.xlu0 %2532
        %2534 = vrot.lane.b32.xlu0 %v2438, 112
        %v2535 = vpop.permute.xlu0 %2534
        %2536 = vrot.lane.b32.xlu0 %v2438, 104
        %v2537 = vpop.permute.xlu0 %2536
        %2539 = vrot.lane.b32.xlu0 %v2521, 120
        %v2540 = vpop.permute.xlu0 %2539
        %2542 = vrot.lane.b32.xlu0 %v2521, 112
        %v2543 = vpop.permute.xlu0 %2542
        %2545 = vrot.lane.b32.xlu0 %v2521, 104
        %v2546 = vpop.permute.xlu0 %2545
        %v2548 = vsel %vm1281, %v2355, 0
        %v2550 = vsel %vm1281, %v2438, 0
        %2552 = vmatprep.subr.mxu0 0.0
        %2553 = vmatpush1.xpose.msra.mxu0 %v2550
        %2554 = vmatprep.subr.mxu0 0.0
        %2555 = vmatpush1.xpose.msra.mxu0 0.0
        %2556 = vmatprep.subr.mxu0 0.0
        %2557 = vmatpush1.xpose.msra.mxu0 0.0
        %2558 = vmatprep.subr.mxu0 0.0
        %2559 = vmatpush1.xpose.msra.mxu0 0.0
        %2560 = vmatprep.subr.mxu0 0.0
        %2561 = vmatpush1.xpose.msra.mxu0 0.0
        %2562 = vmatprep.subr.mxu0 0.0
        %2563 = vmatpush1.xpose.msra.mxu0 0.0
        %2564 = vmatprep.subr.mxu0 0.0
        %2565 = vmatpush1.xpose.msra.mxu0 0.0
        %2566 = vmatprep.subr.mxu0 0.0
        %2567 = vmatpush1.xpose.msra.mxu0 0.0
        %2568 = vmatprep.subr.mxu0 0.0
        %2569 = vmatpush1.xpose.msra.mxu0 0.0
        %2570 = vmatprep.subr.mxu0 0.0
        %2571 = vmatpush1.xpose.msra.mxu0 0.0
        %2572 = vmatprep.subr.mxu0 0.0
        %2573 = vmatpush1.xpose.msra.mxu0 0.0
        %2574 = vmatprep.subr.mxu0 0.0
        %2575 = vmatpush1.xpose.msra.mxu0 0.0
        %2576 = vmatprep.subr.mxu0 0.0
        %2577 = vmatpush1.xpose.msra.mxu0 0.0
        %2578 = vmatprep.subr.mxu0 0.0
        %2579 = vmatpush1.xpose.msra.mxu0 0.0
        %2580 = vmatprep.subr.mxu0 0.0
        %2581 = vmatpush1.xpose.msra.mxu0 0.0
        %2582 = vmatprep.subr.mxu0 0.0
        %2583 = vmatpush1.xpose.msra.mxu0 0.0
        %2584 = vmatprep.subr.mxu0 0.0
        %2585 = vmatpush1.xpose.msra.mxu0 0.0
        %2586 = vmatprep.subr.mxu0 0.0
        %2587 = vmatpush1.xpose.msra.mxu0 0.0
        %2588 = vmatprep.subr.mxu0 0.0
        %2589 = vmatpush1.xpose.msra.mxu0 0.0
        %2590 = vmatprep.subr.mxu0 0.0
        %2591 = vmatpush1.xpose.msra.mxu0 0.0
        %2592 = vmatprep.subr.mxu0 0.0
        %2593 = vmatpush1.xpose.msra.mxu0 0.0
        %2594 = vmatprep.subr.mxu0 0.0
        %2595 = vmatpush1.xpose.msra.mxu0 0.0
        %2596 = vmatprep.subr.mxu0 0.0
        %2597 = vmatpush1.xpose.msra.mxu0 0.0
        %2598 = vmatprep.subr.mxu0 0.0
        %2599 = vmatpush1.xpose.msra.mxu0 0.0
        %2600 = vmatprep.subr.mxu0 0.0
        %2601 = vmatpush1.xpose.msra.mxu0 0.0
        %2602 = vmatprep.subr.mxu0 0.0
        %2603 = vmatpush1.xpose.msra.mxu0 0.0
        %2604 = vmatprep.subr.mxu0 0.0
        %2605 = vmatpush1.xpose.msra.mxu0 0.0
        %2606 = vmatprep.subr.mxu0 0.0
        %2607 = vmatpush1.xpose.msra.mxu0 0.0
        %2608 = vmatprep.subr.mxu0 0.0
        %2609 = vmatpush1.xpose.msra.mxu0 0.0
        %2610 = vmatprep.subr.mxu0 0.0
        %2611 = vmatpush1.xpose.msra.mxu0 0.0
        %2612 = vmatprep.subr.mxu0 0.0
        %2613 = vmatpush1.xpose.msra.mxu0 0.0
        %2614 = vmatprep.subr.mxu0 0.0
        %2615 = vmatpush1.xpose.msra.mxu0 0.0
        %2616 = vmatprep.mubr.f32.mxu0 0.0
        %2617 = vmatmul.mubr.f32.gmra.mrb[0].mxu0 %v2548
        %v2618 = vpop.f32.mrb[0].mxu0
        %v2619 = vadd.f32 0.0, %v2618
        %v2620 = vpop.f32.mrb[0].mxu0
        %2621 = vdwg.mxu0
        %v2622 = vsel %vm1281, %v2526, 0
        %v2624 = vsel %vm1281, %v2533, 0
        %2626 = vmatprep.subr.mxu0 0.0
        %2627 = vmatpush1.xpose.msra.mxu0 %v2624
        %2628 = vmatprep.subr.mxu0 0.0
        %2629 = vmatpush1.xpose.msra.mxu0 0.0
        %2630 = vmatprep.subr.mxu0 0.0
        %2631 = vmatpush1.xpose.msra.mxu0 0.0
        %2632 = vmatprep.subr.mxu0 0.0
        %2633 = vmatpush1.xpose.msra.mxu0 0.0
        %2634 = vmatprep.subr.mxu0 0.0
        %2635 = vmatpush1.xpose.msra.mxu0 0.0
        %2636 = vmatprep.subr.mxu0 0.0
        %2637 = vmatpush1.xpose.msra.mxu0 0.0
        %2638 = vmatprep.subr.mxu0 0.0
        %2639 = vmatpush1.xpose.msra.mxu0 0.0
        %2640 = vmatprep.subr.mxu0 0.0
        %2641 = vmatpush1.xpose.msra.mxu0 0.0
        %2642 = vmatprep.subr.mxu0 0.0
        %2643 = vmatpush1.xpose.msra.mxu0 0.0
        %2644 = vmatprep.subr.mxu0 0.0
        %2645 = vmatpush1.xpose.msra.mxu0 0.0
        %2646 = vmatprep.subr.mxu0 0.0
        %2647 = vmatpush1.xpose.msra.mxu0 0.0
        %2648 = vmatprep.subr.mxu0 0.0
        %2649 = vmatpush1.xpose.msra.mxu0 0.0
        %2650 = vmatprep.subr.mxu0 0.0
        %2651 = vmatpush1.xpose.msra.mxu0 0.0
        %2652 = vmatprep.subr.mxu0 0.0
        %2653 = vmatpush1.xpose.msra.mxu0 0.0
        %2654 = vmatprep.subr.mxu0 0.0
        %2655 = vmatpush1.xpose.msra.mxu0 0.0
        %2656 = vmatprep.subr.mxu0 0.0
        %2657 = vmatpush1.xpose.msra.mxu0 0.0
        %2658 = vmatprep.subr.mxu0 0.0
        %2659 = vmatpush1.xpose.msra.mxu0 0.0
        %2660 = vmatprep.subr.mxu0 0.0
        %2661 = vmatpush1.xpose.msra.mxu0 0.0
        %2662 = vmatprep.subr.mxu0 0.0
        %2663 = vmatpush1.xpose.msra.mxu0 0.0
        %2664 = vmatprep.subr.mxu0 0.0
        %2665 = vmatpush1.xpose.msra.mxu0 0.0
        %2666 = vmatprep.subr.mxu0 0.0
        %2667 = vmatpush1.xpose.msra.mxu0 0.0
        %2668 = vmatprep.subr.mxu0 0.0
        %2669 = vmatpush1.xpose.msra.mxu0 0.0
        %2670 = vmatprep.subr.mxu0 0.0
        %2671 = vmatpush1.xpose.msra.mxu0 0.0
        %2672 = vmatprep.subr.mxu0 0.0
        %2673 = vmatpush1.xpose.msra.mxu0 0.0
        %2674 = vmatprep.subr.mxu0 0.0
        %2675 = vmatpush1.xpose.msra.mxu0 0.0
        %2676 = vmatprep.subr.mxu0 0.0
        %2677 = vmatpush1.xpose.msra.mxu0 0.0
        %2678 = vmatprep.subr.mxu0 0.0
        %2679 = vmatpush1.xpose.msra.mxu0 0.0
        %2680 = vmatprep.subr.mxu0 0.0
        %2681 = vmatpush1.xpose.msra.mxu0 0.0
        %2682 = vmatprep.subr.mxu0 0.0
        %2683 = vmatpush1.xpose.msra.mxu0 0.0
        %2684 = vmatprep.subr.mxu0 0.0
        %2685 = vmatpush1.xpose.msra.mxu0 0.0
        %2686 = vmatprep.subr.mxu0 0.0
        %2687 = vmatpush1.xpose.msra.mxu0 0.0
        %2688 = vmatprep.subr.mxu0 0.0
        %2689 = vmatpush1.xpose.msra.mxu0 0.0
        %2690 = vmatprep.mubr.f32.mxu0 0.0
        %2691 = vmatmul.mubr.f32.gmra.mrb[0].mxu0 %v2622
        %v2692 = vpop.f32.mrb[0].mxu0
        %v2693 = vadd.f32 0.0, %v2692
        %v2694 = vpop.f32.mrb[0].mxu0
        %2695 = vdwg.mxu0
        %v2696 = vsel %vm1281, %v2528, 0
        %v2698 = vsel %vm1281, %v2535, 0
        %2700 = vmatprep.subr.mxu0 0.0
        %2701 = vmatpush1.xpose.msra.mxu0 %v2698
        %2702 = vmatprep.subr.mxu0 0.0
        %2703 = vmatpush1.xpose.msra.mxu0 0.0
        %2704 = vmatprep.subr.mxu0 0.0
        %2705 = vmatpush1.xpose.msra.mxu0 0.0
        %2706 = vmatprep.subr.mxu0 0.0
        %2707 = vmatpush1.xpose.msra.mxu0 0.0
        %2708 = vmatprep.subr.mxu0 0.0
        %2709 = vmatpush1.xpose.msra.mxu0 0.0
        %2710 = vmatprep.subr.mxu0 0.0
        %2711 = vmatpush1.xpose.msra.mxu0 0.0
        %2712 = vmatprep.subr.mxu0 0.0
        %2713 = vmatpush1.xpose.msra.mxu0 0.0
        %2714 = vmatprep.subr.mxu0 0.0
        %2715 = vmatpush1.xpose.msra.mxu0 0.0
        %2716 = vmatprep.subr.mxu0 0.0
        %2717 = vmatpush1.xpose.msra.mxu0 0.0
        %2718 = vmatprep.subr.mxu0 0.0
        %2719 = vmatpush1.xpose.msra.mxu0 0.0
        %2720 = vmatprep.subr.mxu0 0.0
        %2721 = vmatpush1.xpose.msra.mxu0 0.0
        %2722 = vmatprep.subr.mxu0 0.0
        %2723 = vmatpush1.xpose.msra.mxu0 0.0
        %2724 = vmatprep.subr.mxu0 0.0
        %2725 = vmatpush1.xpose.msra.mxu0 0.0
        %2726 = vmatprep.subr.mxu0 0.0
        %2727 = vmatpush1.xpose.msra.mxu0 0.0
        %2728 = vmatprep.subr.mxu0 0.0
        %2729 = vmatpush1.xpose.msra.mxu0 0.0
        %2730 = vmatprep.subr.mxu0 0.0
        %2731 = vmatpush1.xpose.msra.mxu0 0.0
        %2732 = vmatprep.subr.mxu0 0.0
        %2733 = vmatpush1.xpose.msra.mxu0 0.0
        %2734 = vmatprep.subr.mxu0 0.0
        %2735 = vmatpush1.xpose.msra.mxu0 0.0
        %2736 = vmatprep.subr.mxu0 0.0
        %2737 = vmatpush1.xpose.msra.mxu0 0.0
        %2738 = vmatprep.subr.mxu0 0.0
        %2739 = vmatpush1.xpose.msra.mxu0 0.0
        %2740 = vmatprep.subr.mxu0 0.0
        %2741 = vmatpush1.xpose.msra.mxu0 0.0
        %2742 = vmatprep.subr.mxu0 0.0
        %2743 = vmatpush1.xpose.msra.mxu0 0.0
        %2744 = vmatprep.subr.mxu0 0.0
        %2745 = vmatpush1.xpose.msra.mxu0 0.0
        %2746 = vmatprep.subr.mxu0 0.0
        %2747 = vmatpush1.xpose.msra.mxu0 0.0
        %2748 = vmatprep.subr.mxu0 0.0
        %2749 = vmatpush1.xpose.msra.mxu0 0.0
        %2750 = vmatprep.subr.mxu0 0.0
        %2751 = vmatpush1.xpose.msra.mxu0 0.0
        %2752 = vmatprep.subr.mxu0 0.0
        %2753 = vmatpush1.xpose.msra.mxu0 0.0
        %2754 = vmatprep.subr.mxu0 0.0
        %2755 = vmatpush1.xpose.msra.mxu0 0.0
        %2756 = vmatprep.subr.mxu0 0.0
        %2757 = vmatpush1.xpose.msra.mxu0 0.0
        %2758 = vmatprep.subr.mxu0 0.0
        %2759 = vmatpush1.xpose.msra.mxu0 0.0
        %2760 = vmatprep.subr.mxu0 0.0
        %2761 = vmatpush1.xpose.msra.mxu0 0.0
        %2762 = vmatprep.subr.mxu0 0.0
        %2763 = vmatpush1.xpose.msra.mxu0 0.0
        %2764 = vmatprep.mubr.f32.mxu0 0.0
        %2765 = vmatmul.mubr.f32.gmra.mrb[0].mxu0 %v2696
        %v2766 = vpop.f32.mrb[0].mxu0
        %v2767 = vadd.f32 0.0, %v2766
        %v2768 = vpop.f32.mrb[0].mxu0
        %2769 = vdwg.mxu0
        %v2770 = vsel %vm1281, %v2530, 0
        %v2772 = vsel %vm1281, %v2537, 0
        %2774 = vmatprep.subr.mxu0 0.0
        %2775 = vmatpush1.xpose.msra.mxu0 %v2772
        %2776 = vmatprep.subr.mxu0 0.0
        %2777 = vmatpush1.xpose.msra.mxu0 0.0
        %2778 = vmatprep.subr.mxu0 0.0
        %2779 = vmatpush1.xpose.msra.mxu0 0.0
        %2780 = vmatprep.subr.mxu0 0.0
        %2781 = vmatpush1.xpose.msra.mxu0 0.0
        %2782 = vmatprep.subr.mxu0 0.0
        %2783 = vmatpush1.xpose.msra.mxu0 0.0
        %2784 = vmatprep.subr.mxu0 0.0
        %2785 = vmatpush1.xpose.msra.mxu0 0.0
        %2786 = vmatprep.subr.mxu0 0.0
        %2787 = vmatpush1.xpose.msra.mxu0 0.0
        %2788 = vmatprep.subr.mxu0 0.0
        %2789 = vmatpush1.xpose.msra.mxu0 0.0
        %2790 = vmatprep.subr.mxu0 0.0
        %2791 = vmatpush1.xpose.msra.mxu0 0.0
        %2792 = vmatprep.subr.mxu0 0.0
        %2793 = vmatpush1.xpose.msra.mxu0 0.0
        %2794 = vmatprep.subr.mxu0 0.0
        %2795 = vmatpush1.xpose.msra.mxu0 0.0
        %2796 = vmatprep.subr.mxu0 0.0
        %2797 = vmatpush1.xpose.msra.mxu0 0.0
        %2798 = vmatprep.subr.mxu0 0.0
        %2799 = vmatpush1.xpose.msra.mxu0 0.0
        %2800 = vmatprep.subr.mxu0 0.0
        %2801 = vmatpush1.xpose.msra.mxu0 0.0
        %2802 = vmatprep.subr.mxu0 0.0
        %2803 = vmatpush1.xpose.msra.mxu0 0.0
        %2804 = vmatprep.subr.mxu0 0.0
        %2805 = vmatpush1.xpose.msra.mxu0 0.0
        %2806 = vmatprep.subr.mxu0 0.0
        %2807 = vmatpush1.xpose.msra.mxu0 0.0
        %2808 = vmatprep.subr.mxu0 0.0
        %2809 = vmatpush1.xpose.msra.mxu0 0.0
        %2810 = vmatprep.subr.mxu0 0.0
        %2811 = vmatpush1.xpose.msra.mxu0 0.0
        %2812 = vmatprep.subr.mxu0 0.0
        %2813 = vmatpush1.xpose.msra.mxu0 0.0
        %2814 = vmatprep.subr.mxu0 0.0
        %2815 = vmatpush1.xpose.msra.mxu0 0.0
        %2816 = vmatprep.subr.mxu0 0.0
        %2817 = vmatpush1.xpose.msra.mxu0 0.0
        %2818 = vmatprep.subr.mxu0 0.0
        %2819 = vmatpush1.xpose.msra.mxu0 0.0
        %2820 = vmatprep.subr.mxu0 0.0
        %2821 = vmatpush1.xpose.msra.mxu0 0.0
        %2822 = vmatprep.subr.mxu0 0.0
        %2823 = vmatpush1.xpose.msra.mxu0 0.0
        %2824 = vmatprep.subr.mxu0 0.0
        %2825 = vmatpush1.xpose.msra.mxu0 0.0
        %2826 = vmatprep.subr.mxu0 0.0
        %2827 = vmatpush1.xpose.msra.mxu0 0.0
        %2828 = vmatprep.subr.mxu0 0.0
        %2829 = vmatpush1.xpose.msra.mxu0 0.0
        %2830 = vmatprep.subr.mxu0 0.0
        %2831 = vmatpush1.xpose.msra.mxu0 0.0
        %2832 = vmatprep.subr.mxu0 0.0
        %2833 = vmatpush1.xpose.msra.mxu0 0.0
        %2834 = vmatprep.subr.mxu0 0.0
        %2835 = vmatpush1.xpose.msra.mxu0 0.0
        %2836 = vmatprep.subr.mxu0 0.0
        %2837 = vmatpush1.xpose.msra.mxu0 0.0
        %2838 = vmatprep.mubr.f32.mxu0 0.0
        %2839 = vmatmul.mubr.f32.gmra.mrb[0].mxu0 %v2770
        %v2840 = vpop.f32.mrb[0].mxu0
        %v2841 = vadd.f32 0.0, %v2840
        %v2842 = vpop.f32.mrb[0].mxu0
        %2843 = vdwg.mxu0
        %v2844 = vmul.f32 %v2619, 0.35355338
        %v2845 = vmul.f32 %v2693, 0.35355338
        %v2846 = vmul.f32 %v2767, 0.35355338
        %v2847 = vmul.f32 %v2841, 0.35355338
        %v2848 = vsel %vm1281, %v2844, -inf
        %2849 = vmax.xlane.f32.xlu0 %v2848
        %v2850 = vpop.xlane.xlu0 %2849
        %v2851 = vsel %vm1281, %v2845, -inf
        %2852 = vmax.xlane.f32.xlu0 %v2851
        %v2853 = vpop.xlane.xlu0 %2852
        %v2854 = vsel %vm1281, %v2846, -inf
        %2855 = vmax.xlane.f32.xlu0 %v2854
        %v2856 = vpop.xlane.xlu0 %2855
        %v2857 = vsel %vm1281, %v2847, -inf
        %2858 = vmax.xlane.f32.xlu0 %v2857
        %v2859 = vpop.xlane.xlu0 %2858
        %v2860 = vsub.f32 %v2844, %v2850
        %v2861 = vsub.f32 %v2845, %v2853
        %v2862 = vsub.f32 %v2846, %v2856
        %v2863 = vsub.f32 %v2847, %v2859
        %v2864 = vmul.f32 %v2860, 1.442695
        %v2865 = vpow.pop %v2864
        %v2866 = vmul.f32 %v2861, 1.442695
        %v2867 = vpow.pop %v2866
        %v2868 = vmul.f32 %v2862, 1.442695
        %v2869 = vpow.pop %v2868
        %v2870 = vmul.f32 %v2863, 1.442695
        %v2871 = vpow.pop %v2870
        %v2872 = vsel %vm1281, %v2865, 0.0
        %2873 = vadd.xlane.f32.xlu0 %v2872
        %v2874 = vpop.xlane.xlu0 %2873
        %v2875 = vsel %vm1281, %v2867, 0.0
        %2876 = vadd.xlane.f32.xlu0 %v2875
        %v2877 = vpop.xlane.xlu0 %2876
        %v2878 = vsel %vm1281, %v2869, 0.0
        %2879 = vadd.xlane.f32.xlu0 %v2878
        %v2880 = vpop.xlane.xlu0 %2879
        %v2881 = vsel %vm1281, %v2871, 0.0
        %2882 = vadd.xlane.f32.xlu0 %v2881
        %v2883 = vpop.xlane.xlu0 %2882
        %v2884 = vrcp.pop %v2874
        %v2885 = vmul.f32 %v2865, %v2884
        %v2886 = vrcp.pop %v2877
        %v2887 = vmul.f32 %v2867, %v2886
        %v2888 = vrcp.pop %v2880
        %v2889 = vmul.f32 %v2869, %v2888
        %v2890 = vrcp.pop %v2883
        %v2891 = vmul.f32 %v2871, %v2890
        %v2893 = vsel %vm1281, %v2885, 0
        %2895 = vmatprep.subr.mxu0 0.0
        %2896 = vmatpush1.msra.mxu0 %v2521
        %2897 = vmatprep.subr.mxu0 0.0
        %2898 = vmatpush1.msra.mxu0 0.0
        %2899 = vmatprep.subr.mxu0 0.0
        %2900 = vmatpush1.msra.mxu0 0.0
        %2901 = vmatprep.subr.mxu0 0.0
        %2902 = vmatpush1.msra.mxu0 0.0
        %2903 = vmatprep.subr.mxu0 0.0
        %2904 = vmatpush1.msra.mxu0 0.0
        %2905 = vmatprep.subr.mxu0 0.0
        %2906 = vmatpush1.msra.mxu0 0.0
        %2907 = vmatprep.subr.mxu0 0.0
        %2908 = vmatpush1.msra.mxu0 0.0
        %2909 = vmatprep.subr.mxu0 0.0
        %2910 = vmatpush1.msra.mxu0 0.0
        %2911 = vmatprep.subr.mxu0 0.0
        %2912 = vmatpush1.msra.mxu0 0.0
        %2913 = vmatprep.subr.mxu0 0.0
        %2914 = vmatpush1.msra.mxu0 0.0
        %2915 = vmatprep.subr.mxu0 0.0
        %2916 = vmatpush1.msra.mxu0 0.0
        %2917 = vmatprep.subr.mxu0 0.0
        %2918 = vmatpush1.msra.mxu0 0.0
        %2919 = vmatprep.subr.mxu0 0.0
        %2920 = vmatpush1.msra.mxu0 0.0
        %2921 = vmatprep.subr.mxu0 0.0
        %2922 = vmatpush1.msra.mxu0 0.0
        %2923 = vmatprep.subr.mxu0 0.0
        %2924 = vmatpush1.msra.mxu0 0.0
        %2925 = vmatprep.subr.mxu0 0.0
        %2926 = vmatpush1.msra.mxu0 0.0
        %2927 = vmatprep.subr.mxu0 0.0
        %2928 = vmatpush1.msra.mxu0 0.0
        %2929 = vmatprep.subr.mxu0 0.0
        %2930 = vmatpush1.msra.mxu0 0.0
        %2931 = vmatprep.subr.mxu0 0.0
        %2932 = vmatpush1.msra.mxu0 0.0
        %2933 = vmatprep.subr.mxu0 0.0
        %2934 = vmatpush1.msra.mxu0 0.0
        %2935 = vmatprep.subr.mxu0 0.0
        %2936 = vmatpush1.msra.mxu0 0.0
        %2937 = vmatprep.subr.mxu0 0.0
        %2938 = vmatpush1.msra.mxu0 0.0
        %2939 = vmatprep.subr.mxu0 0.0
        %2940 = vmatpush1.msra.mxu0 0.0
        %2941 = vmatprep.subr.mxu0 0.0
        %2942 = vmatpush1.msra.mxu0 0.0
        %2943 = vmatprep.subr.mxu0 0.0
        %2944 = vmatpush1.msra.mxu0 0.0
        %2945 = vmatprep.subr.mxu0 0.0
        %2946 = vmatpush1.msra.mxu0 0.0
        %2947 = vmatprep.subr.mxu0 0.0
        %2948 = vmatpush1.msra.mxu0 0.0
        %2949 = vmatprep.subr.mxu0 0.0
        %2950 = vmatpush1.msra.mxu0 0.0
        %2951 = vmatprep.subr.mxu0 0.0
        %2952 = vmatpush1.msra.mxu0 0.0
        %2953 = vmatprep.subr.mxu0 0.0
        %2954 = vmatpush1.msra.mxu0 0.0
        %2955 = vmatprep.subr.mxu0 0.0
        %2956 = vmatpush1.msra.mxu0 0.0
        %2957 = vmatprep.subr.mxu0 0.0
        %2958 = vmatpush1.msra.mxu0 0.0
        %2959 = vmatprep.mubr.f32.mxu0 0.0
        %2960 = vmatmul.mubr.f32.gmra.mrb[0].mxu0 %v2893
        %v2961 = vpop.f32.mrb[0].mxu0
        %v2962 = vadd.f32 0.0, %v2961
        %v2963 = vpop.f32.mrb[0].mxu0
        %2964 = vdwg.mxu0
        %v2966 = vsel %vm1281, %v2887, 0
        %2968 = vmatprep.subr.mxu0 0.0
        %2969 = vmatpush1.msra.mxu0 %v2540
        %2970 = vmatprep.subr.mxu0 0.0
        %2971 = vmatpush1.msra.mxu0 0.0
        %2972 = vmatprep.subr.mxu0 0.0
        %2973 = vmatpush1.msra.mxu0 0.0
        %2974 = vmatprep.subr.mxu0 0.0
        %2975 = vmatpush1.msra.mxu0 0.0
        %2976 = vmatprep.subr.mxu0 0.0
        %2977 = vmatpush1.msra.mxu0 0.0
        %2978 = vmatprep.subr.mxu0 0.0
        %2979 = vmatpush1.msra.mxu0 0.0
        %2980 = vmatprep.subr.mxu0 0.0
        %2981 = vmatpush1.msra.mxu0 0.0
        %2982 = vmatprep.subr.mxu0 0.0
        %2983 = vmatpush1.msra.mxu0 0.0
        %2984 = vmatprep.subr.mxu0 0.0
        %2985 = vmatpush1.msra.mxu0 0.0
        %2986 = vmatprep.subr.mxu0 0.0
        %2987 = vmatpush1.msra.mxu0 0.0
        %2988 = vmatprep.subr.mxu0 0.0
        %2989 = vmatpush1.msra.mxu0 0.0
        %2990 = vmatprep.subr.mxu0 0.0
        %2991 = vmatpush1.msra.mxu0 0.0
        %2992 = vmatprep.subr.mxu0 0.0
        %2993 = vmatpush1.msra.mxu0 0.0
        %2994 = vmatprep.subr.mxu0 0.0
        %2995 = vmatpush1.msra.mxu0 0.0
        %2996 = vmatprep.subr.mxu0 0.0
        %2997 = vmatpush1.msra.mxu0 0.0
        %2998 = vmatprep.subr.mxu0 0.0
        %2999 = vmatpush1.msra.mxu0 0.0
        %3000 = vmatprep.subr.mxu0 0.0
        %3001 = vmatpush1.msra.mxu0 0.0
        %3002 = vmatprep.subr.mxu0 0.0
        %3003 = vmatpush1.msra.mxu0 0.0
        %3004 = vmatprep.subr.mxu0 0.0
        %3005 = vmatpush1.msra.mxu0 0.0
        %3006 = vmatprep.subr.mxu0 0.0
        %3007 = vmatpush1.msra.mxu0 0.0
        %3008 = vmatprep.subr.mxu0 0.0
        %3009 = vmatpush1.msra.mxu0 0.0
        %3010 = vmatprep.subr.mxu0 0.0
        %3011 = vmatpush1.msra.mxu0 0.0
        %3012 = vmatprep.subr.mxu0 0.0
        %3013 = vmatpush1.msra.mxu0 0.0
        %3014 = vmatprep.subr.mxu0 0.0
        %3015 = vmatpush1.msra.mxu0 0.0
        %3016 = vmatprep.subr.mxu0 0.0
        %3017 = vmatpush1.msra.mxu0 0.0
        %3018 = vmatprep.subr.mxu0 0.0
        %3019 = vmatpush1.msra.mxu0 0.0
        %3020 = vmatprep.subr.mxu0 0.0
        %3021 = vmatpush1.msra.mxu0 0.0
        %3022 = vmatprep.subr.mxu0 0.0
        %3023 = vmatpush1.msra.mxu0 0.0
        %3024 = vmatprep.subr.mxu0 0.0
        %3025 = vmatpush1.msra.mxu0 0.0
        %3026 = vmatprep.subr.mxu0 0.0
        %3027 = vmatpush1.msra.mxu0 0.0
        %3028 = vmatprep.subr.mxu0 0.0
        %3029 = vmatpush1.msra.mxu0 0.0
        %3030 = vmatprep.subr.mxu0 0.0
        %3031 = vmatpush1.msra.mxu0 0.0
        %3032 = vmatprep.mubr.f32.mxu0 0.0
        %3033 = vmatmul.mubr.f32.gmra.mrb[0].mxu0 %v2966
        %v3034 = vpop.f32.mrb[0].mxu0
        %v3035 = vadd.f32 0.0, %v3034
        %v3036 = vpop.f32.mrb[0].mxu0
        %3037 = vdwg.mxu0
        %v3039 = vsel %vm1281, %v2889, 0
        %3041 = vmatprep.subr.mxu0 0.0
        %3042 = vmatpush1.msra.mxu0 %v2543
        %3043 = vmatprep.subr.mxu0 0.0
        %3044 = vmatpush1.msra.mxu0 0.0
        %3045 = vmatprep.subr.mxu0 0.0
        %3046 = vmatpush1.msra.mxu0 0.0
        %3047 = vmatprep.subr.mxu0 0.0
        %3048 = vmatpush1.msra.mxu0 0.0
        %3049 = vmatprep.subr.mxu0 0.0
        %3050 = vmatpush1.msra.mxu0 0.0
        %3051 = vmatprep.subr.mxu0 0.0
        %3052 = vmatpush1.msra.mxu0 0.0
        %3053 = vmatprep.subr.mxu0 0.0
        %3054 = vmatpush1.msra.mxu0 0.0
        %3055 = vmatprep.subr.mxu0 0.0
        %3056 = vmatpush1.msra.mxu0 0.0
        %3057 = vmatprep.subr.mxu0 0.0
        %3058 = vmatpush1.msra.mxu0 0.0
        %3059 = vmatprep.subr.mxu0 0.0
        %3060 = vmatpush1.msra.mxu0 0.0
        %3061 = vmatprep.subr.mxu0 0.0
        %3062 = vmatpush1.msra.mxu0 0.0
        %3063 = vmatprep.subr.mxu0 0.0
        %3064 = vmatpush1.msra.mxu0 0.0
        %3065 = vmatprep.subr.mxu0 0.0
        %3066 = vmatpush1.msra.mxu0 0.0
        %3067 = vmatprep.subr.mxu0 0.0
        %3068 = vmatpush1.msra.mxu0 0.0
        %3069 = vmatprep.subr.mxu0 0.0
        %3070 = vmatpush1.msra.mxu0 0.0
        %3071 = vmatprep.subr.mxu0 0.0
        %3072 = vmatpush1.msra.mxu0 0.0
        %3073 = vmatprep.subr.mxu0 0.0
        %3074 = vmatpush1.msra.mxu0 0.0
        %3075 = vmatprep.subr.mxu0 0.0
        %3076 = vmatpush1.msra.mxu0 0.0
        %3077 = vmatprep.subr.mxu0 0.0
        %3078 = vmatpush1.msra.mxu0 0.0
        %3079 = vmatprep.subr.mxu0 0.0
        %3080 = vmatpush1.msra.mxu0 0.0
        %3081 = vmatprep.subr.mxu0 0.0
        %3082 = vmatpush1.msra.mxu0 0.0
        %3083 = vmatprep.subr.mxu0 0.0
        %3084 = vmatpush1.msra.mxu0 0.0
        %3085 = vmatprep.subr.mxu0 0.0
        %3086 = vmatpush1.msra.mxu0 0.0
        %3087 = vmatprep.subr.mxu0 0.0
        %3088 = vmatpush1.msra.mxu0 0.0
        %3089 = vmatprep.subr.mxu0 0.0
        %3090 = vmatpush1.msra.mxu0 0.0
        %3091 = vmatprep.subr.mxu0 0.0
        %3092 = vmatpush1.msra.mxu0 0.0
        %3093 = vmatprep.subr.mxu0 0.0
        %3094 = vmatpush1.msra.mxu0 0.0
        %3095 = vmatprep.subr.mxu0 0.0
        %3096 = vmatpush1.msra.mxu0 0.0
        %3097 = vmatprep.subr.mxu0 0.0
        %3098 = vmatpush1.msra.mxu0 0.0
        %3099 = vmatprep.subr.mxu0 0.0
        %3100 = vmatpush1.msra.mxu0 0.0
        %3101 = vmatprep.subr.mxu0 0.0
        %3102 = vmatpush1.msra.mxu0 0.0
        %3103 = vmatprep.subr.mxu0 0.0
        %3104 = vmatpush1.msra.mxu0 0.0
        %3105 = vmatprep.mubr.f32.mxu0 0.0
        %3106 = vmatmul.mubr.f32.gmra.mrb[0].mxu0 %v3039
        %v3107 = vpop.f32.mrb[0].mxu0
        %v3108 = vadd.f32 0.0, %v3107
        %v3109 = vpop.f32.mrb[0].mxu0
        %3110 = vdwg.mxu0
        %v3112 = vsel %vm1281, %v2891, 0
        %3114 = vmatprep.subr.mxu0 0.0
        %3115 = vmatpush1.msra.mxu0 %v2546
        %3116 = vmatprep.subr.mxu0 0.0
        %3117 = vmatpush1.msra.mxu0 0.0
        %3118 = vmatprep.subr.mxu0 0.0
        %3119 = vmatpush1.msra.mxu0 0.0
        %3120 = vmatprep.subr.mxu0 0.0
        %3121 = vmatpush1.msra.mxu0 0.0
        %3122 = vmatprep.subr.mxu0 0.0
        %3123 = vmatpush1.msra.mxu0 0.0
        %3124 = vmatprep.subr.mxu0 0.0
        %3125 = vmatpush1.msra.mxu0 0.0
        %3126 = vmatprep.subr.mxu0 0.0
        %3127 = vmatpush1.msra.mxu0 0.0
        %3128 = vmatprep.subr.mxu0 0.0
        %3129 = vmatpush1.msra.mxu0 0.0
        %3130 = vmatprep.subr.mxu0 0.0
        %3131 = vmatpush1.msra.mxu0 0.0
        %3132 = vmatprep.subr.mxu0 0.0
        %3133 = vmatpush1.msra.mxu0 0.0
        %3134 = vmatprep.subr.mxu0 0.0
        %3135 = vmatpush1.msra.mxu0 0.0
        %3136 = vmatprep.subr.mxu0 0.0
        %3137 = vmatpush1.msra.mxu0 0.0
        %3138 = vmatprep.subr.mxu0 0.0
        %3139 = vmatpush1.msra.mxu0 0.0
        %3140 = vmatprep.subr.mxu0 0.0
        %3141 = vmatpush1.msra.mxu0 0.0
        %3142 = vmatprep.subr.mxu0 0.0
        %3143 = vmatpush1.msra.mxu0 0.0
        %3144 = vmatprep.subr.mxu0 0.0
        %3145 = vmatpush1.msra.mxu0 0.0
        %3146 = vmatprep.subr.mxu0 0.0
        %3147 = vmatpush1.msra.mxu0 0.0
        %3148 = vmatprep.subr.mxu0 0.0
        %3149 = vmatpush1.msra.mxu0 0.0
        %3150 = vmatprep.subr.mxu0 0.0
        %3151 = vmatpush1.msra.mxu0 0.0
        %3152 = vmatprep.subr.mxu0 0.0
        %3153 = vmatpush1.msra.mxu0 0.0
        %3154 = vmatprep.subr.mxu0 0.0
        %3155 = vmatpush1.msra.mxu0 0.0
        %3156 = vmatprep.subr.mxu0 0.0
        %3157 = vmatpush1.msra.mxu0 0.0
        %3158 = vmatprep.subr.mxu0 0.0
        %3159 = vmatpush1.msra.mxu0 0.0
        %3160 = vmatprep.subr.mxu0 0.0
        %3161 = vmatpush1.msra.mxu0 0.0
        %3162 = vmatprep.subr.mxu0 0.0
        %3163 = vmatpush1.msra.mxu0 0.0
        %3164 = vmatprep.subr.mxu0 0.0
        %3165 = vmatpush1.msra.mxu0 0.0
        %3166 = vmatprep.subr.mxu0 0.0
        %3167 = vmatpush1.msra.mxu0 0.0
        %3168 = vmatprep.subr.mxu0 0.0
        %3169 = vmatpush1.msra.mxu0 0.0
        %3170 = vmatprep.subr.mxu0 0.0
        %3171 = vmatpush1.msra.mxu0 0.0
        %3172 = vmatprep.subr.mxu0 0.0
        %3173 = vmatpush1.msra.mxu0 0.0
        %3174 = vmatprep.subr.mxu0 0.0
        %3175 = vmatpush1.msra.mxu0 0.0
        %3176 = vmatprep.subr.mxu0 0.0
        %3177 = vmatpush1.msra.mxu0 0.0
        %3178 = vmatprep.mubr.f32.mxu0 0.0
        %3179 = vmatmul.mubr.f32.gmra.mrb[0].mxu0 %v3112
        %v3180 = vpop.f32.mrb[0].mxu0
        %v3181 = vadd.f32 0.0, %v3180
        %v3182 = vpop.f32.mrb[0].mxu0
        %3183 = vdwg.mxu0
        %3185 = vrot.lane.b32.xlu0 %v3035, 8
        %v3186 = vpop.permute.xlu0 %3185
        %3189 = vrot.lane.b32.xlu0 %v3108, 16
        %v3190 = vpop.permute.xlu0 %3189
        %3193 = vrot.lane.b32.xlu0 %v3181, 24
        %v3194 = vpop.permute.xlu0 %3193
        %v3196 = vsel %vm1281, %v2962, %v3186
        %v3197 = vsel %vm877, %v3196, %v3190
        %v3198 = vsel %vm1932, %v3197, %v3194
        %s3199 = scalar_lea.vmem [#allocation14], 32
        %v3200 = vld [vmem:[%s3199] sm:$0xff]
        %v3201 = vld [vmem:[%s3199 + $0x8] sm:$0xff]
        %v3202 = vld [vmem:[%s3199 + $0x10] sm:$0xff]
        %v3203 = vld [vmem:[%s3199 + $0x18] sm:$0xff]
        %s3204 = scalar_lea.vmem [#allocation16], 1
        %v3205 = vld [vmem:[%s3204] sm:$0x1]
        %v3207 = vlaneseq
        %v3208 = vshrl.u32 %v3207, 7
        %v3209 = vsub.s32 0, %v3208
        %v3210 = vrot.slane %v3205, %v3209
        %v3213 = vsel %vm951, %v3198, 0
        %3215 = vmatprep.subr.mxu0 0.0
        %3216 = vmatpush1.msra.mxu0 %v3200
        %3217 = vmatprep.subr.mxu0 0.0
        %3218 = vmatpush1.msra.mxu0 %v3201
        %3219 = vmatprep.subr.mxu0 0.0
        %3220 = vmatpush1.msra.mxu0 %v3202
        %3221 = vmatprep.subr.mxu0 0.0
        %3222 = vmatpush1.msra.mxu0 %v3203
        %3223 = vmatprep.subr.mxu0 0.0
        %3224 = vmatpush1.msra.mxu0 0.0
        %3225 = vmatprep.subr.mxu0 0.0
        %3226 = vmatpush1.msra.mxu0 0.0
        %3227 = vmatprep.subr.mxu0 0.0
        %3228 = vmatpush1.msra.mxu0 0.0
        %3229 = vmatprep.subr.mxu0 0.0
        %3230 = vmatpush1.msra.mxu0 0.0
        %3231 = vmatprep.subr.mxu0 0.0
        %3232 = vmatpush1.msra.mxu0 0.0
        %3233 = vmatprep.subr.mxu0 0.0
        %3234 = vmatpush1.msra.mxu0 0.0
        %3235 = vmatprep.subr.mxu0 0.0
        %3236 = vmatpush1.msra.mxu0 0.0
        %3237 = vmatprep.subr.mxu0 0.0
        %3238 = vmatpush1.msra.mxu0 0.0
        %3239 = vmatprep.subr.mxu0 0.0
        %3240 = vmatpush1.msra.mxu0 0.0
        %3241 = vmatprep.subr.mxu0 0.0
        %3242 = vmatpush1.msra.mxu0 0.0
        %3243 = vmatprep.subr.mxu0 0.0
        %3244 = vmatpush1.msra.mxu0 0.0
        %3245 = vmatprep.subr.mxu0 0.0
        %3246 = vmatpush1.msra.mxu0 0.0
        %3247 = vmatprep.subr.mxu0 0.0
        %3248 = vmatpush1.msra.mxu0 0.0
        %3249 = vmatprep.subr.mxu0 0.0
        %3250 = vmatpush1.msra.mxu0 0.0
        %3251 = vmatprep.subr.mxu0 0.0
        %3252 = vmatpush1.msra.mxu0 0.0
        %3253 = vmatprep.subr.mxu0 0.0
        %3254 = vmatpush1.msra.mxu0 0.0
        %3255 = vmatprep.subr.mxu0 0.0
        %3256 = vmatpush1.msra.mxu0 0.0
        %3257 = vmatprep.subr.mxu0 0.0
        %3258 = vmatpush1.msra.mxu0 0.0
        %3259 = vmatprep.subr.mxu0 0.0
        %3260 = vmatpush1.msra.mxu0 0.0
        %3261 = vmatprep.subr.mxu0 0.0
        %3262 = vmatpush1.msra.mxu0 0.0
        %3263 = vmatprep.subr.mxu0 0.0
        %3264 = vmatpush1.msra.mxu0 0.0
        %3265 = vmatprep.subr.mxu0 0.0
        %3266 = vmatpush1.msra.mxu0 0.0
        %3267 = vmatprep.subr.mxu0 0.0
        %3268 = vmatpush1.msra.mxu0 0.0
        %3269 = vmatprep.subr.mxu0 0.0
        %3270 = vmatpush1.msra.mxu0 0.0
        %3271 = vmatprep.subr.mxu0 0.0
        %3272 = vmatpush1.msra.mxu0 0.0
        %3273 = vmatprep.subr.mxu0 0.0
        %3274 = vmatpush1.msra.mxu0 0.0
        %3275 = vmatprep.subr.mxu0 0.0
        %3276 = vmatpush1.msra.mxu0 0.0
        %3277 = vmatprep.subr.mxu0 0.0
        %3278 = vmatpush1.msra.mxu0 0.0
        %3279 = vmatprep.mubr.f32.mxu0 0.0
        %3280 = vmatmul.mubr.f32.gmra.mrb[0].mxu0 %v3213
        %v3281 = vpop.f32.mrb[0].mxu0
        %v3282 = vadd.f32 %v3210, %v3281
        %v3283 = vpop.f32.mrb[0].mxu0
        %3284 = vdwg.mxu0
        %v3285 = vadd.f32 %v3198, %v3282
        %s3286 = scalar_lea.vmem [#allocation17], 1
        %v3287 = vld [vmem:[%s3286] sm:$0x1]
        %s3288 = scalar_lea.vmem [#allocation19], 1
        %v3289 = vld [vmem:[%s3288] sm:$0x1]
        %v3290 = vsel %vm951, %v3285, 0.0
        %3291 = vadd.xlane.f32.xlu0 %v3290
        %v3292 = vpop.xlane.xlu0 %3291
        %v3293 = vmul.f32 %v3292, %v955
        %v3294 = vsub.f32 %v3285, %v3293
        %v3295 = vmul.f32 %v3294, %v3294
        %v3296 = vsel %vm951, %v3295, 0.0
        %3297 = vadd.xlane.f32.xlu0 %v3296
        %v3298 = vpop.xlane.xlu0 %3297
        %v3299 = vmul.f32 %v3298, %v955
        %v3300 = vadd.f32 %v3299, 1e-12
        %v3301 = vrsqrt.pop %v3300
        %v3302 = vmul.f32 %v3300, %v3301
        %vm3303 = vcmp.eq.f32.partialorder %v3300, inf
        %v3304 = vsel %vm3303, %v3300, %v3302
        %vm3305 = vcmp.eq.f32.partialorder %v3300, 0.0
        %v3306 = vand.u32 %v3300, 2147483648
        %v3307 = vsel %vm3305, %v3306, %v3304
        %v3308 = vrcp.pop %v3307
        %v3309 = vmul.f32 %v3294, %v3308
        %v3311 = vlaneseq
        %v3312 = vshrl.u32 %v3311, 7
        %v3313 = vsub.s32 0, %v3312
        %v3314 = vrot.slane %v3287, %v3313
        %v3316 = vmul.f32 %v3314, %v3309
        %v3318 = vlaneseq
        %v3319 = vshrl.u32 %v3318, 7
        %v3320 = vsub.s32 0, %v3319
        %v3321 = vrot.slane %v3289, %v3320
        %v3323 = vadd.f32 %v3316, %v3321
        %s3324 = scalar_lea.vmem [#allocation20], 32
        %v3325 = vld [vmem:[%s3324] sm:$0xff]
        %v3326 = vld [vmem:[%s3324 + $0x8] sm:$0xff]
        %v3327 = vld [vmem:[%s3324 + $0x10] sm:$0xff]
        %v3328 = vld [vmem:[%s3324 + $0x18] sm:$0xff]
        %s3329 = scalar_lea.vmem [#allocation22], 1
        %v3330 = vld [vmem:[%s3329] sm:$0x1]
        %v3332 = vlaneseq
        %v3333 = vshrl.u32 %v3332, 7
        %v3334 = vsub.s32 0, %v3333
        %v3335 = vrot.slane %v3330, %v3334
        %v3338 = vsel %vm951, %v3323, 0
        %3340 = vmatprep.subr.mxu0 0.0
        %3341 = vmatpush1.msra.mxu0 %v3325
        %3342 = vmatprep.subr.mxu0 0.0
        %3343 = vmatpush1.msra.mxu0 %v3326
        %3344 = vmatprep.subr.mxu0 0.0
        %3345 = vmatpush1.msra.mxu0 %v3327
        %3346 = vmatprep.subr.mxu0 0.0
        %3347 = vmatpush1.msra.mxu0 %v3328
        %3348 = vmatprep.subr.mxu0 0.0
        %3349 = vmatpush1.msra.mxu0 0.0
        %3350 = vmatprep.subr.mxu0 0.0
        %3351 = vmatpush1.msra.mxu0 0.0
        %3352 = vmatprep.subr.mxu0 0.0
        %3353 = vmatpush1.msra.mxu0 0.0
        %3354 = vmatprep.subr.mxu0 0.0
        %3355 = vmatpush1.msra.mxu0 0.0
        %3356 = vmatprep.subr.mxu0 0.0
        %3357 = vmatpush1.msra.mxu0 0.0
        %3358 = vmatprep.subr.mxu0 0.0
        %3359 = vmatpush1.msra.mxu0 0.0
        %3360 = vmatprep.subr.mxu0 0.0
        %3361 = vmatpush1.msra.mxu0 0.0
        %3362 = vmatprep.subr.mxu0 0.0
        %3363 = vmatpush1.msra.mxu0 0.0
        %3364 = vmatprep.subr.mxu0 0.0
        %3365 = vmatpush1.msra.mxu0 0.0
        %3366 = vmatprep.subr.mxu0 0.0
        %3367 = vmatpush1.msra.mxu0 0.0
        %3368 = vmatprep.subr.mxu0 0.0
        %3369 = vmatpush1.msra.mxu0 0.0
        %3370 = vmatprep.subr.mxu0 0.0
        %3371 = vmatpush1.msra.mxu0 0.0
        %3372 = vmatprep.subr.mxu0 0.0
        %3373 = vmatpush1.msra.mxu0 0.0
        %3374 = vmatprep.subr.mxu0 0.0
        %3375 = vmatpush1.msra.mxu0 0.0
        %3376 = vmatprep.subr.mxu0 0.0
        %3377 = vmatpush1.msra.mxu0 0.0
        %3378 = vmatprep.subr.mxu0 0.0
        %3379 = vmatpush1.msra.mxu0 0.0
        %3380 = vmatprep.subr.mxu0 0.0
        %3381 = vmatpush1.msra.mxu0 0.0
        %3382 = vmatprep.subr.mxu0 0.0
        %3383 = vmatpush1.msra.mxu0 0.0
        %3384 = vmatprep.subr.mxu0 0.0
        %3385 = vmatpush1.msra.mxu0 0.0
        %3386 = vmatprep.subr.mxu0 0.0
        %3387 = vmatpush1.msra.mxu0 0.0
        %3388 = vmatprep.subr.mxu0 0.0
        %3389 = vmatpush1.msra.mxu0 0.0
        %3390 = vmatprep.subr.mxu0 0.0
        %3391 = vmatpush1.msra.mxu0 0.0
        %3392 = vmatprep.subr.mxu0 0.0
        %3393 = vmatpush1.msra.mxu0 0.0
        %3394 = vmatprep.subr.mxu0 0.0
        %3395 = vmatpush1.msra.mxu0 0.0
        %3396 = vmatprep.subr.mxu0 0.0
        %3397 = vmatpush1.msra.mxu0 0.0
        %3398 = vmatprep.subr.mxu0 0.0
        %3399 = vmatpush1.msra.mxu0 0.0
        %3400 = vmatprep.subr.mxu0 0.0
        %3401 = vmatpush1.msra.mxu0 0.0
        %3402 = vmatprep.subr.mxu0 0.0
        %3403 = vmatpush1.msra.mxu0 0.0
        %3404 = vmatprep.mubr.f32.mxu0 0.0
        %3405 = vmatmul.mubr.f32.gmra.mrb[0].mxu0 %v3338
        %v3406 = vpop.f32.mrb[0].mxu0
        %v3407 = vadd.f32 %v3335, %v3406
        %v3408 = vpop.f32.mrb[0].mxu0
        %3409 = vdwg.mxu0
        %v3410 = vmul.f32 %v3407, 0.5
        %v3411 = vmul.f32 %v3407, %v2140
        %v3412 = verf.f32.pop %v3411
        %v3413 = vadd.f32 %v3412, 1.0
        %v3414 = vmul.f32 %v3410, %v3413
        %s3415 = scalar_lea.vmem %s18, 64
        %v3416 = vld [vmem:[%s3415] sm:$0xff]
        %v3417 = vld [vmem:[%s3415 + $0x8] sm:$0xff]
        %v3418 = vld [vmem:[%s3415 + $0x10] sm:$0xff]
        %v3419 = vld [vmem:[%s3415 + $0x18] sm:$0xff]
        %v3420 = vld [vmem:[%s3415 + $0x20] sm:$0xff]
        %v3421 = vld [vmem:[%s3415 + $0x28] sm:$0xff]
        %v3422 = vld [vmem:[%s3415 + $0x30] sm:$0xff]
        %v3423 = vld [vmem:[%s3415 + $0x38] sm:$0xff]
        %s3424 = scalar_lea.vmem %s19, 1
        %v3425 = vld [vmem:[%s3424] sm:$0x1]
        %v3427 = vlaneseq
        %v3428 = vshrl.u32 %v3427, 7
        %v3429 = vsub.s32 0, %v3428
        %v3430 = vrot.slane %v3425, %v3429
        %v3433 = vsel %vm2160, %v3414, 0
        %3435 = vmatprep.subr.mxu0 0.0
        %3436 = vmatpush1.msra.mxu0 %v3416
        %3437 = vmatprep.subr.mxu0 0.0
        %3438 = vmatpush1.msra.mxu0 %v3417
        %3439 = vmatprep.subr.mxu0 0.0
        %3440 = vmatpush1.msra.mxu0 %v3418
        %3441 = vmatprep.subr.mxu0 0.0
        %3442 = vmatpush1.msra.mxu0 %v3419
        %3443 = vmatprep.subr.mxu0 0.0
        %3444 = vmatpush1.msra.mxu0 %v3420
        %3445 = vmatprep.subr.mxu0 0.0
        %3446 = vmatpush1.msra.mxu0 %v3421
        %3447 = vmatprep.subr.mxu0 0.0
        %3448 = vmatpush1.msra.mxu0 %v3422
        %3449 = vmatprep.subr.mxu0 0.0
        %3450 = vmatpush1.msra.mxu0 %v3423
        %3451 = vmatprep.subr.mxu0 0.0
        %3452 = vmatpush1.msra.mxu0 0.0
        %3453 = vmatprep.subr.mxu0 0.0
        %3454 = vmatpush1.msra.mxu0 0.0
        %3455 = vmatprep.subr.mxu0 0.0
        %3456 = vmatpush1.msra.mxu0 0.0
        %3457 = vmatprep.subr.mxu0 0.0
        %3458 = vmatpush1.msra.mxu0 0.0
        %3459 = vmatprep.subr.mxu0 0.0
        %3460 = vmatpush1.msra.mxu0 0.0
        %3461 = vmatprep.subr.mxu0 0.0
        %3462 = vmatpush1.msra.mxu0 0.0
        %3463 = vmatprep.subr.mxu0 0.0
        %3464 = vmatpush1.msra.mxu0 0.0
        %3465 = vmatprep.subr.mxu0 0.0
        %3466 = vmatpush1.msra.mxu0 0.0
        %3467 = vmatprep.subr.mxu0 0.0
        %3468 = vmatpush1.msra.mxu0 0.0
        %3469 = vmatprep.subr.mxu0 0.0
        %3470 = vmatpush1.msra.mxu0 0.0
        %3471 = vmatprep.subr.mxu0 0.0
        %3472 = vmatpush1.msra.mxu0 0.0
        %3473 = vmatprep.subr.mxu0 0.0
        %3474 = vmatpush1.msra.mxu0 0.0
        %3475 = vmatprep.subr.mxu0 0.0
        %3476 = vmatpush1.msra.mxu0 0.0
        %3477 = vmatprep.subr.mxu0 0.0
        %3478 = vmatpush1.msra.mxu0 0.0
        %3479 = vmatprep.subr.mxu0 0.0
        %3480 = vmatpush1.msra.mxu0 0.0
        %3481 = vmatprep.subr.mxu0 0.0
        %3482 = vmatpush1.msra.mxu0 0.0
        %3483 = vmatprep.subr.mxu0 0.0
        %3484 = vmatpush1.msra.mxu0 0.0
        %3485 = vmatprep.subr.mxu0 0.0
        %3486 = vmatpush1.msra.mxu0 0.0
        %3487 = vmatprep.subr.mxu0 0.0
        %3488 = vmatpush1.msra.mxu0 0.0
        %3489 = vmatprep.subr.mxu0 0.0
        %3490 = vmatpush1.msra.mxu0 0.0
        %3491 = vmatprep.subr.mxu0 0.0
        %3492 = vmatpush1.msra.mxu0 0.0
        %3493 = vmatprep.subr.mxu0 0.0
        %3494 = vmatpush1.msra.mxu0 0.0
        %3495 = vmatprep.subr.mxu0 0.0
        %3496 = vmatpush1.msra.mxu0 0.0
        %3497 = vmatprep.subr.mxu0 0.0
        %3498 = vmatpush1.msra.mxu0 0.0
        %3499 = vmatprep.mubr.f32.mxu0 0.0
        %3500 = vmatmul.mubr.f32.gmra.mrb[0].mxu0 %v3433
        %v3501 = vpop.f32.mrb[0].mxu0
        %v3502 = vadd.f32 %v3430, %v3501
        %v3503 = vpop.f32.mrb[0].mxu0
        %3504 = vdwg.mxu0
        %v3505 = vadd.f32 %v3323, %v3502
        %s3506 = scalar_lea.vmem %s20, 1
        %v3507 = vld [vmem:[%s3506] sm:$0x1]
        %s3508 = scalar_lea.vmem %s21, 1
        %v3509 = vld [vmem:[%s3508] sm:$0x1]
        %v3510 = vsel %vm951, %v3505, 0.0
        %3511 = vadd.xlane.f32.xlu0 %v3510
        %v3512 = vpop.xlane.xlu0 %3511
        %v3513 = vmul.f32 %v3512, %v955
        %v3514 = vsub.f32 %v3505, %v3513
        %v3515 = vmul.f32 %v3514, %v3514
        %v3516 = vsel %vm951, %v3515, 0.0
        %3517 = vadd.xlane.f32.xlu0 %v3516
        %v3518 = vpop.xlane.xlu0 %3517
        %v3519 = vmul.f32 %v3518, %v955
        %v3520 = vadd.f32 %v3519, 1e-12
        %v3521 = vrsqrt.pop %v3520
        %v3522 = vmul.f32 %v3520, %v3521
        %vm3523 = vcmp.eq.f32.partialorder %v3520, inf
        %v3524 = vsel %vm3523, %v3520, %v3522
        %vm3525 = vcmp.eq.f32.partialorder %v3520, 0.0
        %v3526 = vand.u32 %v3520, 2147483648
        %v3527 = vsel %vm3525, %v3526, %v3524
        %v3528 = vrcp.pop %v3527
        %v3529 = vmul.f32 %v3514, %v3528
        %v3531 = vlaneseq
        %v3532 = vshrl.u32 %v3531, 7
        %v3533 = vsub.s32 0, %v3532
        %v3534 = vrot.slane %v3507, %v3533
        %v3536 = vmul.f32 %v3534, %v3529
        %v3538 = vlaneseq
        %v3539 = vshrl.u32 %v3538, 7
        %v3540 = vsub.s32 0, %v3539
        %v3541 = vrot.slane %v3509, %v3540
        %v3543 = vadd.f32 %v3536, %v3541
        %v3544 = vadd.f32 %v3543, %v2271
        %3545 = vst.msk [vmem:[%s864] sm:$0xff] %vm951, %v3544
        %s3546 = sand.u32 %s520, 1
        %s3547 = scalar_lea.sflag [#allocation4], %s3546
        %s3548 = sand.u32 %s520, 1
        %s3549 = smul.addr %s3548, 8
        %s3550 = scalar_lea.vmem [#allocation23], %s3549
        // Predicated region
        $region161: #{tpu_custom_call.1} parent=107 // pred_check
          %p3551 = pneg %p530
        $region162: #{tpu_custom_call.1} parent=107 // pred_check_branch
          %3553 = sbr.rel (%p3551) target = $region164
        $region163: #{tpu_custom_call.1} parent=107 // pred_region
          %s3555 = ssub.s32 128, 128
          %3556 = vsyncadd %s3547, %s3555
          %s3557 = smul.addr %s45, 128
          %s3558 = scalar_lea.hbm %s22, %s3557
          %s3560 = sshll.u32 %s3550, 4
          %s3561 = int_to_ptr.vmem [resolvable:$true] %s3560
          %3563 = dma.vmem_to_hbm [thread:$0]  %s3561, 128, %s3558, %s3547
        $region164: #{tpu_custom_call.1} parent=107 // pred_fallthru
          _
      $region108: #{tpu_custom_call.1} parent=5 // pred_fallthru
        _
      %p3564 = scmp.le.s32.totalorder 2, %s40
      // Predicated region
      $region165: #{tpu_custom_call.1} parent=5 // pred_check
        %p3565 = pneg %p3564
      $region166: #{tpu_custom_call.1} parent=5 // pred_check_branch
        %3567 = sbr.rel (%p3565) target = $region168
      $region167: #{tpu_custom_call.1} parent=5 // pred_region
        %s3568 = ssub.s32 %s40, 2
        // Predicated region
        $region169: #{tpu_custom_call.1} parent=167 // pred_check
          %p3569 = pneg %p536
        $region170: #{tpu_custom_call.1} parent=167 // pred_check_branch
          %3571 = sbr.rel (%p3569) target = $region172
        $region171: #{tpu_custom_call.1} parent=167 // pred_region
          %s3572 = sand.u32 %s521, 1
          %s3573 = scalar_lea.sflag [#allocation4], %s3572
          %s3574 = sand.u32 %s521, 1
          %s3575 = smul.addr %s3574, 8
          %s3576 = scalar_lea.vmem [#allocation23], %s3575
          %3577 = dma.done %s3573, 128
        $region172: #{tpu_custom_call.1} parent=167 // pred_fallthru
          _
      $region168: #{tpu_custom_call.1} parent=5 // pred_fallthru
        _
    $region6: #{tpu_custom_call.1} parent=1 // loop_footer
      %s44 = sadd.s32 1, %s40
    $region7: #{tpu_custom_call.1} parent=1 // loop_footer_branch
      %39 = sbr.rel target = $region3
    $region8: #{tpu_custom_call.1} parent=1 // loop_exit
      _
    %3578 = vsyncpa [#allocation3], 1
    %s3579 = scalar_lea.sflag [#allocation3], 1
    %3580 = vsyncpa %s3579, 1
    %3581 = vsyncpa [#allocation6], 1
    %3582 = vsyncpa [#allocation9], 1
    %3583 = vsyncpa [#allocation12], 1
    %3584 = vsyncpa [#allocation15], 1
    %3585 = vsyncpa [#allocation18], 1
    %3586 = vsyncpa [#allocation21], 1
    %3587 = vsyncpa [#allocation4], 1
    %s3588 = scalar_lea.sflag [#allocation4], 1
    %3589 = vsyncpa %s3588, 1

</llo_original>
